<compile_context>
chip_gen: v5e
topology: v5e:2x2
jax: 0.10.0
libtpu: 0.0.40
codegen_flags: <defaults>
</compile_context>

<pallas_src>
import functools

import numpy as np
import jax
import jax.numpy as jnp
from jax.experimental import pallas as pl
from jax.experimental.pallas import tpu as pltpu


# ----------------------------------------------------------------------------
# Host-side constant construction (one-time, outside the hot path)
# ----------------------------------------------------------------------------
def _gather_mats(h, w, kh, kw, stride, padding):
    """One-hot matrices G[k] of shape (H*W, OH*OW) with
       G[kh*KW+kw, ih*W+iw, oh*OW+ow] = 1 iff ih = stride*oh + kh - padding
                                          and iw = stride*ow + kw - padding.
    Out-of-range input coords are simply absent => implicit zero padding."""
    oh = (h + 2 * padding - kh) // stride + 1
    ow = (w + 2 * padding - kw) // stride + 1
    g = np.zeros((kh * kw, h * w, oh * ow), np.float32)
    for i in range(kh):
        for j in range(kw):
            k = i * kw + j
            for oi in range(oh):
                ii = stride * oi + i - padding
                if ii < 0 or ii >= h:
                    continue
                for oj in range(ow):
                    jj = stride * oj + j - padding
                    if jj < 0 or jj >= w:
                        continue
                    g[k, ii * w + jj, oi * ow + oj] = 1.0
    return jnp.asarray(g), oh, ow


# ----------------------------------------------------------------------------
# The fused kernel: whole forward pass for one image, all data in VMEM.
# ----------------------------------------------------------------------------
def _fused_cnn_kernel(x_ref, *refs, n_conv, n_fc):
    o_ref = refs[-1]
    conv_refs = refs[: 3 * n_conv]
    fc_refs = refs[3 * n_conv: 3 * n_conv + 2 * n_fc]

    h = x_ref[0]                                    # (C, H*W), spatial on lanes

    # ---- conv stack: h = relu(b + sum_k W_k @ (h @ G_k)) ------------------
    for li in range(n_conv):
        wk_ref, b_ref, g_ref = conv_refs[3 * li: 3 * li + 3]
        acc = None
        for k in range(wk_ref.shape[0]):            # KH*KW taps, fully unrolled
            piece = jnp.dot(h, g_ref[k], preferred_element_type=jnp.float32)
            term = jnp.dot(wk_ref[k], piece, preferred_element_type=jnp.float32)
            acc = term if acc is None else acc + term
        h = jnp.maximum(acc + b_ref[...], 0.0)      # (OC, OH*OW)

    # ---- MLP head (first layer folds the NCHW flatten; relu on hidden) ----
    for li in range(n_fc):
        w_ref, b_ref = fc_refs[2 * li: 2 * li + 2]
        if li == 0:
            acc = b_ref[...]                        # (1, hidden)
            for c in range(w_ref.shape[0]):         # channel-major == x.view(N,-1)
                acc = acc + jnp.dot(h[c:c + 1, :], w_ref[c],
                                    preferred_element_type=jnp.float32)
        else:
            acc = jnp.dot(h, w_ref[...],
                          preferred_element_type=jnp.float32) + b_ref[...]
        h = jnp.maximum(acc, 0.0) if li < n_fc - 1 else acc

    o_ref[0] = h.astype(o_ref.dtype)


# ----------------------------------------------------------------------------
# Wrapper: prepare constants once, then issue a single pallas_call per forward.
# ----------------------------------------------------------------------------
def make_cnn_forward(conv_params, fc_params, input_hw):
    """conv_params: [(w[OC,C,KH,KW], b[OC], stride, padding), ...]
       fc_params:   [(w[in,out], b[out]), ...]  (relu on all but last layer)
       input_hw:    (H, W) of the conv input."""
    H, W = input_hw
    h, w = H, W
    c_in = conv_params[0][0].shape[1]

    const_args = []
    flops_per_img = 0
    for (wt, bs, stride, padding) in conv_params:
        oc, cin, k1, k2 = wt.shape
        assert cin == c_in
        g, oh, ow = _gather_mats(h, w, k1, k2, stride, padding)
        wk = jnp.asarray(wt, jnp.float32).transpose(2, 3, 0, 1).reshape(k1 * k2, oc, cin)
        const_args += [wk, jnp.asarray(bs, jnp.float32).reshape(oc, 1), g]
        flops_per_img += k1 * k2 * (2 * cin * h * w * oh * ow + 2 * oc * cin * oh * ow)
        h, w, c_in = oh, ow, oc

    c_last, p_last = c_in, h * w
    for idx, (fw, fb) in enumerate(fc_params):
        fw = jnp.asarray(fw, jnp.float32)
        fb = jnp.asarray(fb, jnp.float32)
        fin, fout = fw.shape
        if idx == 0:
            assert fin == c_last * p_last, (fin, c_last, p_last)
            fw = fw.reshape(c_last, p_last, fout)   # per-channel chunks (host side)
        const_args += [fw, fb.reshape(1, fout)]
        flops_per_img += 2 * fin * fout

    n_out = fc_params[-1][0].shape[1]
    n_conv, n_fc = len(conv_params), len(fc_params)
    const_bytes = sum(int(np.prod(a.shape)) * a.dtype.itemsize for a in const_args)
    kernel = functools.partial(_fused_cnn_kernel, n_conv=n_conv, n_fc=n_fc)

    def _const_index_map(ndim):
        zeros = (0,) * ndim
        return lambda i: zeros                      # constant block -> DMA'd once

    def forward(x):
        if x.ndim == 3:                             # matches x.unsqueeze(0)
            x = x[None]
        n, c, hh, ww = x.shape
        x2 = x.reshape(n, c, hh * ww)               # tiny one-time input reshape

        in_specs = [pl.BlockSpec((1, c, hh * ww), lambda i: (i, 0, 0))]
        in_specs += [pl.BlockSpec(a.shape, _const_index_map(a.ndim))
                     for a in const_args]
        out_specs = pl.BlockSpec((1, 1, n_out), lambda i: (i, 0, 0))

        cost = pl.CostEstimate(
            flops=int(n * flops_per_img),
            transcendentals=0,
            bytes_accessed=int(const_bytes + x2.size * x2.dtype.itemsize
                               + n * n_out * 4),
        )
        out = pl.pallas_call(
            kernel,
            out_shape=jax.ShapeDtypeStruct((n, 1, n_out), jnp.float32),
            grid=(n,),
            in_specs=in_specs,
            out_specs=out_specs,
            compiler_params=pltpu.CompilerParams(
                dimension_semantics=("parallel",)),
            cost_estimate=cost,
        )(x2, *const_args)
        return out.reshape(n, n_out)

    return forward


# ----------------------------------------------------------------------------
# Pure-JAX reference (identical semantics to the PyTorch module) + demo
# ----------------------------------------------------------------------------
def _reference_forward(x, conv_params, fc_params):
    if x.ndim == 3:
        x = x[None]
    for (wt, bs, stride, padding) in conv_params:
        x = jax.lax.conv_general_dilated(
            x, wt, window_strides=(stride, stride),
            padding=[(padding, padding), (padding, padding)],
            dimension_numbers=("NCHW", "OIHW", "NCHW"))
        x = jnp.maximum(x + bs.reshape(1, -1, 1, 1), 0.0)
    x = x.reshape(x.shape[0], -1)                   # x.view(N, -1), NCHW order
    for i, (fw, fb) in enumerate(fc_params):
        x = x @ fw + fb
        if i < len(fc_params) - 1:
            x = jnp.maximum(x, 0.0)
    return x


def _init_params():
    key = jax.random.PRNGKey(0)
    keys = jax.random.split(key, 8)
    # CNNLayer 1: Conv2d(4 -> 8, kernel=3, stride=1, padding=0), ReLU, identity pool
    w1 = jax.random.normal(keys[0], (8, 4, 3, 3), jnp.float32) * 0.1
    b1 = jax.random.normal(keys[1], (8,), jnp.float32) * 0.1
    # CNNLayer 2: Conv2d(8 -> 16, kernel=3, stride=2, padding=0), ReLU, identity pool
    w2 = jax.random.normal(keys[2], (16, 8, 3, 3), jnp.float32) * 0.1
    b2 = jax.random.normal(keys[3], (16,), jnp.float32) * 0.1
    conv_params = [(w1, b1, 1, 0), (w2, b2, 2, 0)]
    # MLP head: 16*6*6 = 576 -> 32 (relu) -> 4 (identity)
    fw1 = jax.random.normal(keys[4], (576, 32), jnp.float32) * 0.05
    fb1 = jax.random.normal(keys[5], (32,), jnp.float32) * 0.05
    fw2 = jax.random.normal(keys[6], (32, 4), jnp.float32) * 0.05
    fb2 = jax.random.normal(keys[7], (4,), jnp.float32) * 0.05
    fc_params = [(fw1, fb1), (fw2, fb2)]
    return conv_params, fc_params


if __name__ == "__main__":
    conv_params, fc_params = _init_params()
    x = jax.random.normal(jax.random.PRNGKey(0), (2, 4, 16, 16), jnp.float32)

    forward = jax.jit(make_cnn_forward(conv_params, fc_params, input_hw=(16, 16)))
    out = jax.block_until_ready(forward(x))

    assert out.shape == (2, 4), out.shape
    assert out.dtype == jnp.float32

    ref = _reference_forward(x, conv_params, fc_params)
    assert jnp.allclose(out, ref, rtol=2e-2, atol=2e-2), (out, ref)

    print("KERNEL_OK")
</pallas_src>

<mosaic_0001>
module attributes {stable_mosaic.version = 11 : i64} {
  func.func @_fused_cnn_kernel(%arg0: i32, %arg1: memref<1x4x256xf32, #tpu.memory_space<vmem>>, %arg2: memref<9x8x4xf32, #tpu.memory_space<vmem>>, %arg3: memref<8x1xf32, #tpu.memory_space<vmem>>, %arg4: memref<9x256x196xf32, #tpu.memory_space<vmem>>, %arg5: memref<9x16x8xf32, #tpu.memory_space<vmem>>, %arg6: memref<16x1xf32, #tpu.memory_space<vmem>>, %arg7: memref<9x196x36xf32, #tpu.memory_space<vmem>>, %arg8: memref<16x36x32xf32, #tpu.memory_space<vmem>>, %arg9: memref<1x32xf32, #tpu.memory_space<vmem>>, %arg10: memref<32x4xf32, #tpu.memory_space<vmem>>, %arg11: memref<1x4xf32, #tpu.memory_space<vmem>>, %arg12: memref<1x1x4xf32, #tpu.memory_space<vmem>>) attributes {dimension_semantics = [#tpu.dimension_semantics<parallel>], iteration_bounds = array<i64: 2>, scalar_prefetch = 0 : i64, scratch_operands = 0 : i64, tpu.core_type = #tpu.core_type<tc>, window_params = [{transform_indices = @transform_0, window_bounds = array<i64: 1, 4, 256>}, {pipeline_mode = #tpu.pipeline_mode<synchronous>, transform_indices = @transform_1, window_bounds = array<i64: 9, 8, 4>}, {pipeline_mode = #tpu.pipeline_mode<synchronous>, transform_indices = @transform_2, window_bounds = array<i64: 8, 1>}, {pipeline_mode = #tpu.pipeline_mode<synchronous>, transform_indices = @transform_3, window_bounds = array<i64: 9, 256, 196>}, {pipeline_mode = #tpu.pipeline_mode<synchronous>, transform_indices = @transform_4, window_bounds = array<i64: 9, 16, 8>}, {pipeline_mode = #tpu.pipeline_mode<synchronous>, transform_indices = @transform_5, window_bounds = array<i64: 16, 1>}, {pipeline_mode = #tpu.pipeline_mode<synchronous>, transform_indices = @transform_6, window_bounds = array<i64: 9, 196, 36>}, {pipeline_mode = #tpu.pipeline_mode<synchronous>, transform_indices = @transform_7, window_bounds = array<i64: 16, 36, 32>}, {pipeline_mode = #tpu.pipeline_mode<synchronous>, transform_indices = @transform_8, window_bounds = array<i64: 1, 32>}, {pipeline_mode = #tpu.pipeline_mode<synchronous>, transform_indices = @transform_9, window_bounds = array<i64: 32, 4>}, {pipeline_mode = #tpu.pipeline_mode<synchronous>, transform_indices = @transform_10, window_bounds = array<i64: 1, 4>}, {transform_indices = @transform_11, window_bounds = array<i64: 1, 1, 4>}]} {
    %c0 = arith.constant 0 : index
    %c0_0 = arith.constant 0 : index
    %c0_1 = arith.constant 0 : index
    %0 = vector.load %arg1[%c0, %c0_0, %c0_1] : memref<1x4x256xf32, #tpu.memory_space<vmem>>, vector<1x4x256xf32>
    %1 = vector.shape_cast %0 : vector<1x4x256xf32> to vector<4x256xf32>
    %c0_2 = arith.constant 0 : index
    %c0_3 = arith.constant 0 : index
    %c0_4 = arith.constant 0 : index
    %2 = vector.load %arg4[%c0_2, %c0_3, %c0_4] : memref<9x256x196xf32, #tpu.memory_space<vmem>>, vector<1x256x196xf32>
    %3 = vector.shape_cast %2 : vector<1x256x196xf32> to vector<256x196xf32>
    %cst = arith.constant dense<0.000000e+00> : vector<4x196xf32>
    %4 = tpu.matmul %1, %3, %cst {dimension_numbers = #tpu.dot_dimension_numbers<[1], [0], [0], [1], [0, 0, 1, 1], [], []>} : vector<4x256xf32>, vector<256x196xf32>, vector<4x196xf32> -> vector<4x196xf32>
    %c0_5 = arith.constant 0 : index
    %c0_6 = arith.constant 0 : index
    %c0_7 = arith.constant 0 : index
    %5 = vector.load %arg2[%c0_5, %c0_6, %c0_7] : memref<9x8x4xf32, #tpu.memory_space<vmem>>, vector<1x8x4xf32>
    %6 = vector.shape_cast %5 : vector<1x8x4xf32> to vector<8x4xf32>
    %cst_8 = arith.constant dense<0.000000e+00> : vector<8x196xf32>
    %7 = tpu.matmul %6, %4, %cst_8 {dimension_numbers = #tpu.dot_dimension_numbers<[1], [0], [0], [1], [0, 0, 1, 1], [], []>} : vector<8x4xf32>, vector<4x196xf32>, vector<8x196xf32> -> vector<8x196xf32>
    %c1 = arith.constant 1 : index
    %c0_9 = arith.constant 0 : index
    %c0_10 = arith.constant 0 : index
    %8 = vector.load %arg4[%c1, %c0_9, %c0_10] : memref<9x256x196xf32, #tpu.memory_space<vmem>>, vector<1x256x196xf32>
    %9 = vector.shape_cast %8 : vector<1x256x196xf32> to vector<256x196xf32>
    %cst_11 = arith.constant dense<0.000000e+00> : vector<4x196xf32>
    %10 = tpu.matmul %1, %9, %cst_11 {dimension_numbers = #tpu.dot_dimension_numbers<[1], [0], [0], [1], [0, 0, 1, 1], [], []>} : vector<4x256xf32>, vector<256x196xf32>, vector<4x196xf32> -> vector<4x196xf32>
    %c1_12 = arith.constant 1 : index
    %c0_13 = arith.constant 0 : index
    %c0_14 = arith.constant 0 : index
    %11 = vector.load %arg2[%c1_12, %c0_13, %c0_14] : memref<9x8x4xf32, #tpu.memory_space<vmem>>, vector<1x8x4xf32>
    %12 = vector.shape_cast %11 : vector<1x8x4xf32> to vector<8x4xf32>
    %cst_15 = arith.constant dense<0.000000e+00> : vector<8x196xf32>
    %13 = tpu.matmul %12, %10, %cst_15 {dimension_numbers = #tpu.dot_dimension_numbers<[1], [0], [0], [1], [0, 0, 1, 1], [], []>} : vector<8x4xf32>, vector<4x196xf32>, vector<8x196xf32> -> vector<8x196xf32>
    %14 = arith.addf %7, %13 : vector<8x196xf32>
    %c2 = arith.constant 2 : index
    %c0_16 = arith.constant 0 : index
    %c0_17 = arith.constant 0 : index
    %15 = vector.load %arg4[%c2, %c0_16, %c0_17] : memref<9x256x196xf32, #tpu.memory_space<vmem>>, vector<1x256x196xf32>
    %16 = vector.shape_cast %15 : vector<1x256x196xf32> to vector<256x196xf32>
    %cst_18 = arith.constant dense<0.000000e+00> : vector<4x196xf32>
    %17 = tpu.matmul %1, %16, %cst_18 {dimension_numbers = #tpu.dot_dimension_numbers<[1], [0], [0], [1], [0, 0, 1, 1], [], []>} : vector<4x256xf32>, vector<256x196xf32>, vector<4x196xf32> -> vector<4x196xf32>
    %c2_19 = arith.constant 2 : index
    %c0_20 = arith.constant 0 : index
    %c0_21 = arith.constant 0 : index
    %18 = vector.load %arg2[%c2_19, %c0_20, %c0_21] : memref<9x8x4xf32, #tpu.memory_space<vmem>>, vector<1x8x4xf32>
    %19 = vector.shape_cast %18 : vector<1x8x4xf32> to vector<8x4xf32>
    %cst_22 = arith.constant dense<0.000000e+00> : vector<8x196xf32>
    %20 = tpu.matmul %19, %17, %cst_22 {dimension_numbers = #tpu.dot_dimension_numbers<[1], [0], [0], [1], [0, 0, 1, 1], [], []>} : vector<8x4xf32>, vector<4x196xf32>, vector<8x196xf32> -> vector<8x196xf32>
    %21 = arith.addf %14, %20 : vector<8x196xf32>
    %c3 = arith.constant 3 : index
    %c0_23 = arith.constant 0 : index
    %c0_24 = arith.constant 0 : index
    %22 = vector.load %arg4[%c3, %c0_23, %c0_24] : memref<9x256x196xf32, #tpu.memory_space<vmem>>, vector<1x256x196xf32>
    %23 = vector.shape_cast %22 : vector<1x256x196xf32> to vector<256x196xf32>
    %cst_25 = arith.constant dense<0.000000e+00> : vector<4x196xf32>
    %24 = tpu.matmul %1, %23, %cst_25 {dimension_numbers = #tpu.dot_dimension_numbers<[1], [0], [0], [1], [0, 0, 1, 1], [], []>} : vector<4x256xf32>, vector<256x196xf32>, vector<4x196xf32> -> vector<4x196xf32>
    %c3_26 = arith.constant 3 : index
    %c0_27 = arith.constant 0 : index
    %c0_28 = arith.constant 0 : index
    %25 = vector.load %arg2[%c3_26, %c0_27, %c0_28] : memref<9x8x4xf32, #tpu.memory_space<vmem>>, vector<1x8x4xf32>
    %26 = vector.shape_cast %25 : vector<1x8x4xf32> to vector<8x4xf32>
    %cst_29 = arith.constant dense<0.000000e+00> : vector<8x196xf32>
    %27 = tpu.matmul %26, %24, %cst_29 {dimension_numbers = #tpu.dot_dimension_numbers<[1], [0], [0], [1], [0, 0, 1, 1], [], []>} : vector<8x4xf32>, vector<4x196xf32>, vector<8x196xf32> -> vector<8x196xf32>
    %28 = arith.addf %21, %27 : vector<8x196xf32>
    %c4 = arith.constant 4 : index
    %c0_30 = arith.constant 0 : index
    %c0_31 = arith.constant 0 : index
    %29 = vector.load %arg4[%c4, %c0_30, %c0_31] : memref<9x256x196xf32, #tpu.memory_space<vmem>>, vector<1x256x196xf32>
    %30 = vector.shape_cast %29 : vector<1x256x196xf32> to vector<256x196xf32>
    %cst_32 = arith.constant dense<0.000000e+00> : vector<4x196xf32>
    %31 = tpu.matmul %1, %30, %cst_32 {dimension_numbers = #tpu.dot_dimension_numbers<[1], [0], [0], [1], [0, 0, 1, 1], [], []>} : vector<4x256xf32>, vector<256x196xf32>, vector<4x196xf32> -> vector<4x196xf32>
    %c4_33 = arith.constant 4 : index
    %c0_34 = arith.constant 0 : index
    %c0_35 = arith.constant 0 : index
    %32 = vector.load %arg2[%c4_33, %c0_34, %c0_35] : memref<9x8x4xf32, #tpu.memory_space<vmem>>, vector<1x8x4xf32>
    %33 = vector.shape_cast %32 : vector<1x8x4xf32> to vector<8x4xf32>
    %cst_36 = arith.constant dense<0.000000e+00> : vector<8x196xf32>
    %34 = tpu.matmul %33, %31, %cst_36 {dimension_numbers = #tpu.dot_dimension_numbers<[1], [0], [0], [1], [0, 0, 1, 1], [], []>} : vector<8x4xf32>, vector<4x196xf32>, vector<8x196xf32> -> vector<8x196xf32>
    %35 = arith.addf %28, %34 : vector<8x196xf32>
    %c5 = arith.constant 5 : index
    %c0_37 = arith.constant 0 : index
    %c0_38 = arith.constant 0 : index
    %36 = vector.load %arg4[%c5, %c0_37, %c0_38] : memref<9x256x196xf32, #tpu.memory_space<vmem>>, vector<1x256x196xf32>
    %37 = vector.shape_cast %36 : vector<1x256x196xf32> to vector<256x196xf32>
    %cst_39 = arith.constant dense<0.000000e+00> : vector<4x196xf32>
    %38 = tpu.matmul %1, %37, %cst_39 {dimension_numbers = #tpu.dot_dimension_numbers<[1], [0], [0], [1], [0, 0, 1, 1], [], []>} : vector<4x256xf32>, vector<256x196xf32>, vector<4x196xf32> -> vector<4x196xf32>
    %c5_40 = arith.constant 5 : index
    %c0_41 = arith.constant 0 : index
    %c0_42 = arith.constant 0 : index
    %39 = vector.load %arg2[%c5_40, %c0_41, %c0_42] : memref<9x8x4xf32, #tpu.memory_space<vmem>>, vector<1x8x4xf32>
    %40 = vector.shape_cast %39 : vector<1x8x4xf32> to vector<8x4xf32>
    %cst_43 = arith.constant dense<0.000000e+00> : vector<8x196xf32>
    %41 = tpu.matmul %40, %38, %cst_43 {dimension_numbers = #tpu.dot_dimension_numbers<[1], [0], [0], [1], [0, 0, 1, 1], [], []>} : vector<8x4xf32>, vector<4x196xf32>, vector<8x196xf32> -> vector<8x196xf32>
    %42 = arith.addf %35, %41 : vector<8x196xf32>
    %c6 = arith.constant 6 : index
    %c0_44 = arith.constant 0 : index
    %c0_45 = arith.constant 0 : index
    %43 = vector.load %arg4[%c6, %c0_44, %c0_45] : memref<9x256x196xf32, #tpu.memory_space<vmem>>, vector<1x256x196xf32>
    %44 = vector.shape_cast %43 : vector<1x256x196xf32> to vector<256x196xf32>
    %cst_46 = arith.constant dense<0.000000e+00> : vector<4x196xf32>
    %45 = tpu.matmul %1, %44, %cst_46 {dimension_numbers = #tpu.dot_dimension_numbers<[1], [0], [0], [1], [0, 0, 1, 1], [], []>} : vector<4x256xf32>, vector<256x196xf32>, vector<4x196xf32> -> vector<4x196xf32>
    %c6_47 = arith.constant 6 : index
    %c0_48 = arith.constant 0 : index
    %c0_49 = arith.constant 0 : index
    %46 = vector.load %arg2[%c6_47, %c0_48, %c0_49] : memref<9x8x4xf32, #tpu.memory_space<vmem>>, vector<1x8x4xf32>
    %47 = vector.shape_cast %46 : vector<1x8x4xf32> to vector<8x4xf32>
    %cst_50 = arith.constant dense<0.000000e+00> : vector<8x196xf32>
    %48 = tpu.matmul %47, %45, %cst_50 {dimension_numbers = #tpu.dot_dimension_numbers<[1], [0], [0], [1], [0, 0, 1, 1], [], []>} : vector<8x4xf32>, vector<4x196xf32>, vector<8x196xf32> -> vector<8x196xf32>
    %49 = arith.addf %42, %48 : vector<8x196xf32>
    %c7 = arith.constant 7 : index
    %c0_51 = arith.constant 0 : index
    %c0_52 = arith.constant 0 : index
    %50 = vector.load %arg4[%c7, %c0_51, %c0_52] : memref<9x256x196xf32, #tpu.memory_space<vmem>>, vector<1x256x196xf32>
    %51 = vector.shape_cast %50 : vector<1x256x196xf32> to vector<256x196xf32>
    %cst_53 = arith.constant dense<0.000000e+00> : vector<4x196xf32>
    %52 = tpu.matmul %1, %51, %cst_53 {dimension_numbers = #tpu.dot_dimension_numbers<[1], [0], [0], [1], [0, 0, 1, 1], [], []>} : vector<4x256xf32>, vector<256x196xf32>, vector<4x196xf32> -> vector<4x196xf32>
    %c7_54 = arith.constant 7 : index
    %c0_55 = arith.constant 0 : index
    %c0_56 = arith.constant 0 : index
    %53 = vector.load %arg2[%c7_54, %c0_55, %c0_56] : memref<9x8x4xf32, #tpu.memory_space<vmem>>, vector<1x8x4xf32>
    %54 = vector.shape_cast %53 : vector<1x8x4xf32> to vector<8x4xf32>
    %cst_57 = arith.constant dense<0.000000e+00> : vector<8x196xf32>
    %55 = tpu.matmul %54, %52, %cst_57 {dimension_numbers = #tpu.dot_dimension_numbers<[1], [0], [0], [1], [0, 0, 1, 1], [], []>} : vector<8x4xf32>, vector<4x196xf32>, vector<8x196xf32> -> vector<8x196xf32>
    %56 = arith.addf %49, %55 : vector<8x196xf32>
    %c8 = arith.constant 8 : index
    %c0_58 = arith.constant 0 : index
    %c0_59 = arith.constant 0 : index
    %57 = vector.load %arg4[%c8, %c0_58, %c0_59] : memref<9x256x196xf32, #tpu.memory_space<vmem>>, vector<1x256x196xf32>
    %58 = vector.shape_cast %57 : vector<1x256x196xf32> to vector<256x196xf32>
    %cst_60 = arith.constant dense<0.000000e+00> : vector<4x196xf32>
    %59 = tpu.matmul %1, %58, %cst_60 {dimension_numbers = #tpu.dot_dimension_numbers<[1], [0], [0], [1], [0, 0, 1, 1], [], []>} : vector<4x256xf32>, vector<256x196xf32>, vector<4x196xf32> -> vector<4x196xf32>
    %c8_61 = arith.constant 8 : index
    %c0_62 = arith.constant 0 : index
    %c0_63 = arith.constant 0 : index
    %60 = vector.load %arg2[%c8_61, %c0_62, %c0_63] : memref<9x8x4xf32, #tpu.memory_space<vmem>>, vector<1x8x4xf32>
    %61 = vector.shape_cast %60 : vector<1x8x4xf32> to vector<8x4xf32>
    %cst_64 = arith.constant dense<0.000000e+00> : vector<8x196xf32>
    %62 = tpu.matmul %61, %59, %cst_64 {dimension_numbers = #tpu.dot_dimension_numbers<[1], [0], [0], [1], [0, 0, 1, 1], [], []>} : vector<8x4xf32>, vector<4x196xf32>, vector<8x196xf32> -> vector<8x196xf32>
    %63 = arith.addf %56, %62 : vector<8x196xf32>
    %c0_65 = arith.constant 0 : index
    %c0_66 = arith.constant 0 : index
    %64 = vector.load %arg3[%c0_65, %c0_66] : memref<8x1xf32, #tpu.memory_space<vmem>>, vector<8x1xf32>
    %65 = vector.broadcast %64 : vector<8x1xf32> to vector<8x196xf32>
    %66 = arith.addf %63, %65 : vector<8x196xf32>
    %cst_67 = arith.constant 0.000000e+00 : f32
    %67 = vector.broadcast %cst_67 : f32 to vector<8x196xf32>
    %68 = arith.maximumf %66, %67 : vector<8x196xf32>
    %c0_68 = arith.constant 0 : index
    %c0_69 = arith.constant 0 : index
    %c0_70 = arith.constant 0 : index
    %69 = vector.load %arg7[%c0_68, %c0_69, %c0_70] : memref<9x196x36xf32, #tpu.memory_space<vmem>>, vector<1x196x36xf32>
    %70 = vector.shape_cast %69 : vector<1x196x36xf32> to vector<196x36xf32>
    %cst_71 = arith.constant dense<0.000000e+00> : vector<8x36xf32>
    %71 = tpu.matmul %68, %70, %cst_71 {dimension_numbers = #tpu.dot_dimension_numbers<[1], [0], [0], [1], [0, 0, 1, 1], [], []>} : vector<8x196xf32>, vector<196x36xf32>, vector<8x36xf32> -> vector<8x36xf32>
    %c0_72 = arith.constant 0 : index
    %c0_73 = arith.constant 0 : index
    %c0_74 = arith.constant 0 : index
    %72 = vector.load %arg5[%c0_72, %c0_73, %c0_74] : memref<9x16x8xf32, #tpu.memory_space<vmem>>, vector<1x16x8xf32>
    %73 = vector.shape_cast %72 : vector<1x16x8xf32> to vector<16x8xf32>
    %cst_75 = arith.constant dense<0.000000e+00> : vector<16x36xf32>
    %74 = tpu.matmul %73, %71, %cst_75 {dimension_numbers = #tpu.dot_dimension_numbers<[1], [0], [0], [1], [0, 0, 1, 1], [], []>} : vector<16x8xf32>, vector<8x36xf32>, vector<16x36xf32> -> vector<16x36xf32>
    %c1_76 = arith.constant 1 : index
    %c0_77 = arith.constant 0 : index
    %c0_78 = arith.constant 0 : index
    %75 = vector.load %arg7[%c1_76, %c0_77, %c0_78] : memref<9x196x36xf32, #tpu.memory_space<vmem>>, vector<1x196x36xf32>
    %76 = vector.shape_cast %75 : vector<1x196x36xf32> to vector<196x36xf32>
    %cst_79 = arith.constant dense<0.000000e+00> : vector<8x36xf32>
    %77 = tpu.matmul %68, %76, %cst_79 {dimension_numbers = #tpu.dot_dimension_numbers<[1], [0], [0], [1], [0, 0, 1, 1], [], []>} : vector<8x196xf32>, vector<196x36xf32>, vector<8x36xf32> -> vector<8x36xf32>
    %c1_80 = arith.constant 1 : index
    %c0_81 = arith.constant 0 : index
    %c0_82 = arith.constant 0 : index
    %78 = vector.load %arg5[%c1_80, %c0_81, %c0_82] : memref<9x16x8xf32, #tpu.memory_space<vmem>>, vector<1x16x8xf32>
    %79 = vector.shape_cast %78 : vector<1x16x8xf32> to vector<16x8xf32>
    %cst_83 = arith.constant dense<0.000000e+00> : vector<16x36xf32>
    %80 = tpu.matmul %79, %77, %cst_83 {dimension_numbers = #tpu.dot_dimension_numbers<[1], [0], [0], [1], [0, 0, 1, 1], [], []>} : vector<16x8xf32>, vector<8x36xf32>, vector<16x36xf32> -> vector<16x36xf32>
    %81 = arith.addf %74, %80 : vector<16x36xf32>
    %c2_84 = arith.constant 2 : index
    %c0_85 = arith.constant 0 : index
    %c0_86 = arith.constant 0 : index
    %82 = vector.load %arg7[%c2_84, %c0_85, %c0_86] : memref<9x196x36xf32, #tpu.memory_space<vmem>>, vector<1x196x36xf32>
    %83 = vector.shape_cast %82 : vector<1x196x36xf32> to vector<196x36xf32>
    %cst_87 = arith.constant dense<0.000000e+00> : vector<8x36xf32>
    %84 = tpu.matmul %68, %83, %cst_87 {dimension_numbers = #tpu.dot_dimension_numbers<[1], [0], [0], [1], [0, 0, 1, 1], [], []>} : vector<8x196xf32>, vector<196x36xf32>, vector<8x36xf32> -> vector<8x36xf32>
    %c2_88 = arith.constant 2 : index
    %c0_89 = arith.constant 0 : index
    %c0_90 = arith.constant 0 : index
    %85 = vector.load %arg5[%c2_88, %c0_89, %c0_90] : memref<9x16x8xf32, #tpu.memory_space<vmem>>, vector<1x16x8xf32>
    %86 = vector.shape_cast %85 : vector<1x16x8xf32> to vector<16x8xf32>
    %cst_91 = arith.constant dense<0.000000e+00> : vector<16x36xf32>
    %87 = tpu.matmul %86, %84, %cst_91 {dimension_numbers = #tpu.dot_dimension_numbers<[1], [0], [0], [1], [0, 0, 1, 1], [], []>} : vector<16x8xf32>, vector<8x36xf32>, vector<16x36xf32> -> vector<16x36xf32>
    %88 = arith.addf %81, %87 : vector<16x36xf32>
    %c3_92 = arith.constant 3 : index
    %c0_93 = arith.constant 0 : index
    %c0_94 = arith.constant 0 : index
    %89 = vector.load %arg7[%c3_92, %c0_93, %c0_94] : memref<9x196x36xf32, #tpu.memory_space<vmem>>, vector<1x196x36xf32>
    %90 = vector.shape_cast %89 : vector<1x196x36xf32> to vector<196x36xf32>
    %cst_95 = arith.constant dense<0.000000e+00> : vector<8x36xf32>
    %91 = tpu.matmul %68, %90, %cst_95 {dimension_numbers = #tpu.dot_dimension_numbers<[1], [0], [0], [1], [0, 0, 1, 1], [], []>} : vector<8x196xf32>, vector<196x36xf32>, vector<8x36xf32> -> vector<8x36xf32>
    %c3_96 = arith.constant 3 : index
    %c0_97 = arith.constant 0 : index
    %c0_98 = arith.constant 0 : index
    %92 = vector.load %arg5[%c3_96, %c0_97, %c0_98] : memref<9x16x8xf32, #tpu.memory_space<vmem>>, vector<1x16x8xf32>
    %93 = vector.shape_cast %92 : vector<1x16x8xf32> to vector<16x8xf32>
    %cst_99 = arith.constant dense<0.000000e+00> : vector<16x36xf32>
    %94 = tpu.matmul %93, %91, %cst_99 {dimension_numbers = #tpu.dot_dimension_numbers<[1], [0], [0], [1], [0, 0, 1, 1], [], []>} : vector<16x8xf32>, vector<8x36xf32>, vector<16x36xf32> -> vector<16x36xf32>
    %95 = arith.addf %88, %94 : vector<16x36xf32>
    %c4_100 = arith.constant 4 : index
    %c0_101 = arith.constant 0 : index
    %c0_102 = arith.constant 0 : index
    %96 = vector.load %arg7[%c4_100, %c0_101, %c0_102] : memref<9x196x36xf32, #tpu.memory_space<vmem>>, vector<1x196x36xf32>
    %97 = vector.shape_cast %96 : vector<1x196x36xf32> to vector<196x36xf32>
    %cst_103 = arith.constant dense<0.000000e+00> : vector<8x36xf32>
    %98 = tpu.matmul %68, %97, %cst_103 {dimension_numbers = #tpu.dot_dimension_numbers<[1], [0], [0], [1], [0, 0, 1, 1], [], []>} : vector<8x196xf32>, vector<196x36xf32>, vector<8x36xf32> -> vector<8x36xf32>
    %c4_104 = arith.constant 4 : index
    %c0_105 = arith.constant 0 : index
    %c0_106 = arith.constant 0 : index
    %99 = vector.load %arg5[%c4_104, %c0_105, %c0_106] : memref<9x16x8xf32, #tpu.memory_space<vmem>>, vector<1x16x8xf32>
    %100 = vector.shape_cast %99 : vector<1x16x8xf32> to vector<16x8xf32>
    %cst_107 = arith.constant dense<0.000000e+00> : vector<16x36xf32>
    %101 = tpu.matmul %100, %98, %cst_107 {dimension_numbers = #tpu.dot_dimension_numbers<[1], [0], [0], [1], [0, 0, 1, 1], [], []>} : vector<16x8xf32>, vector<8x36xf32>, vector<16x36xf32> -> vector<16x36xf32>
    %102 = arith.addf %95, %101 : vector<16x36xf32>
    %c5_108 = arith.constant 5 : index
    %c0_109 = arith.constant 0 : index
    %c0_110 = arith.constant 0 : index
    %103 = vector.load %arg7[%c5_108, %c0_109, %c0_110] : memref<9x196x36xf32, #tpu.memory_space<vmem>>, vector<1x196x36xf32>
    %104 = vector.shape_cast %103 : vector<1x196x36xf32> to vector<196x36xf32>
    %cst_111 = arith.constant dense<0.000000e+00> : vector<8x36xf32>
    %105 = tpu.matmul %68, %104, %cst_111 {dimension_numbers = #tpu.dot_dimension_numbers<[1], [0], [0], [1], [0, 0, 1, 1], [], []>} : vector<8x196xf32>, vector<196x36xf32>, vector<8x36xf32> -> vector<8x36xf32>
    %c5_112 = arith.constant 5 : index
    %c0_113 = arith.constant 0 : index
    %c0_114 = arith.constant 0 : index
    %106 = vector.load %arg5[%c5_112, %c0_113, %c0_114] : memref<9x16x8xf32, #tpu.memory_space<vmem>>, vector<1x16x8xf32>
    %107 = vector.shape_cast %106 : vector<1x16x8xf32> to vector<16x8xf32>
    %cst_115 = arith.constant dense<0.000000e+00> : vector<16x36xf32>
    %108 = tpu.matmul %107, %105, %cst_115 {dimension_numbers = #tpu.dot_dimension_numbers<[1], [0], [0], [1], [0, 0, 1, 1], [], []>} : vector<16x8xf32>, vector<8x36xf32>, vector<16x36xf32> -> vector<16x36xf32>
    %109 = arith.addf %102, %108 : vector<16x36xf32>
    %c6_116 = arith.constant 6 : index
    %c0_117 = arith.constant 0 : index
    %c0_118 = arith.constant 0 : index
    %110 = vector.load %arg7[%c6_116, %c0_117, %c0_118] : memref<9x196x36xf32, #tpu.memory_space<vmem>>, vector<1x196x36xf32>
    %111 = vector.shape_cast %110 : vector<1x196x36xf32> to vector<196x36xf32>
    %cst_119 = arith.constant dense<0.000000e+00> : vector<8x36xf32>
    %112 = tpu.matmul %68, %111, %cst_119 {dimension_numbers = #tpu.dot_dimension_numbers<[1], [0], [0], [1], [0, 0, 1, 1], [], []>} : vector<8x196xf32>, vector<196x36xf32>, vector<8x36xf32> -> vector<8x36xf32>
    %c6_120 = arith.constant 6 : index
    %c0_121 = arith.constant 0 : index
    %c0_122 = arith.constant 0 : index
    %113 = vector.load %arg5[%c6_120, %c0_121, %c0_122] : memref<9x16x8xf32, #tpu.memory_space<vmem>>, vector<1x16x8xf32>
    %114 = vector.shape_cast %113 : vector<1x16x8xf32> to vector<16x8xf32>
    %cst_123 = arith.constant dense<0.000000e+00> : vector<16x36xf32>
    %115 = tpu.matmul %114, %112, %cst_123 {dimension_numbers = #tpu.dot_dimension_numbers<[1], [0], [0], [1], [0, 0, 1, 1], [], []>} : vector<16x8xf32>, vector<8x36xf32>, vector<16x36xf32> -> vector<16x36xf32>
    %116 = arith.addf %109, %115 : vector<16x36xf32>
    %c7_124 = arith.constant 7 : index
    %c0_125 = arith.constant 0 : index
    %c0_126 = arith.constant 0 : index
    %117 = vector.load %arg7[%c7_124, %c0_125, %c0_126] : memref<9x196x36xf32, #tpu.memory_space<vmem>>, vector<1x196x36xf32>
    %118 = vector.shape_cast %117 : vector<1x196x36xf32> to vector<196x36xf32>
    %cst_127 = arith.constant dense<0.000000e+00> : vector<8x36xf32>
    %119 = tpu.matmul %68, %118, %cst_127 {dimension_numbers = #tpu.dot_dimension_numbers<[1], [0], [0], [1], [0, 0, 1, 1], [], []>} : vector<8x196xf32>, vector<196x36xf32>, vector<8x36xf32> -> vector<8x36xf32>
    %c7_128 = arith.constant 7 : index
    %c0_129 = arith.constant 0 : index
    %c0_130 = arith.constant 0 : index
    %120 = vector.load %arg5[%c7_128, %c0_129, %c0_130] : memref<9x16x8xf32, #tpu.memory_space<vmem>>, vector<1x16x8xf32>
    %121 = vector.shape_cast %120 : vector<1x16x8xf32> to vector<16x8xf32>
    %cst_131 = arith.constant dense<0.000000e+00> : vector<16x36xf32>
    %122 = tpu.matmul %121, %119, %cst_131 {dimension_numbers = #tpu.dot_dimension_numbers<[1], [0], [0], [1], [0, 0, 1, 1], [], []>} : vector<16x8xf32>, vector<8x36xf32>, vector<16x36xf32> -> vector<16x36xf32>
    %123 = arith.addf %116, %122 : vector<16x36xf32>
    %c8_132 = arith.constant 8 : index
    %c0_133 = arith.constant 0 : index
    %c0_134 = arith.constant 0 : index
    %124 = vector.load %arg7[%c8_132, %c0_133, %c0_134] : memref<9x196x36xf32, #tpu.memory_space<vmem>>, vector<1x196x36xf32>
    %125 = vector.shape_cast %124 : vector<1x196x36xf32> to vector<196x36xf32>
    %cst_135 = arith.constant dense<0.000000e+00> : vector<8x36xf32>
    %126 = tpu.matmul %68, %125, %cst_135 {dimension_numbers = #tpu.dot_dimension_numbers<[1], [0], [0], [1], [0, 0, 1, 1], [], []>} : vector<8x196xf32>, vector<196x36xf32>, vector<8x36xf32> -> vector<8x36xf32>
    %c8_136 = arith.constant 8 : index
    %c0_137 = arith.constant 0 : index
    %c0_138 = arith.constant 0 : index
    %127 = vector.load %arg5[%c8_136, %c0_137, %c0_138] : memref<9x16x8xf32, #tpu.memory_space<vmem>>, vector<1x16x8xf32>
    %128 = vector.shape_cast %127 : vector<1x16x8xf32> to vector<16x8xf32>
    %cst_139 = arith.constant dense<0.000000e+00> : vector<16x36xf32>
    %129 = tpu.matmul %128, %126, %cst_139 {dimension_numbers = #tpu.dot_dimension_numbers<[1], [0], [0], [1], [0, 0, 1, 1], [], []>} : vector<16x8xf32>, vector<8x36xf32>, vector<16x36xf32> -> vector<16x36xf32>
    %130 = arith.addf %123, %129 : vector<16x36xf32>
    %c0_140 = arith.constant 0 : index
    %c0_141 = arith.constant 0 : index
    %131 = vector.load %arg6[%c0_140, %c0_141] : memref<16x1xf32, #tpu.memory_space<vmem>>, vector<16x1xf32>
    %132 = vector.broadcast %131 : vector<16x1xf32> to vector<16x36xf32>
    %133 = arith.addf %130, %132 : vector<16x36xf32>
    %cst_142 = arith.constant 0.000000e+00 : f32
    %134 = vector.broadcast %cst_142 : f32 to vector<16x36xf32>
    %135 = arith.maximumf %133, %134 : vector<16x36xf32>
    %c0_143 = arith.constant 0 : index
    %c0_144 = arith.constant 0 : index
    %136 = vector.load %arg9[%c0_143, %c0_144] : memref<1x32xf32, #tpu.memory_space<vmem>>, vector<1x32xf32>
    %137 = vector.extract_strided_slice %135 {offsets = [0, 0], sizes = [1, 36], strides = [1, 1]} : vector<16x36xf32> to vector<1x36xf32>
    %c0_145 = arith.constant 0 : index
    %c0_146 = arith.constant 0 : index
    %c0_147 = arith.constant 0 : index
    %138 = vector.load %arg8[%c0_145, %c0_146, %c0_147] : memref<16x36x32xf32, #tpu.memory_space<vmem>>, vector<1x36x32xf32>
    %139 = vector.shape_cast %138 : vector<1x36x32xf32> to vector<36x32xf32>
    %cst_148 = arith.constant dense<0.000000e+00> : vector<1x32xf32>
    %140 = tpu.matmul %137, %139, %cst_148 {dimension_numbers = #tpu.dot_dimension_numbers<[1], [0], [0], [1], [0, 0, 1, 1], [], []>} : vector<1x36xf32>, vector<36x32xf32>, vector<1x32xf32> -> vector<1x32xf32>
    %141 = arith.addf %136, %140 : vector<1x32xf32>
    %142 = vector.extract_strided_slice %135 {offsets = [1, 0], sizes = [1, 36], strides = [1, 1]} : vector<16x36xf32> to vector<1x36xf32>
    %c1_149 = arith.constant 1 : index
    %c0_150 = arith.constant 0 : index
    %c0_151 = arith.constant 0 : index
    %143 = vector.load %arg8[%c1_149, %c0_150, %c0_151] : memref<16x36x32xf32, #tpu.memory_space<vmem>>, vector<1x36x32xf32>
    %144 = vector.shape_cast %143 : vector<1x36x32xf32> to vector<36x32xf32>
    %cst_152 = arith.constant dense<0.000000e+00> : vector<1x32xf32>
    %145 = tpu.matmul %142, %144, %cst_152 {dimension_numbers = #tpu.dot_dimension_numbers<[1], [0], [0], [1], [0, 0, 1, 1], [], []>} : vector<1x36xf32>, vector<36x32xf32>, vector<1x32xf32> -> vector<1x32xf32>
    %146 = arith.addf %141, %145 : vector<1x32xf32>
    %147 = vector.extract_strided_slice %135 {offsets = [2, 0], sizes = [1, 36], strides = [1, 1]} : vector<16x36xf32> to vector<1x36xf32>
    %c2_153 = arith.constant 2 : index
    %c0_154 = arith.constant 0 : index
    %c0_155 = arith.constant 0 : index
    %148 = vector.load %arg8[%c2_153, %c0_154, %c0_155] : memref<16x36x32xf32, #tpu.memory_space<vmem>>, vector<1x36x32xf32>
    %149 = vector.shape_cast %148 : vector<1x36x32xf32> to vector<36x32xf32>
    %cst_156 = arith.constant dense<0.000000e+00> : vector<1x32xf32>
    %150 = tpu.matmul %147, %149, %cst_156 {dimension_numbers = #tpu.dot_dimension_numbers<[1], [0], [0], [1], [0, 0, 1, 1], [], []>} : vector<1x36xf32>, vector<36x32xf32>, vector<1x32xf32> -> vector<1x32xf32>
    %151 = arith.addf %146, %150 : vector<1x32xf32>
    %152 = vector.extract_strided_slice %135 {offsets = [3, 0], sizes = [1, 36], strides = [1, 1]} : vector<16x36xf32> to vector<1x36xf32>
    %c3_157 = arith.constant 3 : index
    %c0_158 = arith.constant 0 : index
    %c0_159 = arith.constant 0 : index
    %153 = vector.load %arg8[%c3_157, %c0_158, %c0_159] : memref<16x36x32xf32, #tpu.memory_space<vmem>>, vector<1x36x32xf32>
    %154 = vector.shape_cast %153 : vector<1x36x32xf32> to vector<36x32xf32>
    %cst_160 = arith.constant dense<0.000000e+00> : vector<1x32xf32>
    %155 = tpu.matmul %152, %154, %cst_160 {dimension_numbers = #tpu.dot_dimension_numbers<[1], [0], [0], [1], [0, 0, 1, 1], [], []>} : vector<1x36xf32>, vector<36x32xf32>, vector<1x32xf32> -> vector<1x32xf32>
    %156 = arith.addf %151, %155 : vector<1x32xf32>
    %157 = vector.extract_strided_slice %135 {offsets = [4, 0], sizes = [1, 36], strides = [1, 1]} : vector<16x36xf32> to vector<1x36xf32>
    %c4_161 = arith.constant 4 : index
    %c0_162 = arith.constant 0 : index
    %c0_163 = arith.constant 0 : index
    %158 = vector.load %arg8[%c4_161, %c0_162, %c0_163] : memref<16x36x32xf32, #tpu.memory_space<vmem>>, vector<1x36x32xf32>
    %159 = vector.shape_cast %158 : vector<1x36x32xf32> to vector<36x32xf32>
    %cst_164 = arith.constant dense<0.000000e+00> : vector<1x32xf32>
    %160 = tpu.matmul %157, %159, %cst_164 {dimension_numbers = #tpu.dot_dimension_numbers<[1], [0], [0], [1], [0, 0, 1, 1], [], []>} : vector<1x36xf32>, vector<36x32xf32>, vector<1x32xf32> -> vector<1x32xf32>
    %161 = arith.addf %156, %160 : vector<1x32xf32>
    %162 = vector.extract_strided_slice %135 {offsets = [5, 0], sizes = [1, 36], strides = [1, 1]} : vector<16x36xf32> to vector<1x36xf32>
    %c5_165 = arith.constant 5 : index
    %c0_166 = arith.constant 0 : index
    %c0_167 = arith.constant 0 : index
    %163 = vector.load %arg8[%c5_165, %c0_166, %c0_167] : memref<16x36x32xf32, #tpu.memory_space<vmem>>, vector<1x36x32xf32>
    %164 = vector.shape_cast %163 : vector<1x36x32xf32> to vector<36x32xf32>
    %cst_168 = arith.constant dense<0.000000e+00> : vector<1x32xf32>
    %165 = tpu.matmul %162, %164, %cst_168 {dimension_numbers = #tpu.dot_dimension_numbers<[1], [0], [0], [1], [0, 0, 1, 1], [], []>} : vector<1x36xf32>, vector<36x32xf32>, vector<1x32xf32> -> vector<1x32xf32>
    %166 = arith.addf %161, %165 : vector<1x32xf32>
    %167 = vector.extract_strided_slice %135 {offsets = [6, 0], sizes = [1, 36], strides = [1, 1]} : vector<16x36xf32> to vector<1x36xf32>
    %c6_169 = arith.constant 6 : index
    %c0_170 = arith.constant 0 : index
    %c0_171 = arith.constant 0 : index
    %168 = vector.load %arg8[%c6_169, %c0_170, %c0_171] : memref<16x36x32xf32, #tpu.memory_space<vmem>>, vector<1x36x32xf32>
    %169 = vector.shape_cast %168 : vector<1x36x32xf32> to vector<36x32xf32>
    %cst_172 = arith.constant dense<0.000000e+00> : vector<1x32xf32>
    %170 = tpu.matmul %167, %169, %cst_172 {dimension_numbers = #tpu.dot_dimension_numbers<[1], [0], [0], [1], [0, 0, 1, 1], [], []>} : vector<1x36xf32>, vector<36x32xf32>, vector<1x32xf32> -> vector<1x32xf32>
    %171 = arith.addf %166, %170 : vector<1x32xf32>
    %172 = vector.extract_strided_slice %135 {offsets = [7, 0], sizes = [1, 36], strides = [1, 1]} : vector<16x36xf32> to vector<1x36xf32>
    %c7_173 = arith.constant 7 : index
    %c0_174 = arith.constant 0 : index
    %c0_175 = arith.constant 0 : index
    %173 = vector.load %arg8[%c7_173, %c0_174, %c0_175] : memref<16x36x32xf32, #tpu.memory_space<vmem>>, vector<1x36x32xf32>
    %174 = vector.shape_cast %173 : vector<1x36x32xf32> to vector<36x32xf32>
    %cst_176 = arith.constant dense<0.000000e+00> : vector<1x32xf32>
    %175 = tpu.matmul %172, %174, %cst_176 {dimension_numbers = #tpu.dot_dimension_numbers<[1], [0], [0], [1], [0, 0, 1, 1], [], []>} : vector<1x36xf32>, vector<36x32xf32>, vector<1x32xf32> -> vector<1x32xf32>
    %176 = arith.addf %171, %175 : vector<1x32xf32>
    %177 = vector.extract_strided_slice %135 {offsets = [8, 0], sizes = [1, 36], strides = [1, 1]} : vector<16x36xf32> to vector<1x36xf32>
    %c8_177 = arith.constant 8 : index
    %c0_178 = arith.constant 0 : index
    %c0_179 = arith.constant 0 : index
    %178 = vector.load %arg8[%c8_177, %c0_178, %c0_179] : memref<16x36x32xf32, #tpu.memory_space<vmem>>, vector<1x36x32xf32>
    %179 = vector.shape_cast %178 : vector<1x36x32xf32> to vector<36x32xf32>
    %cst_180 = arith.constant dense<0.000000e+00> : vector<1x32xf32>
    %180 = tpu.matmul %177, %179, %cst_180 {dimension_numbers = #tpu.dot_dimension_numbers<[1], [0], [0], [1], [0, 0, 1, 1], [], []>} : vector<1x36xf32>, vector<36x32xf32>, vector<1x32xf32> -> vector<1x32xf32>
    %181 = arith.addf %176, %180 : vector<1x32xf32>
    %182 = vector.extract_strided_slice %135 {offsets = [9, 0], sizes = [1, 36], strides = [1, 1]} : vector<16x36xf32> to vector<1x36xf32>
    %c9 = arith.constant 9 : index
    %c0_181 = arith.constant 0 : index
    %c0_182 = arith.constant 0 : index
    %183 = vector.load %arg8[%c9, %c0_181, %c0_182] : memref<16x36x32xf32, #tpu.memory_space<vmem>>, vector<1x36x32xf32>
    %184 = vector.shape_cast %183 : vector<1x36x32xf32> to vector<36x32xf32>
    %cst_183 = arith.constant dense<0.000000e+00> : vector<1x32xf32>
    %185 = tpu.matmul %182, %184, %cst_183 {dimension_numbers = #tpu.dot_dimension_numbers<[1], [0], [0], [1], [0, 0, 1, 1], [], []>} : vector<1x36xf32>, vector<36x32xf32>, vector<1x32xf32> -> vector<1x32xf32>
    %186 = arith.addf %181, %185 : vector<1x32xf32>
    %187 = vector.extract_strided_slice %135 {offsets = [10, 0], sizes = [1, 36], strides = [1, 1]} : vector<16x36xf32> to vector<1x36xf32>
    %c10 = arith.constant 10 : index
    %c0_184 = arith.constant 0 : index
    %c0_185 = arith.constant 0 : index
    %188 = vector.load %arg8[%c10, %c0_184, %c0_185] : memref<16x36x32xf32, #tpu.memory_space<vmem>>, vector<1x36x32xf32>
    %189 = vector.shape_cast %188 : vector<1x36x32xf32> to vector<36x32xf32>
    %cst_186 = arith.constant dense<0.000000e+00> : vector<1x32xf32>
    %190 = tpu.matmul %187, %189, %cst_186 {dimension_numbers = #tpu.dot_dimension_numbers<[1], [0], [0], [1], [0, 0, 1, 1], [], []>} : vector<1x36xf32>, vector<36x32xf32>, vector<1x32xf32> -> vector<1x32xf32>
    %191 = arith.addf %186, %190 : vector<1x32xf32>
    %192 = vector.extract_strided_slice %135 {offsets = [11, 0], sizes = [1, 36], strides = [1, 1]} : vector<16x36xf32> to vector<1x36xf32>
    %c11 = arith.constant 11 : index
    %c0_187 = arith.constant 0 : index
    %c0_188 = arith.constant 0 : index
    %193 = vector.load %arg8[%c11, %c0_187, %c0_188] : memref<16x36x32xf32, #tpu.memory_space<vmem>>, vector<1x36x32xf32>
    %194 = vector.shape_cast %193 : vector<1x36x32xf32> to vector<36x32xf32>
    %cst_189 = arith.constant dense<0.000000e+00> : vector<1x32xf32>
    %195 = tpu.matmul %192, %194, %cst_189 {dimension_numbers = #tpu.dot_dimension_numbers<[1], [0], [0], [1], [0, 0, 1, 1], [], []>} : vector<1x36xf32>, vector<36x32xf32>, vector<1x32xf32> -> vector<1x32xf32>
    %196 = arith.addf %191, %195 : vector<1x32xf32>
    %197 = vector.extract_strided_slice %135 {offsets = [12, 0], sizes = [1, 36], strides = [1, 1]} : vector<16x36xf32> to vector<1x36xf32>
    %c12 = arith.constant 12 : index
    %c0_190 = arith.constant 0 : index
    %c0_191 = arith.constant 0 : index
    %198 = vector.load %arg8[%c12, %c0_190, %c0_191] : memref<16x36x32xf32, #tpu.memory_space<vmem>>, vector<1x36x32xf32>
    %199 = vector.shape_cast %198 : vector<1x36x32xf32> to vector<36x32xf32>
    %cst_192 = arith.constant dense<0.000000e+00> : vector<1x32xf32>
    %200 = tpu.matmul %197, %199, %cst_192 {dimension_numbers = #tpu.dot_dimension_numbers<[1], [0], [0], [1], [0, 0, 1, 1], [], []>} : vector<1x36xf32>, vector<36x32xf32>, vector<1x32xf32> -> vector<1x32xf32>
    %201 = arith.addf %196, %200 : vector<1x32xf32>
    %202 = vector.extract_strided_slice %135 {offsets = [13, 0], sizes = [1, 36], strides = [1, 1]} : vector<16x36xf32> to vector<1x36xf32>
    %c13 = arith.constant 13 : index
    %c0_193 = arith.constant 0 : index
    %c0_194 = arith.constant 0 : index
    %203 = vector.load %arg8[%c13, %c0_193, %c0_194] : memref<16x36x32xf32, #tpu.memory_space<vmem>>, vector<1x36x32xf32>
    %204 = vector.shape_cast %203 : vector<1x36x32xf32> to vector<36x32xf32>
    %cst_195 = arith.constant dense<0.000000e+00> : vector<1x32xf32>
    %205 = tpu.matmul %202, %204, %cst_195 {dimension_numbers = #tpu.dot_dimension_numbers<[1], [0], [0], [1], [0, 0, 1, 1], [], []>} : vector<1x36xf32>, vector<36x32xf32>, vector<1x32xf32> -> vector<1x32xf32>
    %206 = arith.addf %201, %205 : vector<1x32xf32>
    %207 = vector.extract_strided_slice %135 {offsets = [14, 0], sizes = [1, 36], strides = [1, 1]} : vector<16x36xf32> to vector<1x36xf32>
    %c14 = arith.constant 14 : index
    %c0_196 = arith.constant 0 : index
    %c0_197 = arith.constant 0 : index
    %208 = vector.load %arg8[%c14, %c0_196, %c0_197] : memref<16x36x32xf32, #tpu.memory_space<vmem>>, vector<1x36x32xf32>
    %209 = vector.shape_cast %208 : vector<1x36x32xf32> to vector<36x32xf32>
    %cst_198 = arith.constant dense<0.000000e+00> : vector<1x32xf32>
    %210 = tpu.matmul %207, %209, %cst_198 {dimension_numbers = #tpu.dot_dimension_numbers<[1], [0], [0], [1], [0, 0, 1, 1], [], []>} : vector<1x36xf32>, vector<36x32xf32>, vector<1x32xf32> -> vector<1x32xf32>
    %211 = arith.addf %206, %210 : vector<1x32xf32>
    %212 = vector.extract_strided_slice %135 {offsets = [15, 0], sizes = [1, 36], strides = [1, 1]} : vector<16x36xf32> to vector<1x36xf32>
    %c15 = arith.constant 15 : index
    %c0_199 = arith.constant 0 : index
    %c0_200 = arith.constant 0 : index
    %213 = vector.load %arg8[%c15, %c0_199, %c0_200] : memref<16x36x32xf32, #tpu.memory_space<vmem>>, vector<1x36x32xf32>
    %214 = vector.shape_cast %213 : vector<1x36x32xf32> to vector<36x32xf32>
    %cst_201 = arith.constant dense<0.000000e+00> : vector<1x32xf32>
    %215 = tpu.matmul %212, %214, %cst_201 {dimension_numbers = #tpu.dot_dimension_numbers<[1], [0], [0], [1], [0, 0, 1, 1], [], []>} : vector<1x36xf32>, vector<36x32xf32>, vector<1x32xf32> -> vector<1x32xf32>
    %216 = arith.addf %211, %215 : vector<1x32xf32>
    %cst_202 = arith.constant 0.000000e+00 : f32
    %217 = vector.broadcast %cst_202 : f32 to vector<1x32xf32>
    %218 = arith.maximumf %216, %217 : vector<1x32xf32>
    %c0_203 = arith.constant 0 : index
    %c0_204 = arith.constant 0 : index
    %219 = vector.load %arg10[%c0_203, %c0_204] : memref<32x4xf32, #tpu.memory_space<vmem>>, vector<32x4xf32>
    %cst_205 = arith.constant dense<0.000000e+00> : vector<1x4xf32>
    %220 = tpu.matmul %218, %219, %cst_205 {dimension_numbers = #tpu.dot_dimension_numbers<[1], [0], [0], [1], [0, 0, 1, 1], [], []>} : vector<1x32xf32>, vector<32x4xf32>, vector<1x4xf32> -> vector<1x4xf32>
    %c0_206 = arith.constant 0 : index
    %c0_207 = arith.constant 0 : index
    %221 = vector.load %arg11[%c0_206, %c0_207] : memref<1x4xf32, #tpu.memory_space<vmem>>, vector<1x4xf32>
    %222 = arith.addf %220, %221 : vector<1x4xf32>
    %c0_208 = arith.constant 0 : index
    %c0_209 = arith.constant 0 : index
    %c0_210 = arith.constant 0 : index
    %223 = vector.load %arg12[%c0_208, %c0_209, %c0_210] : memref<1x1x4xf32, #tpu.memory_space<vmem>>, vector<1x1x4xf32>
    %224 = vector.shape_cast %223 : vector<1x1x4xf32> to vector<1x4xf32>
    %225 = vector.shape_cast %222 : vector<1x4xf32> to vector<1x1x4xf32>
    tpu.vector_store %arg12[%c0_208, %c0_209, %c0_210], %225 {strides = array<i32>} : memref<1x1x4xf32, #tpu.memory_space<vmem>>, vector<1x1x4xf32>,
    return
  }
  func.func @transform_0(%arg0: i32) -> (i32, i32, i32) {
    %c0_i32 = arith.constant 0 : i32
    %c0_i32_0 = arith.constant 0 : i32
    %c0_i32_1 = arith.constant 0 : i32
    return %arg0, %c0_i32, %c0_i32_0 : i32, i32, i32
  }
  func.func @transform_1(%arg0: i32) -> (i32, i32, i32) {
    %c0_i32 = arith.constant 0 : i32
    %c0_i32_0 = arith.constant 0 : i32
    %c0_i32_1 = arith.constant 0 : i32
    %c0_i32_2 = arith.constant 0 : i32
    return %c0_i32, %c0_i32_0, %c0_i32_1 : i32, i32, i32
  }
  func.func @transform_2(%arg0: i32) -> (i32, i32) {
    %c0_i32 = arith.constant 0 : i32
    %c0_i32_0 = arith.constant 0 : i32
    %c0_i32_1 = arith.constant 0 : i32
    return %c0_i32, %c0_i32_0 : i32, i32
  }
  func.func @transform_3(%arg0: i32) -> (i32, i32, i32) {
    %c0_i32 = arith.constant 0 : i32
    %c0_i32_0 = arith.constant 0 : i32
    %c0_i32_1 = arith.constant 0 : i32
    %c0_i32_2 = arith.constant 0 : i32
    return %c0_i32, %c0_i32_0, %c0_i32_1 : i32, i32, i32
  }
  func.func @transform_4(%arg0: i32) -> (i32, i32, i32) {
    %c0_i32 = arith.constant 0 : i32
    %c0_i32_0 = arith.constant 0 : i32
    %c0_i32_1 = arith.constant 0 : i32
    %c0_i32_2 = arith.constant 0 : i32
    return %c0_i32, %c0_i32_0, %c0_i32_1 : i32, i32, i32
  }
  func.func @transform_5(%arg0: i32) -> (i32, i32) {
    %c0_i32 = arith.constant 0 : i32
    %c0_i32_0 = arith.constant 0 : i32
    %c0_i32_1 = arith.constant 0 : i32
    return %c0_i32, %c0_i32_0 : i32, i32
  }
  func.func @transform_6(%arg0: i32) -> (i32, i32, i32) {
    %c0_i32 = arith.constant 0 : i32
    %c0_i32_0 = arith.constant 0 : i32
    %c0_i32_1 = arith.constant 0 : i32
    %c0_i32_2 = arith.constant 0 : i32
    return %c0_i32, %c0_i32_0, %c0_i32_1 : i32, i32, i32
  }
  func.func @transform_7(%arg0: i32) -> (i32, i32, i32) {
    %c0_i32 = arith.constant 0 : i32
    %c0_i32_0 = arith.constant 0 : i32
    %c0_i32_1 = arith.constant 0 : i32
    %c0_i32_2 = arith.constant 0 : i32
    return %c0_i32, %c0_i32_0, %c0_i32_1 : i32, i32, i32
  }
  func.func @transform_8(%arg0: i32) -> (i32, i32) {
    %c0_i32 = arith.constant 0 : i32
    %c0_i32_0 = arith.constant 0 : i32
    %c0_i32_1 = arith.constant 0 : i32
    return %c0_i32, %c0_i32_0 : i32, i32
  }
  func.func @transform_9(%arg0: i32) -> (i32, i32) {
    %c0_i32 = arith.constant 0 : i32
    %c0_i32_0 = arith.constant 0 : i32
    %c0_i32_1 = arith.constant 0 : i32
    return %c0_i32, %c0_i32_0 : i32, i32
  }
  func.func @transform_10(%arg0: i32) -> (i32, i32) {
    %c0_i32 = arith.constant 0 : i32
    %c0_i32_0 = arith.constant 0 : i32
    %c0_i32_1 = arith.constant 0 : i32
    return %c0_i32, %c0_i32_0 : i32, i32
  }
  func.func @transform_11(%arg0: i32) -> (i32, i32, i32) {
    %c0_i32 = arith.constant 0 : i32
    %c0_i32_0 = arith.constant 0 : i32
    %c0_i32_1 = arith.constant 0 : i32
    return %arg0, %c0_i32, %c0_i32_0 : i32, i32, i32
  }
}

</mosaic_0001>

<llo_original>
// kernel: forward.1
$region0: #{forward.1}
  #allocation0 [shape = 'u32[]', space=smem, size = 0x4, offset = 0x4, fixed_abs, tag = 'smem constant byte address 0x4 - core index']
  #allocation1 [shape = 'u32[72,128]{1,0:T(1,128)}', space=vmem, size = 0x9000, scoped, tag = 'internal scratch']
  %s0 = inlined_call_operand.vmem [shape: f32[2,4,256], index: 0, kind: input, shape index: {}]
  %s1 = inlined_call_operand.hbm [shape: f32[9,8,4], index: 1, kind: input, shape index: {}]
  %s2 = inlined_call_operand.hbm [shape: f32[8,1], index: 2, kind: input, shape index: {}]
  %s3 = inlined_call_operand.hbm [shape: f32[9,256,196], index: 3, kind: input, shape index: {}]
  %s4 = inlined_call_operand.hbm [shape: f32[9,16,8], index: 4, kind: input, shape index: {}]
  %s5 = inlined_call_operand.hbm [shape: f32[16,1], index: 5, kind: input, shape index: {}]
  %s6 = inlined_call_operand.hbm [shape: f32[9,196,36], index: 6, kind: input, shape index: {}]
  %s7 = inlined_call_operand.hbm [shape: f32[16,36,32], index: 7, kind: input, shape index: {}]
  %s8 = inlined_call_operand.hbm [shape: f32[1,32], index: 8, kind: input, shape index: {}]
  %s9 = inlined_call_operand.hbm [shape: f32[32,4], index: 9, kind: input, shape index: {}]
  %s10 = inlined_call_operand.hbm [shape: f32[1,4], index: 10, kind: input, shape index: {}]
  %s11 = inlined_call_operand.hbm [shape: f32[2,1,4], index: 11, kind: output, shape index: {}]
  %s12 = sld [smem:[#allocation0]]
  $region117: #{forward.1} parent=0
    _
  %s14 = ssub.s32 1, %s12
  %s15 = scalar_select 0, %s14, %s12
  $region1: #{forward.1} parent=0
    #allocation2 [shape = 'u8[36864]{0}', space=vmem, size = 0x9000, scoped, tag = 'input window, operand 1, single buffered']
    #allocation3 [shape = 's32[2]{0}', space=sflag, size = 0x8, scoped, tag = 'scoped memory for forward.1']
    #allocation4 [shape = 's32[2]{0}', space=sflag, size = 0x8, scoped, tag = 'scoped memory for forward.1']
    #allocation5 [shape = 'u8[4096]{0}', space=vmem, size = 0x1000, scoped, tag = 'input window, operand 2, single buffered']
    #allocation6 [shape = 's32[1]{0}', space=sflag, size = 0x4, scoped, tag = 'scoped memory for forward.1']
    #allocation7 [shape = 'u8[2359296]{0}', space=vmem, size = 0x240000, scoped, tag = 'input window, operand 3, single buffered']
    #allocation8 [shape = 'u8[73728]{0}', space=vmem, size = 0x12000, scoped, tag = 'input window, operand 4, single buffered']
    #allocation9 [shape = 's32[1]{0}', space=sflag, size = 0x4, scoped, tag = 'scoped memory for forward.1']
    #allocation10 [shape = 'u8[8192]{0}', space=vmem, size = 0x2000, scoped, tag = 'input window, operand 5, single buffered']
    #allocation11 [shape = 'u8[921600]{0}', space=vmem, size = 0xe1000, scoped, tag = 'input window, operand 6, single buffered']
    #allocation12 [shape = 's32[1]{0}', space=sflag, size = 0x4, scoped, tag = 'scoped memory for forward.1']
    #allocation13 [shape = 'u8[327680]{0}', space=vmem, size = 0x50000, scoped, tag = 'input window, operand 7, single buffered']
    #allocation14 [shape = 'u8[512]{0}', space=vmem, size = 0x400, scoped, tag = 'input window, operand 8, single buffered']
    #allocation15 [shape = 's32[1]{0}', space=sflag, size = 0x4, scoped, tag = 'scoped memory for forward.1']
    #allocation16 [shape = 'u8[16384]{0}', space=vmem, size = 0x4000, scoped, tag = 'input window, operand 9, single buffered']
    #allocation17 [shape = 'u8[512]{0}', space=vmem, size = 0x400, scoped, tag = 'input window, operand 10, single buffered']
    #allocation18 [shape = 's32[1]{0}', space=sflag, size = 0x4, scoped, tag = 'scoped memory for forward.1']
    #allocation19 [shape = 'u8[1024]{0}', space=vmem, size = 0x400, scoped, tag = 'output window, operand 0']
    %16 = vsyncpa [#allocation3], 0
    %17 = vsyncpa [#allocation6], 0
    %18 = vsyncpa [#allocation9], 0
    %19 = vsyncpa [#allocation12], 0
    %20 = vsyncpa [#allocation15], 0
    %21 = vsyncpa [#allocation18], 0
    %22 = vsyncpa [#allocation4], 0
    %s23 = scalar_lea.sflag [#allocation4], 1
    %24 = vsyncpa %s23, 0
    loop: start=0, step=1, limit=4
    $region2: #{forward.1} parent=1 // loop_pre_header
      _
    $region3: #{forward.1} parent=1 // loop_header
      %s26 = sphi 0, %s30
      %p27 = scmp.ge.s32.totalorder %s26, 4
      %s36 = sphi 0, %s38
      %s39 = sphi 0, %s36
      %s40 = sphi 0, %s39
      %s56 = sphi 0, %s40
      %s60 = sphi 0, %s60
      %s62 = sphi 0, %s60
      %s63 = sphi 0, %s62
      %s77 = sphi 0, %s63
      %s81 = sphi 0, %s81
      %s83 = sphi 0, %s81
      %s84 = sphi 0, %s83
      %s98 = sphi 0, %s84
      %s102 = sphi 0, %s102
      %s104 = sphi 0, %s102
      %s105 = sphi 0, %s104
      %s119 = sphi 0, %s105
      %s123 = sphi 0, %s123
      %s125 = sphi 0, %s123
      %s126 = sphi 0, %s125
      %s140 = sphi 0, %s126
      %s144 = sphi 0, %s144
      %s146 = sphi 0, %s144
      %s147 = sphi 0, %s146
      %s161 = sphi 0, %s147
      %s165 = sphi 0, %s165
      %s167 = sphi 0, %s165
      %s168 = sphi 0, %s167
      %s182 = sphi 0, %s168
      %s186 = sphi 0, %s186
      %s188 = sphi 0, %s186
      %s189 = sphi 0, %s188
      %s203 = sphi 0, %s189
      %s207 = sphi 0, %s207
      %s209 = sphi 0, %s207
      %s210 = sphi 0, %s209
      %s224 = sphi 0, %s210
      %s228 = sphi 0, %s228
      %s230 = sphi 0, %s228
      %s231 = sphi 0, %s230
      %s245 = sphi 0, %s231
      %s249 = sphi 0, %s249
      %s251 = sphi 0, %s249
      %s252 = sphi 0, %s251
      %s266 = sphi 0, %s252
      %s272 = sphi 0, %s274
      %s275 = sphi 0, %s272
      %s276 = sphi 0, %s275
      %s292 = sphi 0, %s276
    $region4: #{forward.1} parent=1 // loop_header_branch
      %29 = sbr.rel (%p27) target = $region8
    $region5: #{forward.1} parent=1 // loop_body
      %s31 = ssub.s32 %s26, 1
      %s32 = ssub.s32 %s26, 2
      %s33 = sadd.s32 %s26, 1
      %s34 = ssub.s32 %s26, %s33
      %p35 = scmp.eq.s32.totalorder %s34, 0
      %s37 = sadd.s32 %s36, 1
      %s38 = scalar_select %p35, %s36, %s37
      %p41 = pneg %p35
      %p42 = scmp.eq.s32.totalorder %s26, 1
      %p43 = por %p41, %p42
      %p44 = scmp.ne.s32.totalorder %s36, %s39
      %p45 = scmp.eq.s32.totalorder %s26, 0
      %p46 = por %p44, %p45
      %p47 = scmp.ne.s32.totalorder %s36, %s39
      %p48 = scmp.eq.s32.totalorder %s31, 1
      %p49 = por %p47, %p48
      %p50 = scmp.ne.s32.totalorder %s39, %s40
      %p51 = scmp.eq.s32.totalorder %s31, 0
      %p52 = por %p50, %p51
      %p53 = scmp.ne.s32.totalorder %s39, %s40
      %p54 = scmp.eq.s32.totalorder %s32, 1
      %p55 = por %p53, %p54
      %p57 = scmp.ne.s32.totalorder %s40, %s56
      %p58 = scmp.eq.s32.totalorder %s32, 0
      %p59 = por %p57, %p58
      %s61 = sadd.s32 %s60, 1
      %p64 = scmp.eq.s32.totalorder %s26, 1
      %p65 = scmp.ne.s32.totalorder %s60, %s62
      %p66 = scmp.eq.s32.totalorder %s26, 0
      %p67 = por %p65, %p66
      %p68 = scmp.ne.s32.totalorder %s60, %s62
      %p69 = scmp.eq.s32.totalorder %s31, 1
      %p70 = por %p68, %p69
      %p71 = scmp.ne.s32.totalorder %s62, %s63
      %p72 = scmp.eq.s32.totalorder %s31, 0
      %p73 = por %p71, %p72
      %p74 = scmp.ne.s32.totalorder %s62, %s63
      %p75 = scmp.eq.s32.totalorder %s32, 1
      %p76 = por %p74, %p75
      %p78 = scmp.ne.s32.totalorder %s63, %s77
      %p79 = scmp.eq.s32.totalorder %s32, 0
      %p80 = por %p78, %p79
      %s82 = sadd.s32 %s81, 1
      %p85 = scmp.eq.s32.totalorder %s26, 1
      %p86 = scmp.ne.s32.totalorder %s81, %s83
      %p87 = scmp.eq.s32.totalorder %s26, 0
      %p88 = por %p86, %p87
      %p89 = scmp.ne.s32.totalorder %s81, %s83
      %p90 = scmp.eq.s32.totalorder %s31, 1
      %p91 = por %p89, %p90
      %p92 = scmp.ne.s32.totalorder %s83, %s84
      %p93 = scmp.eq.s32.totalorder %s31, 0
      %p94 = por %p92, %p93
      %p95 = scmp.ne.s32.totalorder %s83, %s84
      %p96 = scmp.eq.s32.totalorder %s32, 1
      %p97 = por %p95, %p96
      %p99 = scmp.ne.s32.totalorder %s84, %s98
      %p100 = scmp.eq.s32.totalorder %s32, 0
      %p101 = por %p99, %p100
      %s103 = sadd.s32 %s102, 1
      %p106 = scmp.eq.s32.totalorder %s26, 1
      %p107 = scmp.ne.s32.totalorder %s102, %s104
      %p108 = scmp.eq.s32.totalorder %s26, 0
      %p109 = por %p107, %p108
      %p110 = scmp.ne.s32.totalorder %s102, %s104
      %p111 = scmp.eq.s32.totalorder %s31, 1
      %p112 = por %p110, %p111
      %p113 = scmp.ne.s32.totalorder %s104, %s105
      %p114 = scmp.eq.s32.totalorder %s31, 0
      %p115 = por %p113, %p114
      %p116 = scmp.ne.s32.totalorder %s104, %s105
      %p117 = scmp.eq.s32.totalorder %s32, 1
      %p118 = por %p116, %p117
      %p120 = scmp.ne.s32.totalorder %s105, %s119
      %p121 = scmp.eq.s32.totalorder %s32, 0
      %p122 = por %p120, %p121
      %s124 = sadd.s32 %s123, 1
      %p127 = scmp.eq.s32.totalorder %s26, 1
      %p128 = scmp.ne.s32.totalorder %s123, %s125
      %p129 = scmp.eq.s32.totalorder %s26, 0
      %p130 = por %p128, %p129
      %p131 = scmp.ne.s32.totalorder %s123, %s125
      %p132 = scmp.eq.s32.totalorder %s31, 1
      %p133 = por %p131, %p132
      %p134 = scmp.ne.s32.totalorder %s125, %s126
      %p135 = scmp.eq.s32.totalorder %s31, 0
      %p136 = por %p134, %p135
      %p137 = scmp.ne.s32.totalorder %s125, %s126
      %p138 = scmp.eq.s32.totalorder %s32, 1
      %p139 = por %p137, %p138
      %p141 = scmp.ne.s32.totalorder %s126, %s140
      %p142 = scmp.eq.s32.totalorder %s32, 0
      %p143 = por %p141, %p142
      %s145 = sadd.s32 %s144, 1
      %p148 = scmp.eq.s32.totalorder %s26, 1
      %p149 = scmp.ne.s32.totalorder %s144, %s146
      %p150 = scmp.eq.s32.totalorder %s26, 0
      %p151 = por %p149, %p150
      %p152 = scmp.ne.s32.totalorder %s144, %s146
      %p153 = scmp.eq.s32.totalorder %s31, 1
      %p154 = por %p152, %p153
      %p155 = scmp.ne.s32.totalorder %s146, %s147
      %p156 = scmp.eq.s32.totalorder %s31, 0
      %p157 = por %p155, %p156
      %p158 = scmp.ne.s32.totalorder %s146, %s147
      %p159 = scmp.eq.s32.totalorder %s32, 1
      %p160 = por %p158, %p159
      %p162 = scmp.ne.s32.totalorder %s147, %s161
      %p163 = scmp.eq.s32.totalorder %s32, 0
      %p164 = por %p162, %p163
      %s166 = sadd.s32 %s165, 1
      %p169 = scmp.eq.s32.totalorder %s26, 1
      %p170 = scmp.ne.s32.totalorder %s165, %s167
      %p171 = scmp.eq.s32.totalorder %s26, 0
      %p172 = por %p170, %p171
      %p173 = scmp.ne.s32.totalorder %s165, %s167
      %p174 = scmp.eq.s32.totalorder %s31, 1
      %p175 = por %p173, %p174
      %p176 = scmp.ne.s32.totalorder %s167, %s168
      %p177 = scmp.eq.s32.totalorder %s31, 0
      %p178 = por %p176, %p177
      %p179 = scmp.ne.s32.totalorder %s167, %s168
      %p180 = scmp.eq.s32.totalorder %s32, 1
      %p181 = por %p179, %p180
      %p183 = scmp.ne.s32.totalorder %s168, %s182
      %p184 = scmp.eq.s32.totalorder %s32, 0
      %p185 = por %p183, %p184
      %s187 = sadd.s32 %s186, 1
      %p190 = scmp.eq.s32.totalorder %s26, 1
      %p191 = scmp.ne.s32.totalorder %s186, %s188
      %p192 = scmp.eq.s32.totalorder %s26, 0
      %p193 = por %p191, %p192
      %p194 = scmp.ne.s32.totalorder %s186, %s188
      %p195 = scmp.eq.s32.totalorder %s31, 1
      %p196 = por %p194, %p195
      %p197 = scmp.ne.s32.totalorder %s188, %s189
      %p198 = scmp.eq.s32.totalorder %s31, 0
      %p199 = por %p197, %p198
      %p200 = scmp.ne.s32.totalorder %s188, %s189
      %p201 = scmp.eq.s32.totalorder %s32, 1
      %p202 = por %p200, %p201
      %p204 = scmp.ne.s32.totalorder %s189, %s203
      %p205 = scmp.eq.s32.totalorder %s32, 0
      %p206 = por %p204, %p205
      %s208 = sadd.s32 %s207, 1
      %p211 = scmp.eq.s32.totalorder %s26, 1
      %p212 = scmp.ne.s32.totalorder %s207, %s209
      %p213 = scmp.eq.s32.totalorder %s26, 0
      %p214 = por %p212, %p213
      %p215 = scmp.ne.s32.totalorder %s207, %s209
      %p216 = scmp.eq.s32.totalorder %s31, 1
      %p217 = por %p215, %p216
      %p218 = scmp.ne.s32.totalorder %s209, %s210
      %p219 = scmp.eq.s32.totalorder %s31, 0
      %p220 = por %p218, %p219
      %p221 = scmp.ne.s32.totalorder %s209, %s210
      %p222 = scmp.eq.s32.totalorder %s32, 1
      %p223 = por %p221, %p222
      %p225 = scmp.ne.s32.totalorder %s210, %s224
      %p226 = scmp.eq.s32.totalorder %s32, 0
      %p227 = por %p225, %p226
      %s229 = sadd.s32 %s228, 1
      %p232 = scmp.eq.s32.totalorder %s26, 1
      %p233 = scmp.ne.s32.totalorder %s228, %s230
      %p234 = scmp.eq.s32.totalorder %s26, 0
      %p235 = por %p233, %p234
      %p236 = scmp.ne.s32.totalorder %s228, %s230
      %p237 = scmp.eq.s32.totalorder %s31, 1
      %p238 = por %p236, %p237
      %p239 = scmp.ne.s32.totalorder %s230, %s231
      %p240 = scmp.eq.s32.totalorder %s31, 0
      %p241 = por %p239, %p240
      %p242 = scmp.ne.s32.totalorder %s230, %s231
      %p243 = scmp.eq.s32.totalorder %s32, 1
      %p244 = por %p242, %p243
      %p246 = scmp.ne.s32.totalorder %s231, %s245
      %p247 = scmp.eq.s32.totalorder %s32, 0
      %p248 = por %p246, %p247
      %s250 = sadd.s32 %s249, 1
      %p253 = scmp.eq.s32.totalorder %s26, 1
      %p254 = scmp.ne.s32.totalorder %s249, %s251
      %p255 = scmp.eq.s32.totalorder %s26, 0
      %p256 = por %p254, %p255
      %p257 = scmp.ne.s32.totalorder %s249, %s251
      %p258 = scmp.eq.s32.totalorder %s31, 1
      %p259 = por %p257, %p258
      %p260 = scmp.ne.s32.totalorder %s251, %s252
      %p261 = scmp.eq.s32.totalorder %s31, 0
      %p262 = por %p260, %p261
      %p263 = scmp.ne.s32.totalorder %s251, %s252
      %p264 = scmp.eq.s32.totalorder %s32, 1
      %p265 = por %p263, %p264
      %p267 = scmp.ne.s32.totalorder %s252, %s266
      %p268 = scmp.eq.s32.totalorder %s32, 0
      %p269 = por %p267, %p268
      %s270 = ssub.s32 %s26, %s33
      %p271 = scmp.eq.s32.totalorder %s270, 0
      %s273 = sadd.s32 %s272, 1
      %s274 = scalar_select %p271, %s272, %s273
      %p277 = pneg %p271
      %p278 = scmp.eq.s32.totalorder %s26, 1
      %p279 = por %p277, %p278
      %p280 = scmp.ne.s32.totalorder %s272, %s275
      %p281 = scmp.eq.s32.totalorder %s26, 0
      %p282 = por %p280, %p281
      %p283 = scmp.ne.s32.totalorder %s272, %s275
      %p284 = scmp.eq.s32.totalorder %s31, 1
      %p285 = por %p283, %p284
      %p286 = scmp.ne.s32.totalorder %s275, %s276
      %p287 = scmp.eq.s32.totalorder %s31, 0
      %p288 = por %p286, %p287
      %p289 = scmp.ne.s32.totalorder %s275, %s276
      %p290 = scmp.eq.s32.totalorder %s32, 1
      %p291 = por %p289, %p290
      %p293 = scmp.ne.s32.totalorder %s276, %s292
      %p294 = scmp.eq.s32.totalorder %s32, 0
      %p295 = por %p293, %p294
      %p296 = scmp.le.s32.totalorder 1, %s26
      %p297 = scmp.lt.s32.totalorder %s26, 3
      %p298 = pnand %p296, %p297
      %p299 = pneg %p298
      // Predicated region
      $region9: #{forward.1} parent=5 // pred_check
        _
      $region10: #{forward.1} parent=5 // pred_check_branch
        %301 = sbr.rel (%p298) target = $region12
      $region11: #{forward.1} parent=5 // pred_region
        %s302 = ssub.s32 %s26, 1
        // Predicated region
        $region13: #{forward.1} parent=11 // pred_check
          %p303 = pneg %p73
        $region14: #{forward.1} parent=11 // pred_check_branch
          %305 = sbr.rel (%p303) target = $region16
        $region15: #{forward.1} parent=11 // pred_region
          %307 = vsyncadd [#allocation3], 0
          %s308 = sshll.u32 %s1, 4
          %s309 = int_to_ptr.hbm [resolvable:$true] %s308
          %s310 = sshll.u32 [#allocation2], 4
          %s311 = int_to_ptr.vmem [resolvable:$true] %s310
          %316 = dma.hbm_to_vmem [thread:$0]  %s309, 1152, %s311, [#allocation3], 128, 128, 8
        $region16: #{forward.1} parent=11 // pred_fallthru
          _
        // Predicated region
        $region17: #{forward.1} parent=11 // pred_check
          %p317 = pneg %p94
        $region18: #{forward.1} parent=11 // pred_check_branch
          %319 = sbr.rel (%p317) target = $region20
        $region19: #{forward.1} parent=11 // pred_region
          %321 = vsyncadd [#allocation6], 0
          %s323 = sshll.u32 %s2, 4
          %s324 = int_to_ptr.hbm [resolvable:$true] %s323
          %s325 = sshll.u32 [#allocation5], 4
          %s326 = int_to_ptr.vmem [resolvable:$true] %s325
          %328 = dma.hbm_to_vmem [thread:$0]  %s324, 128, %s326, [#allocation6]
        $region20: #{forward.1} parent=11 // pred_fallthru
          _
        // Predicated region
        $region21: #{forward.1} parent=11 // pred_check
          %p329 = pneg %p115
        $region22: #{forward.1} parent=11 // pred_check_branch
          %331 = sbr.rel (%p329) target = $region24
        $region23: #{forward.1} parent=11 // pred_region
          %333 = vsyncadd [#allocation6], 0
          %s334 = sshll.u32 %s3, 4
          %s335 = int_to_ptr.hbm [resolvable:$true] %s334
          %s336 = sshll.u32 [#allocation7], 4
          %s337 = int_to_ptr.vmem [resolvable:$true] %s336
          %342 = dma.hbm_to_vmem [thread:$0]  %s335, 73728, %s337, [#allocation6], 256, 256, 16
        $region24: #{forward.1} parent=11 // pred_fallthru
          _
        // Predicated region
        $region25: #{forward.1} parent=11 // pred_check
          %p343 = pneg %p136
        $region26: #{forward.1} parent=11 // pred_check_branch
          %345 = sbr.rel (%p343) target = $region28
        $region27: #{forward.1} parent=11 // pred_region
          %347 = vsyncadd [#allocation9], 0
          %s348 = sshll.u32 %s4, 4
          %s349 = int_to_ptr.hbm [resolvable:$true] %s348
          %s350 = sshll.u32 [#allocation8], 4
          %s351 = int_to_ptr.vmem [resolvable:$true] %s350
          %356 = dma.hbm_to_vmem [thread:$0]  %s349, 2304, %s351, [#allocation9], 128, 128, 8
        $region28: #{forward.1} parent=11 // pred_fallthru
          _
        // Predicated region
        $region29: #{forward.1} parent=11 // pred_check
          %p357 = pneg %p157
        $region30: #{forward.1} parent=11 // pred_check_branch
          %359 = sbr.rel (%p357) target = $region32
        $region31: #{forward.1} parent=11 // pred_region
          %361 = vsyncadd [#allocation9], 0
          %s362 = sshll.u32 %s5, 4
          %s363 = int_to_ptr.hbm [resolvable:$true] %s362
          %s364 = sshll.u32 [#allocation10], 4
          %s365 = int_to_ptr.vmem [resolvable:$true] %s364
          %370 = dma.hbm_to_vmem [thread:$0]  %s363, 256, %s365, [#allocation9], 128, 128, 8
        $region32: #{forward.1} parent=11 // pred_fallthru
          _
        // Predicated region
        $region33: #{forward.1} parent=11 // pred_check
          %p371 = pneg %p178
        $region34: #{forward.1} parent=11 // pred_check_branch
          %373 = sbr.rel (%p371) target = $region36
        $region35: #{forward.1} parent=11 // pred_region
          %375 = vsyncadd [#allocation12], 0
          %s376 = sshll.u32 %s6, 4
          %s377 = int_to_ptr.hbm [resolvable:$true] %s376
          %s378 = sshll.u32 [#allocation11], 4
          %s379 = int_to_ptr.vmem [resolvable:$true] %s378
          %384 = dma.hbm_to_vmem [thread:$0]  %s377, 28800, %s379, [#allocation12], 128, 128, 8
        $region36: #{forward.1} parent=11 // pred_fallthru
          _
        // Predicated region
        $region37: #{forward.1} parent=11 // pred_check
          %p385 = pneg %p199
        $region38: #{forward.1} parent=11 // pred_check_branch
          %387 = sbr.rel (%p385) target = $region40
        $region39: #{forward.1} parent=11 // pred_region
          %389 = vsyncadd [#allocation12], 0
          %s390 = sshll.u32 %s7, 4
          %s391 = int_to_ptr.hbm [resolvable:$true] %s390
          %s392 = sshll.u32 [#allocation13], 4
          %s393 = int_to_ptr.vmem [resolvable:$true] %s392
          %398 = dma.hbm_to_vmem [thread:$0]  %s391, 10240, %s393, [#allocation12], 128, 128, 8
        $region40: #{forward.1} parent=11 // pred_fallthru
          _
        // Predicated region
        $region41: #{forward.1} parent=11 // pred_check
          %p399 = pneg %p220
        $region42: #{forward.1} parent=11 // pred_check_branch
          %401 = sbr.rel (%p399) target = $region44
        $region43: #{forward.1} parent=11 // pred_region
          %403 = vsyncadd [#allocation15], 0
          %s405 = sshll.u32 %s8, 4
          %s406 = int_to_ptr.hbm [resolvable:$true] %s405
          %s407 = sshll.u32 [#allocation14], 4
          %s408 = int_to_ptr.vmem [resolvable:$true] %s407
          %410 = dma.hbm_to_vmem [thread:$0]  %s406, 16, %s408, [#allocation15]
        $region44: #{forward.1} parent=11 // pred_fallthru
          _
        // Predicated region
        $region45: #{forward.1} parent=11 // pred_check
          %p411 = pneg %p241
        $region46: #{forward.1} parent=11 // pred_check_branch
          %413 = sbr.rel (%p411) target = $region48
        $region47: #{forward.1} parent=11 // pred_region
          %415 = vsyncadd [#allocation15], 0
          %s416 = sshll.u32 %s9, 4
          %s417 = int_to_ptr.hbm [resolvable:$true] %s416
          %s418 = sshll.u32 [#allocation16], 4
          %s419 = int_to_ptr.vmem [resolvable:$true] %s418
          %424 = dma.hbm_to_vmem [thread:$0]  %s417, 512, %s419, [#allocation15], 128, 128, 8
        $region48: #{forward.1} parent=11 // pred_fallthru
          _
        // Predicated region
        $region49: #{forward.1} parent=11 // pred_check
          %p425 = pneg %p262
        $region50: #{forward.1} parent=11 // pred_check_branch
          %427 = sbr.rel (%p425) target = $region52
        $region51: #{forward.1} parent=11 // pred_region
          %429 = vsyncadd [#allocation18], 0
          %s431 = sshll.u32 %s10, 4
          %s432 = int_to_ptr.hbm [resolvable:$true] %s431
          %s433 = sshll.u32 [#allocation17], 4
          %s434 = int_to_ptr.vmem [resolvable:$true] %s433
          %436 = dma.hbm_to_vmem [thread:$0]  %s432, 16, %s434, [#allocation18]
        $region52: #{forward.1} parent=11 // pred_fallthru
          _
      $region12: #{forward.1} parent=5 // pred_fallthru
        _
      %p437 = scmp.lt.s32.totalorder %s26, 2
      // Predicated region
      $region53: #{forward.1} parent=5 // pred_check
        %p438 = pneg %p437
      $region54: #{forward.1} parent=5 // pred_check_branch
        %440 = sbr.rel (%p438) target = $region56
      $region55: #{forward.1} parent=5 // pred_region
        // Predicated region
        $region57: #{forward.1} parent=55 // pred_check
          %p441 = pneg %p46
        $region58: #{forward.1} parent=55 // pred_check_branch
          %443 = sbr.rel (%p441) target = $region60
        $region59: #{forward.1} parent=55 // pred_region
          %p444 = scmp.lt.s32.totalorder %s26, 1
          %s445 = scalar_select %p444, %s26, 1
          %s446 = smul.addr %s445, 2
          %s447 = smul.addr %s446, 4
          %s448 = scalar_lea.vmem %s0, %s447
        $region60: #{forward.1} parent=55 // pred_fallthru
          _
      $region56: #{forward.1} parent=5 // pred_fallthru
        _
      %p449 = scmp.le.s32.totalorder 1, %s26
      %p450 = scmp.lt.s32.totalorder %s26, 3
      %p451 = pnand %p449, %p450
      %p452 = pneg %p451
      // Predicated region
      $region61: #{forward.1} parent=5 // pred_check
        _
      $region62: #{forward.1} parent=5 // pred_check_branch
        %454 = sbr.rel (%p451) target = $region64
      $region63: #{forward.1} parent=5 // pred_region
        %s455 = ssub.s32 %s26, 1
        // Predicated region
        $region65: #{forward.1} parent=63 // pred_check
          %p456 = pneg %p73
        $region66: #{forward.1} parent=63 // pred_check_branch
          %458 = sbr.rel (%p456) target = $region68
        $region67: #{forward.1} parent=63 // pred_region
          %460 = dma.done [#allocation3], 1152
        $region68: #{forward.1} parent=63 // pred_fallthru
          _
        // Predicated region
        $region69: #{forward.1} parent=63 // pred_check
          %p461 = pneg %p94
        $region70: #{forward.1} parent=63 // pred_check_branch
          %463 = sbr.rel (%p461) target = $region72
        $region71: #{forward.1} parent=63 // pred_region
          %465 = dma.done [#allocation6], 128
        $region72: #{forward.1} parent=63 // pred_fallthru
          _
        // Predicated region
        $region73: #{forward.1} parent=63 // pred_check
          %p466 = pneg %p115
        $region74: #{forward.1} parent=63 // pred_check_branch
          %468 = sbr.rel (%p466) target = $region76
        $region75: #{forward.1} parent=63 // pred_region
          %470 = dma.done [#allocation6], 73728
        $region76: #{forward.1} parent=63 // pred_fallthru
          _
        // Predicated region
        $region77: #{forward.1} parent=63 // pred_check
          %p471 = pneg %p136
        $region78: #{forward.1} parent=63 // pred_check_branch
          %473 = sbr.rel (%p471) target = $region80
        $region79: #{forward.1} parent=63 // pred_region
          %475 = dma.done [#allocation9], 2304
        $region80: #{forward.1} parent=63 // pred_fallthru
          _
        // Predicated region
        $region81: #{forward.1} parent=63 // pred_check
          %p476 = pneg %p157
        $region82: #{forward.1} parent=63 // pred_check_branch
          %478 = sbr.rel (%p476) target = $region84
        $region83: #{forward.1} parent=63 // pred_region
          %480 = dma.done [#allocation9], 256
        $region84: #{forward.1} parent=63 // pred_fallthru
          _
        // Predicated region
        $region85: #{forward.1} parent=63 // pred_check
          %p481 = pneg %p178
        $region86: #{forward.1} parent=63 // pred_check_branch
          %483 = sbr.rel (%p481) target = $region88
        $region87: #{forward.1} parent=63 // pred_region
          %485 = dma.done [#allocation12], 28800
        $region88: #{forward.1} parent=63 // pred_fallthru
          _
        // Predicated region
        $region89: #{forward.1} parent=63 // pred_check
          %p486 = pneg %p199
        $region90: #{forward.1} parent=63 // pred_check_branch
          %488 = sbr.rel (%p486) target = $region92
        $region91: #{forward.1} parent=63 // pred_region
          %490 = dma.done [#allocation12], 10240
        $region92: #{forward.1} parent=63 // pred_fallthru
          _
        // Predicated region
        $region93: #{forward.1} parent=63 // pred_check
          %p491 = pneg %p220
        $region94: #{forward.1} parent=63 // pred_check_branch
          %493 = sbr.rel (%p491) target = $region96
        $region95: #{forward.1} parent=63 // pred_region
          %495 = dma.done [#allocation15], 16
        $region96: #{forward.1} parent=63 // pred_fallthru
          _
        // Predicated region
        $region97: #{forward.1} parent=63 // pred_check
          %p496 = pneg %p241
        $region98: #{forward.1} parent=63 // pred_check_branch
          %498 = sbr.rel (%p496) target = $region100
        $region99: #{forward.1} parent=63 // pred_region
          %500 = dma.done [#allocation15], 512
        $region100: #{forward.1} parent=63 // pred_fallthru
          _
        // Predicated region
        $region101: #{forward.1} parent=63 // pred_check
          %p501 = pneg %p262
        $region102: #{forward.1} parent=63 // pred_check_branch
          %503 = sbr.rel (%p501) target = $region104
        $region103: #{forward.1} parent=63 // pred_region
          %505 = dma.done [#allocation18], 16
        $region104: #{forward.1} parent=63 // pred_fallthru
          _
        %p506 = scmp.lt.s32.totalorder %s31, 1
        %s507 = scalar_select %p506, %s31, 1
        %s508 = smul.addr %s507, 2
        %s509 = smul.addr %s508, 4
        %s510 = scalar_lea.vmem %s0, %s509
        %p511 = pneg %p52
        %p512 = pneg %p49
        %p513 = pneg %p73
        %p514 = pneg %p70
        %p515 = pneg %p94
        %p516 = pneg %p91
        %p517 = pneg %p115
        %p518 = pneg %p112
        %p519 = pneg %p136
        %p520 = pneg %p133
        %p521 = pneg %p157
        %p522 = pneg %p154
        %p523 = pneg %p178
        %p524 = pneg %p175
        %p525 = pneg %p199
        %p526 = pneg %p196
        %p527 = pneg %p220
        %p528 = pneg %p217
        %p529 = pneg %p241
        %p530 = pneg %p238
        %p531 = pneg %p262
        %p532 = pneg %p259
        %p533 = pneg %p288
        %p534 = pneg %p285
        %s535 = sand.u32 %s275, 1
        %s536 = scalar_lea.sflag [#allocation4], %s535
        %s537 = sand.u32 %s275, 1
        %s538 = scalar_lea.vmem [#allocation19], %s537
        %p539 = scmp.lt.s32.totalorder %s31, 1
        %s540 = scalar_select %p539, %s31, 1
        %s541 = smul.addr %s540, 2
        %s542 = smul.addr %s541, 4
        %s543 = scalar_lea.vmem %s0, %s542
        %v544 = vld [vmem:[%s543] sm:$0xff]
        %v545 = vld [vmem:[#allocation7] sm:$0xff]
        %v546 = vld [vmem:[#allocation7 + $0x8] sm:$0xff]
        %v547 = vld [vmem:[#allocation7 + $0x10] sm:$0xff]
        %v548 = vld [vmem:[#allocation7 + $0x18] sm:$0xff]
        %v549 = vld [vmem:[#allocation7 + $0x20] sm:$0xff]
        %v550 = vld [vmem:[#allocation7 + $0x28] sm:$0xff]
        %v551 = vld [vmem:[#allocation7 + $0x30] sm:$0xff]
        %v552 = vld [vmem:[#allocation7 + $0x38] sm:$0xff]
        %v553 = vld [vmem:[#allocation7 + $0x40] sm:$0xff]
        %v554 = vld [vmem:[#allocation7 + $0x48] sm:$0xff]
        %v555 = vld [vmem:[#allocation7 + $0x50] sm:$0xff]
        %v556 = vld [vmem:[#allocation7 + $0x58] sm:$0xff]
        %v557 = vld [vmem:[#allocation7 + $0x60] sm:$0xff]
        %v558 = vld [vmem:[#allocation7 + $0x68] sm:$0xff]
        %v559 = vld [vmem:[#allocation7 + $0x70] sm:$0xff]
        %v560 = vld [vmem:[#allocation7 + $0x78] sm:$0xff]
        %v561 = vld [vmem:[#allocation7 + $0x80] sm:$0xff]
        %v562 = vld [vmem:[#allocation7 + $0x88] sm:$0xff]
        %v563 = vld [vmem:[#allocation7 + $0x90] sm:$0xff]
        %v564 = vld [vmem:[#allocation7 + $0x98] sm:$0xff]
        %v565 = vld [vmem:[#allocation7 + $0xa0] sm:$0xff]
        %v566 = vld [vmem:[#allocation7 + $0xa8] sm:$0xff]
        %v567 = vld [vmem:[#allocation7 + $0xb0] sm:$0xff]
        %v568 = vld [vmem:[#allocation7 + $0xb8] sm:$0xff]
        %v569 = vld [vmem:[#allocation7 + $0xc0] sm:$0xff]
        %v570 = vld [vmem:[#allocation7 + $0xc8] sm:$0xff]
        %v571 = vld [vmem:[#allocation7 + $0xd0] sm:$0xff]
        %v572 = vld [vmem:[#allocation7 + $0xd8] sm:$0xff]
        %v573 = vld [vmem:[#allocation7 + $0xe0] sm:$0xff]
        %v574 = vld [vmem:[#allocation7 + $0xe8] sm:$0xff]
        %v575 = vld [vmem:[#allocation7 + $0xf0] sm:$0xff]
        %v576 = vld [vmem:[#allocation7 + $0xf8] sm:$0xff]
        %v577 = vld [vmem:[#allocation7 + $0x100] sm:$0xff]
        %v578 = vld [vmem:[#allocation7 + $0x108] sm:$0xff]
        %v579 = vld [vmem:[#allocation7 + $0x110] sm:$0xff]
        %v580 = vld [vmem:[#allocation7 + $0x118] sm:$0xff]
        %v581 = vld [vmem:[#allocation7 + $0x120] sm:$0xff]
        %v582 = vld [vmem:[#allocation7 + $0x128] sm:$0xff]
        %v583 = vld [vmem:[#allocation7 + $0x130] sm:$0xff]
        %v584 = vld [vmem:[#allocation7 + $0x138] sm:$0xff]
        %v585 = vld [vmem:[#allocation7 + $0x140] sm:$0xff]
        %v586 = vld [vmem:[#allocation7 + $0x148] sm:$0xff]
        %v587 = vld [vmem:[#allocation7 + $0x150] sm:$0xff]
        %v588 = vld [vmem:[#allocation7 + $0x158] sm:$0xff]
        %v589 = vld [vmem:[#allocation7 + $0x160] sm:$0xff]
        %v590 = vld [vmem:[#allocation7 + $0x168] sm:$0xff]
        %v591 = vld [vmem:[#allocation7 + $0x170] sm:$0xff]
        %v592 = vld [vmem:[#allocation7 + $0x178] sm:$0xff]
        %v593 = vld [vmem:[#allocation7 + $0x180] sm:$0xff]
        %v594 = vld [vmem:[#allocation7 + $0x188] sm:$0xff]
        %v595 = vld [vmem:[#allocation7 + $0x190] sm:$0xff]
        %v596 = vld [vmem:[#allocation7 + $0x198] sm:$0xff]
        %v597 = vld [vmem:[#allocation7 + $0x1a0] sm:$0xff]
        %v598 = vld [vmem:[#allocation7 + $0x1a8] sm:$0xff]
        %v599 = vld [vmem:[#allocation7 + $0x1b0] sm:$0xff]
        %v600 = vld [vmem:[#allocation7 + $0x1b8] sm:$0xff]
        %v601 = vld [vmem:[#allocation7 + $0x1c0] sm:$0xff]
        %v602 = vld [vmem:[#allocation7 + $0x1c8] sm:$0xff]
        %v603 = vld [vmem:[#allocation7 + $0x1d0] sm:$0xff]
        %v604 = vld [vmem:[#allocation7 + $0x1d8] sm:$0xff]
        %v605 = vld [vmem:[#allocation7 + $0x1e0] sm:$0xff]
        %v606 = vld [vmem:[#allocation7 + $0x1e8] sm:$0xff]
        %v607 = vld [vmem:[#allocation7 + $0x1f0] sm:$0xff]
        %v608 = vld [vmem:[#allocation7 + $0x1f8] sm:$0xff]
        %610 = vst [vmem:[#allocation1] ss:$2 sm:$0xff] %v544
        %v611 = vld.sshfl [vmem:[#allocation1] sm:$0xff pattern:$0x75316420]
        %v612 = vld.sshfl [vmem:[#allocation1 + $0x8] sm:$0xff pattern:$0x75316420]
        %615 = vmatpush.msra.mxu0 %v575
        %616 = vmatpush.msra.mxu0 %v573
        %617 = vmatpush.msra.mxu0 %v571
        %618 = vmatpush.msra.mxu0 %v569
        %619 = vmatpush.msra.mxu0 %v567
        %620 = vmatpush.msra.mxu0 %v565
        %621 = vmatpush.msra.mxu0 %v563
        %622 = vmatpush.msra.mxu0 %v561
        %623 = vmatpush.msra.mxu0 %v559
        %624 = vmatpush.msra.mxu0 %v557
        %625 = vmatpush.msra.mxu0 %v555
        %626 = vmatpush.msra.mxu0 %v553
        %627 = vmatpush.msra.mxu0 %v551
        %628 = vmatpush.msra.mxu0 %v549
        %629 = vmatpush.msra.mxu0 %v547
        %630 = vmatpush.msra.mxu0 %v545
        %631 = vmatmul.f32.gmra.mxu0 %v611
        %v632 = vpop.f32.mrf.mxu0
        %v633 = vadd.f32 0.0, %v632
        %634 = vdwg.mxu0
        %635 = vmatpush.msra.mxu0 %v607
        %636 = vmatpush.msra.mxu0 %v605
        %637 = vmatpush.msra.mxu0 %v603
        %638 = vmatpush.msra.mxu0 %v601
        %639 = vmatpush.msra.mxu0 %v599
        %640 = vmatpush.msra.mxu0 %v597
        %641 = vmatpush.msra.mxu0 %v595
        %642 = vmatpush.msra.mxu0 %v593
        %643 = vmatpush.msra.mxu0 %v591
        %644 = vmatpush.msra.mxu0 %v589
        %645 = vmatpush.msra.mxu0 %v587
        %646 = vmatpush.msra.mxu0 %v585
        %647 = vmatpush.msra.mxu0 %v583
        %648 = vmatpush.msra.mxu0 %v581
        %649 = vmatpush.msra.mxu0 %v579
        %650 = vmatpush.msra.mxu0 %v577
        %651 = vmatmul.f32.gmra.mxu0 %v612
        %v652 = vpop.f32.mrf.mxu0
        %v653 = vadd.f32 %v633, %v652
        %654 = vdwg.mxu0
        %655 = vmatpush.msra.mxu0 %v576
        %656 = vmatpush.msra.mxu0 %v574
        %657 = vmatpush.msra.mxu0 %v572
        %658 = vmatpush.msra.mxu0 %v570
        %659 = vmatpush.msra.mxu0 %v568
        %660 = vmatpush.msra.mxu0 %v566
        %661 = vmatpush.msra.mxu0 %v564
        %662 = vmatpush.msra.mxu0 %v562
        %663 = vmatpush.msra.mxu0 %v560
        %664 = vmatpush.msra.mxu0 %v558
        %665 = vmatpush.msra.mxu0 %v556
        %666 = vmatpush.msra.mxu0 %v554
        %667 = vmatpush.msra.mxu0 %v552
        %668 = vmatpush.msra.mxu0 %v550
        %669 = vmatpush.msra.mxu0 %v548
        %670 = vmatpush.msra.mxu0 %v546
        %671 = vmatmul.f32.gmra.mxu0 %v611
        %v672 = vpop.f32.mrf.mxu0
        %v673 = vadd.f32 0.0, %v672
        %674 = vdwg.mxu0
        %675 = vmatpush.msra.mxu0 %v608
        %676 = vmatpush.msra.mxu0 %v606
        %677 = vmatpush.msra.mxu0 %v604
        %678 = vmatpush.msra.mxu0 %v602
        %679 = vmatpush.msra.mxu0 %v600
        %680 = vmatpush.msra.mxu0 %v598
        %681 = vmatpush.msra.mxu0 %v596
        %682 = vmatpush.msra.mxu0 %v594
        %683 = vmatpush.msra.mxu0 %v592
        %684 = vmatpush.msra.mxu0 %v590
        %685 = vmatpush.msra.mxu0 %v588
        %686 = vmatpush.msra.mxu0 %v586
        %687 = vmatpush.msra.mxu0 %v584
        %688 = vmatpush.msra.mxu0 %v582
        %689 = vmatpush.msra.mxu0 %v580
        %690 = vmatpush.msra.mxu0 %v578
        %691 = vmatmul.f32.gmra.mxu0 %v612
        %v692 = vpop.f32.mrf.mxu0
        %v693 = vadd.f32 %v673, %v692
        %694 = vdwg.mxu0
        %v695 = vld [vmem:[#allocation2] sm:$0xff]
        %s696 = scalar_lea.vmem [#allocation7], 512
        %v697 = vld [vmem:[%s696] sm:$0xff]
        %v698 = vld [vmem:[%s696 + $0x8] sm:$0xff]
        %v699 = vld [vmem:[%s696 + $0x10] sm:$0xff]
        %v700 = vld [vmem:[%s696 + $0x18] sm:$0xff]
        %v701 = vld [vmem:[%s696 + $0x20] sm:$0xff]
        %v702 = vld [vmem:[%s696 + $0x28] sm:$0xff]
        %v703 = vld [vmem:[%s696 + $0x30] sm:$0xff]
        %v704 = vld [vmem:[%s696 + $0x38] sm:$0xff]
        %v705 = vld [vmem:[%s696 + $0x40] sm:$0xff]
        %v706 = vld [vmem:[%s696 + $0x48] sm:$0xff]
        %v707 = vld [vmem:[%s696 + $0x50] sm:$0xff]
        %v708 = vld [vmem:[%s696 + $0x58] sm:$0xff]
        %v709 = vld [vmem:[%s696 + $0x60] sm:$0xff]
        %v710 = vld [vmem:[%s696 + $0x68] sm:$0xff]
        %v711 = vld [vmem:[%s696 + $0x70] sm:$0xff]
        %v712 = vld [vmem:[%s696 + $0x78] sm:$0xff]
        %v713 = vld [vmem:[%s696 + $0x80] sm:$0xff]
        %v714 = vld [vmem:[%s696 + $0x88] sm:$0xff]
        %v715 = vld [vmem:[%s696 + $0x90] sm:$0xff]
        %v716 = vld [vmem:[%s696 + $0x98] sm:$0xff]
        %v717 = vld [vmem:[%s696 + $0xa0] sm:$0xff]
        %v718 = vld [vmem:[%s696 + $0xa8] sm:$0xff]
        %v719 = vld [vmem:[%s696 + $0xb0] sm:$0xff]
        %v720 = vld [vmem:[%s696 + $0xb8] sm:$0xff]
        %v721 = vld [vmem:[%s696 + $0xc0] sm:$0xff]
        %v722 = vld [vmem:[%s696 + $0xc8] sm:$0xff]
        %v723 = vld [vmem:[%s696 + $0xd0] sm:$0xff]
        %v724 = vld [vmem:[%s696 + $0xd8] sm:$0xff]
        %v725 = vld [vmem:[%s696 + $0xe0] sm:$0xff]
        %v726 = vld [vmem:[%s696 + $0xe8] sm:$0xff]
        %v727 = vld [vmem:[%s696 + $0xf0] sm:$0xff]
        %v728 = vld [vmem:[%s696 + $0xf8] sm:$0xff]
        %v729 = vld [vmem:[%s696 + $0x100] sm:$0xff]
        %v730 = vld [vmem:[%s696 + $0x108] sm:$0xff]
        %v731 = vld [vmem:[%s696 + $0x110] sm:$0xff]
        %v732 = vld [vmem:[%s696 + $0x118] sm:$0xff]
        %v733 = vld [vmem:[%s696 + $0x120] sm:$0xff]
        %v734 = vld [vmem:[%s696 + $0x128] sm:$0xff]
        %v735 = vld [vmem:[%s696 + $0x130] sm:$0xff]
        %v736 = vld [vmem:[%s696 + $0x138] sm:$0xff]
        %v737 = vld [vmem:[%s696 + $0x140] sm:$0xff]
        %v738 = vld [vmem:[%s696 + $0x148] sm:$0xff]
        %v739 = vld [vmem:[%s696 + $0x150] sm:$0xff]
        %v740 = vld [vmem:[%s696 + $0x158] sm:$0xff]
        %v741 = vld [vmem:[%s696 + $0x160] sm:$0xff]
        %v742 = vld [vmem:[%s696 + $0x168] sm:$0xff]
        %v743 = vld [vmem:[%s696 + $0x170] sm:$0xff]
        %v744 = vld [vmem:[%s696 + $0x178] sm:$0xff]
        %v745 = vld [vmem:[%s696 + $0x180] sm:$0xff]
        %v746 = vld [vmem:[%s696 + $0x188] sm:$0xff]
        %v747 = vld [vmem:[%s696 + $0x190] sm:$0xff]
        %v748 = vld [vmem:[%s696 + $0x198] sm:$0xff]
        %v749 = vld [vmem:[%s696 + $0x1a0] sm:$0xff]
        %v750 = vld [vmem:[%s696 + $0x1a8] sm:$0xff]
        %v751 = vld [vmem:[%s696 + $0x1b0] sm:$0xff]
        %v752 = vld [vmem:[%s696 + $0x1b8] sm:$0xff]
        %v753 = vld [vmem:[%s696 + $0x1c0] sm:$0xff]
        %v754 = vld [vmem:[%s696 + $0x1c8] sm:$0xff]
        %v755 = vld [vmem:[%s696 + $0x1d0] sm:$0xff]
        %v756 = vld [vmem:[%s696 + $0x1d8] sm:$0xff]
        %v757 = vld [vmem:[%s696 + $0x1e0] sm:$0xff]
        %v758 = vld [vmem:[%s696 + $0x1e8] sm:$0xff]
        %v759 = vld [vmem:[%s696 + $0x1f0] sm:$0xff]
        %v760 = vld [vmem:[%s696 + $0x1f8] sm:$0xff]
        %761 = vst [vmem:[#allocation1] ss:$2 sm:$0xff] %v544
        %v762 = vld.sshfl [vmem:[#allocation1] sm:$0xff pattern:$0x75316420]
        %v763 = vld.sshfl [vmem:[#allocation1 + $0x8] sm:$0xff pattern:$0x75316420]
        %766 = vmatpush.msra.mxu0 %v727
        %767 = vmatpush.msra.mxu0 %v725
        %768 = vmatpush.msra.mxu0 %v723
        %769 = vmatpush.msra.mxu0 %v721
        %770 = vmatpush.msra.mxu0 %v719
        %771 = vmatpush.msra.mxu0 %v717
        %772 = vmatpush.msra.mxu0 %v715
        %773 = vmatpush.msra.mxu0 %v713
        %774 = vmatpush.msra.mxu0 %v711
        %775 = vmatpush.msra.mxu0 %v709
        %776 = vmatpush.msra.mxu0 %v707
        %777 = vmatpush.msra.mxu0 %v705
        %778 = vmatpush.msra.mxu0 %v703
        %779 = vmatpush.msra.mxu0 %v701
        %780 = vmatpush.msra.mxu0 %v699
        %781 = vmatpush.msra.mxu0 %v697
        %782 = vmatmul.f32.gmra.mxu0 %v762
        %v783 = vpop.f32.mrf.mxu0
        %v784 = vadd.f32 0.0, %v783
        %785 = vdwg.mxu0
        %786 = vmatpush.msra.mxu0 %v759
        %787 = vmatpush.msra.mxu0 %v757
        %788 = vmatpush.msra.mxu0 %v755
        %789 = vmatpush.msra.mxu0 %v753
        %790 = vmatpush.msra.mxu0 %v751
        %791 = vmatpush.msra.mxu0 %v749
        %792 = vmatpush.msra.mxu0 %v747
        %793 = vmatpush.msra.mxu0 %v745
        %794 = vmatpush.msra.mxu0 %v743
        %795 = vmatpush.msra.mxu0 %v741
        %796 = vmatpush.msra.mxu0 %v739
        %797 = vmatpush.msra.mxu0 %v737
        %798 = vmatpush.msra.mxu0 %v735
        %799 = vmatpush.msra.mxu0 %v733
        %800 = vmatpush.msra.mxu0 %v731
        %801 = vmatpush.msra.mxu0 %v729
        %802 = vmatmul.f32.gmra.mxu0 %v763
        %v803 = vpop.f32.mrf.mxu0
        %v804 = vadd.f32 %v784, %v803
        %805 = vdwg.mxu0
        %806 = vmatpush.msra.mxu0 %v728
        %807 = vmatpush.msra.mxu0 %v726
        %808 = vmatpush.msra.mxu0 %v724
        %809 = vmatpush.msra.mxu0 %v722
        %810 = vmatpush.msra.mxu0 %v720
        %811 = vmatpush.msra.mxu0 %v718
        %812 = vmatpush.msra.mxu0 %v716
        %813 = vmatpush.msra.mxu0 %v714
        %814 = vmatpush.msra.mxu0 %v712
        %815 = vmatpush.msra.mxu0 %v710
        %816 = vmatpush.msra.mxu0 %v708
        %817 = vmatpush.msra.mxu0 %v706
        %818 = vmatpush.msra.mxu0 %v704
        %819 = vmatpush.msra.mxu0 %v702
        %820 = vmatpush.msra.mxu0 %v700
        %821 = vmatpush.msra.mxu0 %v698
        %822 = vmatmul.f32.gmra.mxu0 %v762
        %v823 = vpop.f32.mrf.mxu0
        %v824 = vadd.f32 0.0, %v823
        %825 = vdwg.mxu0
        %826 = vmatpush.msra.mxu0 %v760
        %827 = vmatpush.msra.mxu0 %v758
        %828 = vmatpush.msra.mxu0 %v756
        %829 = vmatpush.msra.mxu0 %v754
        %830 = vmatpush.msra.mxu0 %v752
        %831 = vmatpush.msra.mxu0 %v750
        %832 = vmatpush.msra.mxu0 %v748
        %833 = vmatpush.msra.mxu0 %v746
        %834 = vmatpush.msra.mxu0 %v744
        %835 = vmatpush.msra.mxu0 %v742
        %836 = vmatpush.msra.mxu0 %v740
        %837 = vmatpush.msra.mxu0 %v738
        %838 = vmatpush.msra.mxu0 %v736
        %839 = vmatpush.msra.mxu0 %v734
        %840 = vmatpush.msra.mxu0 %v732
        %841 = vmatpush.msra.mxu0 %v730
        %842 = vmatmul.f32.gmra.mxu0 %v763
        %v843 = vpop.f32.mrf.mxu0
        %v844 = vadd.f32 %v824, %v843
        %845 = vdwg.mxu0
        %s846 = scalar_lea.vmem [#allocation2], 8
        %v847 = vld [vmem:[%s846] sm:$0xff]
        %vm848 = vcmask 31744
        %v850 = vsel %vm848, %v847, 0
        %vm852 = vcmask 1043456
        %v854 = vsel %vm852, %v804, 0
        %v857 = vsel %vm852, %v844, 0
        %859 = vmatpush.msra.mxu0 0.0
        %860 = vmatpush.msra.mxu0 0.0
        %861 = vmatpush.msra.mxu0 0.0
        %862 = vmatpush.msra.mxu0 0.0
        %863 = vmatpush.msra.mxu0 0.0
        %864 = vmatpush.msra.mxu0 0.0
        %865 = vmatpush.msra.mxu0 0.0
        %866 = vmatpush.msra.mxu0 0.0
        %867 = vmatpush.msra.mxu0 0.0
        %868 = vmatpush.msra.mxu0 0.0
        %869 = vmatpush.msra.mxu0 0.0
        %870 = vmatpush.msra.mxu0 0.0
        %871 = vmatpush.msra.mxu0 0.0
        %872 = vmatpush.msra.mxu0 0.0
        %873 = vmatpush.msra.mxu0 0.0
        %874 = vmatpush.msra.mxu0 %v854
        %875 = vmatmul.f32.gmra.mxu0 %v850
        %v876 = vpop.f32.mrf.mxu0
        %v877 = vadd.f32 0.0, %v876
        %878 = vdwg.mxu0
        %879 = vmatpush.msra.mxu0 0.0
        %880 = vmatpush.msra.mxu0 0.0
        %881 = vmatpush.msra.mxu0 0.0
        %882 = vmatpush.msra.mxu0 0.0
        %883 = vmatpush.msra.mxu0 0.0
        %884 = vmatpush.msra.mxu0 0.0
        %885 = vmatpush.msra.mxu0 0.0
        %886 = vmatpush.msra.mxu0 0.0
        %887 = vmatpush.msra.mxu0 0.0
        %888 = vmatpush.msra.mxu0 0.0
        %889 = vmatpush.msra.mxu0 0.0
        %890 = vmatpush.msra.mxu0 0.0
        %891 = vmatpush.msra.mxu0 0.0
        %892 = vmatpush.msra.mxu0 0.0
        %893 = vmatpush.msra.mxu0 0.0
        %894 = vmatpush.msra.mxu0 %v857
        %895 = vmatmul.f32.gmra.mxu0 %v850
        %v896 = vpop.f32.mrf.mxu0
        %v897 = vadd.f32 0.0, %v896
        %898 = vdwg.mxu0
        %v900 = vsel %vm848, %v695, 0
        %v903 = vsel %vm852, %v653, 0
        %v906 = vsel %vm852, %v693, 0
        %908 = vmatpush.msra.mxu0 0.0
        %909 = vmatpush.msra.mxu0 0.0
        %910 = vmatpush.msra.mxu0 0.0
        %911 = vmatpush.msra.mxu0 0.0
        %912 = vmatpush.msra.mxu0 0.0
        %913 = vmatpush.msra.mxu0 0.0
        %914 = vmatpush.msra.mxu0 0.0
        %915 = vmatpush.msra.mxu0 0.0
        %916 = vmatpush.msra.mxu0 0.0
        %917 = vmatpush.msra.mxu0 0.0
        %918 = vmatpush.msra.mxu0 0.0
        %919 = vmatpush.msra.mxu0 0.0
        %920 = vmatpush.msra.mxu0 0.0
        %921 = vmatpush.msra.mxu0 0.0
        %922 = vmatpush.msra.mxu0 0.0
        %923 = vmatpush.msra.mxu0 %v903
        %924 = vmatmul.f32.gmra.mxu0 %v900
        %v925 = vpop.f32.mrf.mxu0
        %v926 = vadd.f32 %v877, %v925
        %927 = vdwg.mxu0
        %928 = vmatpush.msra.mxu0 0.0
        %929 = vmatpush.msra.mxu0 0.0
        %930 = vmatpush.msra.mxu0 0.0
        %931 = vmatpush.msra.mxu0 0.0
        %932 = vmatpush.msra.mxu0 0.0
        %933 = vmatpush.msra.mxu0 0.0
        %934 = vmatpush.msra.mxu0 0.0
        %935 = vmatpush.msra.mxu0 0.0
        %936 = vmatpush.msra.mxu0 0.0
        %937 = vmatpush.msra.mxu0 0.0
        %938 = vmatpush.msra.mxu0 0.0
        %939 = vmatpush.msra.mxu0 0.0
        %940 = vmatpush.msra.mxu0 0.0
        %941 = vmatpush.msra.mxu0 0.0
        %942 = vmatpush.msra.mxu0 0.0
        %943 = vmatpush.msra.mxu0 %v906
        %944 = vmatmul.f32.gmra.mxu0 %v900
        %v945 = vpop.f32.mrf.mxu0
        %v946 = vadd.f32 %v897, %v945
        %947 = vdwg.mxu0
        %s948 = scalar_lea.vmem [#allocation7], 1024
        %v949 = vld [vmem:[%s948] sm:$0xff]
        %v950 = vld [vmem:[%s948 + $0x8] sm:$0xff]
        %v951 = vld [vmem:[%s948 + $0x10] sm:$0xff]
        %v952 = vld [vmem:[%s948 + $0x18] sm:$0xff]
        %v953 = vld [vmem:[%s948 + $0x20] sm:$0xff]
        %v954 = vld [vmem:[%s948 + $0x28] sm:$0xff]
        %v955 = vld [vmem:[%s948 + $0x30] sm:$0xff]
        %v956 = vld [vmem:[%s948 + $0x38] sm:$0xff]
        %v957 = vld [vmem:[%s948 + $0x40] sm:$0xff]
        %v958 = vld [vmem:[%s948 + $0x48] sm:$0xff]
        %v959 = vld [vmem:[%s948 + $0x50] sm:$0xff]
        %v960 = vld [vmem:[%s948 + $0x58] sm:$0xff]
        %v961 = vld [vmem:[%s948 + $0x60] sm:$0xff]
        %v962 = vld [vmem:[%s948 + $0x68] sm:$0xff]
        %v963 = vld [vmem:[%s948 + $0x70] sm:$0xff]
        %v964 = vld [vmem:[%s948 + $0x78] sm:$0xff]
        %v965 = vld [vmem:[%s948 + $0x80] sm:$0xff]
        %v966 = vld [vmem:[%s948 + $0x88] sm:$0xff]
        %v967 = vld [vmem:[%s948 + $0x90] sm:$0xff]
        %v968 = vld [vmem:[%s948 + $0x98] sm:$0xff]
        %v969 = vld [vmem:[%s948 + $0xa0] sm:$0xff]
        %v970 = vld [vmem:[%s948 + $0xa8] sm:$0xff]
        %v971 = vld [vmem:[%s948 + $0xb0] sm:$0xff]
        %v972 = vld [vmem:[%s948 + $0xb8] sm:$0xff]
        %v973 = vld [vmem:[%s948 + $0xc0] sm:$0xff]
        %v974 = vld [vmem:[%s948 + $0xc8] sm:$0xff]
        %v975 = vld [vmem:[%s948 + $0xd0] sm:$0xff]
        %v976 = vld [vmem:[%s948 + $0xd8] sm:$0xff]
        %v977 = vld [vmem:[%s948 + $0xe0] sm:$0xff]
        %v978 = vld [vmem:[%s948 + $0xe8] sm:$0xff]
        %v979 = vld [vmem:[%s948 + $0xf0] sm:$0xff]
        %v980 = vld [vmem:[%s948 + $0xf8] sm:$0xff]
        %v981 = vld [vmem:[%s948 + $0x100] sm:$0xff]
        %v982 = vld [vmem:[%s948 + $0x108] sm:$0xff]
        %v983 = vld [vmem:[%s948 + $0x110] sm:$0xff]
        %v984 = vld [vmem:[%s948 + $0x118] sm:$0xff]
        %v985 = vld [vmem:[%s948 + $0x120] sm:$0xff]
        %v986 = vld [vmem:[%s948 + $0x128] sm:$0xff]
        %v987 = vld [vmem:[%s948 + $0x130] sm:$0xff]
        %v988 = vld [vmem:[%s948 + $0x138] sm:$0xff]
        %v989 = vld [vmem:[%s948 + $0x140] sm:$0xff]
        %v990 = vld [vmem:[%s948 + $0x148] sm:$0xff]
        %v991 = vld [vmem:[%s948 + $0x150] sm:$0xff]
        %v992 = vld [vmem:[%s948 + $0x158] sm:$0xff]
        %v993 = vld [vmem:[%s948 + $0x160] sm:$0xff]
        %v994 = vld [vmem:[%s948 + $0x168] sm:$0xff]
        %v995 = vld [vmem:[%s948 + $0x170] sm:$0xff]
        %v996 = vld [vmem:[%s948 + $0x178] sm:$0xff]
        %v997 = vld [vmem:[%s948 + $0x180] sm:$0xff]
        %v998 = vld [vmem:[%s948 + $0x188] sm:$0xff]
        %v999 = vld [vmem:[%s948 + $0x190] sm:$0xff]
        %v1000 = vld [vmem:[%s948 + $0x198] sm:$0xff]
        %v1001 = vld [vmem:[%s948 + $0x1a0] sm:$0xff]
        %v1002 = vld [vmem:[%s948 + $0x1a8] sm:$0xff]
        %v1003 = vld [vmem:[%s948 + $0x1b0] sm:$0xff]
        %v1004 = vld [vmem:[%s948 + $0x1b8] sm:$0xff]
        %v1005 = vld [vmem:[%s948 + $0x1c0] sm:$0xff]
        %v1006 = vld [vmem:[%s948 + $0x1c8] sm:$0xff]
        %v1007 = vld [vmem:[%s948 + $0x1d0] sm:$0xff]
        %v1008 = vld [vmem:[%s948 + $0x1d8] sm:$0xff]
        %v1009 = vld [vmem:[%s948 + $0x1e0] sm:$0xff]
        %v1010 = vld [vmem:[%s948 + $0x1e8] sm:$0xff]
        %v1011 = vld [vmem:[%s948 + $0x1f0] sm:$0xff]
        %v1012 = vld [vmem:[%s948 + $0x1f8] sm:$0xff]
        %1013 = vst [vmem:[#allocation1] ss:$2 sm:$0xff] %v544
        %v1014 = vld.sshfl [vmem:[#allocation1] sm:$0xff pattern:$0x75316420]
        %v1015 = vld.sshfl [vmem:[#allocation1 + $0x8] sm:$0xff pattern:$0x75316420]
        %1018 = vmatpush.msra.mxu0 %v979
        %1019 = vmatpush.msra.mxu0 %v977
        %1020 = vmatpush.msra.mxu0 %v975
        %1021 = vmatpush.msra.mxu0 %v973
        %1022 = vmatpush.msra.mxu0 %v971
        %1023 = vmatpush.msra.mxu0 %v969
        %1024 = vmatpush.msra.mxu0 %v967
        %1025 = vmatpush.msra.mxu0 %v965
        %1026 = vmatpush.msra.mxu0 %v963
        %1027 = vmatpush.msra.mxu0 %v961
        %1028 = vmatpush.msra.mxu0 %v959
        %1029 = vmatpush.msra.mxu0 %v957
        %1030 = vmatpush.msra.mxu0 %v955
        %1031 = vmatpush.msra.mxu0 %v953
        %1032 = vmatpush.msra.mxu0 %v951
        %1033 = vmatpush.msra.mxu0 %v949
        %1034 = vmatmul.f32.gmra.mxu0 %v1014
        %v1035 = vpop.f32.mrf.mxu0
        %v1036 = vadd.f32 0.0, %v1035
        %1037 = vdwg.mxu0
        %1038 = vmatpush.msra.mxu0 %v1011
        %1039 = vmatpush.msra.mxu0 %v1009
        %1040 = vmatpush.msra.mxu0 %v1007
        %1041 = vmatpush.msra.mxu0 %v1005
        %1042 = vmatpush.msra.mxu0 %v1003
        %1043 = vmatpush.msra.mxu0 %v1001
        %1044 = vmatpush.msra.mxu0 %v999
        %1045 = vmatpush.msra.mxu0 %v997
        %1046 = vmatpush.msra.mxu0 %v995
        %1047 = vmatpush.msra.mxu0 %v993
        %1048 = vmatpush.msra.mxu0 %v991
        %1049 = vmatpush.msra.mxu0 %v989
        %1050 = vmatpush.msra.mxu0 %v987
        %1051 = vmatpush.msra.mxu0 %v985
        %1052 = vmatpush.msra.mxu0 %v983
        %1053 = vmatpush.msra.mxu0 %v981
        %1054 = vmatmul.f32.gmra.mxu0 %v1015
        %v1055 = vpop.f32.mrf.mxu0
        %v1056 = vadd.f32 %v1036, %v1055
        %1057 = vdwg.mxu0
        %1058 = vmatpush.msra.mxu0 %v980
        %1059 = vmatpush.msra.mxu0 %v978
        %1060 = vmatpush.msra.mxu0 %v976
        %1061 = vmatpush.msra.mxu0 %v974
        %1062 = vmatpush.msra.mxu0 %v972
        %1063 = vmatpush.msra.mxu0 %v970
        %1064 = vmatpush.msra.mxu0 %v968
        %1065 = vmatpush.msra.mxu0 %v966
        %1066 = vmatpush.msra.mxu0 %v964
        %1067 = vmatpush.msra.mxu0 %v962
        %1068 = vmatpush.msra.mxu0 %v960
        %1069 = vmatpush.msra.mxu0 %v958
        %1070 = vmatpush.msra.mxu0 %v956
        %1071 = vmatpush.msra.mxu0 %v954
        %1072 = vmatpush.msra.mxu0 %v952
        %1073 = vmatpush.msra.mxu0 %v950
        %1074 = vmatmul.f32.gmra.mxu0 %v1014
        %v1075 = vpop.f32.mrf.mxu0
        %v1076 = vadd.f32 0.0, %v1075
        %1077 = vdwg.mxu0
        %1078 = vmatpush.msra.mxu0 %v1012
        %1079 = vmatpush.msra.mxu0 %v1010
        %1080 = vmatpush.msra.mxu0 %v1008
        %1081 = vmatpush.msra.mxu0 %v1006
        %1082 = vmatpush.msra.mxu0 %v1004
        %1083 = vmatpush.msra.mxu0 %v1002
        %1084 = vmatpush.msra.mxu0 %v1000
        %1085 = vmatpush.msra.mxu0 %v998
        %1086 = vmatpush.msra.mxu0 %v996
        %1087 = vmatpush.msra.mxu0 %v994
        %1088 = vmatpush.msra.mxu0 %v992
        %1089 = vmatpush.msra.mxu0 %v990
        %1090 = vmatpush.msra.mxu0 %v988
        %1091 = vmatpush.msra.mxu0 %v986
        %1092 = vmatpush.msra.mxu0 %v984
        %1093 = vmatpush.msra.mxu0 %v982
        %1094 = vmatmul.f32.gmra.mxu0 %v1015
        %v1095 = vpop.f32.mrf.mxu0
        %v1096 = vadd.f32 %v1076, %v1095
        %1097 = vdwg.mxu0
        %s1098 = scalar_lea.vmem [#allocation2], 16
        %v1099 = vld [vmem:[%s1098] sm:$0xff]
        %v1101 = vsel %vm848, %v1099, 0
        %v1104 = vsel %vm852, %v1056, 0
        %v1107 = vsel %vm852, %v1096, 0
        %1109 = vmatpush.msra.mxu0 0.0
        %1110 = vmatpush.msra.mxu0 0.0
        %1111 = vmatpush.msra.mxu0 0.0
        %1112 = vmatpush.msra.mxu0 0.0
        %1113 = vmatpush.msra.mxu0 0.0
        %1114 = vmatpush.msra.mxu0 0.0
        %1115 = vmatpush.msra.mxu0 0.0
        %1116 = vmatpush.msra.mxu0 0.0
        %1117 = vmatpush.msra.mxu0 0.0
        %1118 = vmatpush.msra.mxu0 0.0
        %1119 = vmatpush.msra.mxu0 0.0
        %1120 = vmatpush.msra.mxu0 0.0
        %1121 = vmatpush.msra.mxu0 0.0
        %1122 = vmatpush.msra.mxu0 0.0
        %1123 = vmatpush.msra.mxu0 0.0
        %1124 = vmatpush.msra.mxu0 %v1104
        %1125 = vmatmul.f32.gmra.mxu0 %v1101
        %v1126 = vpop.f32.mrf.mxu0
        %v1127 = vadd.f32 0.0, %v1126
        %1128 = vdwg.mxu0
        %1129 = vmatpush.msra.mxu0 0.0
        %1130 = vmatpush.msra.mxu0 0.0
        %1131 = vmatpush.msra.mxu0 0.0
        %1132 = vmatpush.msra.mxu0 0.0
        %1133 = vmatpush.msra.mxu0 0.0
        %1134 = vmatpush.msra.mxu0 0.0
        %1135 = vmatpush.msra.mxu0 0.0
        %1136 = vmatpush.msra.mxu0 0.0
        %1137 = vmatpush.msra.mxu0 0.0
        %1138 = vmatpush.msra.mxu0 0.0
        %1139 = vmatpush.msra.mxu0 0.0
        %1140 = vmatpush.msra.mxu0 0.0
        %1141 = vmatpush.msra.mxu0 0.0
        %1142 = vmatpush.msra.mxu0 0.0
        %1143 = vmatpush.msra.mxu0 0.0
        %1144 = vmatpush.msra.mxu0 %v1107
        %1145 = vmatmul.f32.gmra.mxu0 %v1101
        %v1146 = vpop.f32.mrf.mxu0
        %v1147 = vadd.f32 0.0, %v1146
        %1148 = vdwg.mxu0
        %v1149 = vadd.f32 %v926, %v1127
        %v1150 = vadd.f32 %v946, %v1147
        %s1151 = scalar_lea.vmem [#allocation7], 1536
        %v1152 = vld [vmem:[%s1151] sm:$0xff]
        %v1153 = vld [vmem:[%s1151 + $0x8] sm:$0xff]
        %v1154 = vld [vmem:[%s1151 + $0x10] sm:$0xff]
        %v1155 = vld [vmem:[%s1151 + $0x18] sm:$0xff]
        %v1156 = vld [vmem:[%s1151 + $0x20] sm:$0xff]
        %v1157 = vld [vmem:[%s1151 + $0x28] sm:$0xff]
        %v1158 = vld [vmem:[%s1151 + $0x30] sm:$0xff]
        %v1159 = vld [vmem:[%s1151 + $0x38] sm:$0xff]
        %v1160 = vld [vmem:[%s1151 + $0x40] sm:$0xff]
        %v1161 = vld [vmem:[%s1151 + $0x48] sm:$0xff]
        %v1162 = vld [vmem:[%s1151 + $0x50] sm:$0xff]
        %v1163 = vld [vmem:[%s1151 + $0x58] sm:$0xff]
        %v1164 = vld [vmem:[%s1151 + $0x60] sm:$0xff]
        %v1165 = vld [vmem:[%s1151 + $0x68] sm:$0xff]
        %v1166 = vld [vmem:[%s1151 + $0x70] sm:$0xff]
        %v1167 = vld [vmem:[%s1151 + $0x78] sm:$0xff]
        %v1168 = vld [vmem:[%s1151 + $0x80] sm:$0xff]
        %v1169 = vld [vmem:[%s1151 + $0x88] sm:$0xff]
        %v1170 = vld [vmem:[%s1151 + $0x90] sm:$0xff]
        %v1171 = vld [vmem:[%s1151 + $0x98] sm:$0xff]
        %v1172 = vld [vmem:[%s1151 + $0xa0] sm:$0xff]
        %v1173 = vld [vmem:[%s1151 + $0xa8] sm:$0xff]
        %v1174 = vld [vmem:[%s1151 + $0xb0] sm:$0xff]
        %v1175 = vld [vmem:[%s1151 + $0xb8] sm:$0xff]
        %v1176 = vld [vmem:[%s1151 + $0xc0] sm:$0xff]
        %v1177 = vld [vmem:[%s1151 + $0xc8] sm:$0xff]
        %v1178 = vld [vmem:[%s1151 + $0xd0] sm:$0xff]
        %v1179 = vld [vmem:[%s1151 + $0xd8] sm:$0xff]
        %v1180 = vld [vmem:[%s1151 + $0xe0] sm:$0xff]
        %v1181 = vld [vmem:[%s1151 + $0xe8] sm:$0xff]
        %v1182 = vld [vmem:[%s1151 + $0xf0] sm:$0xff]
        %v1183 = vld [vmem:[%s1151 + $0xf8] sm:$0xff]
        %v1184 = vld [vmem:[%s1151 + $0x100] sm:$0xff]
        %v1185 = vld [vmem:[%s1151 + $0x108] sm:$0xff]
        %v1186 = vld [vmem:[%s1151 + $0x110] sm:$0xff]
        %v1187 = vld [vmem:[%s1151 + $0x118] sm:$0xff]
        %v1188 = vld [vmem:[%s1151 + $0x120] sm:$0xff]
        %v1189 = vld [vmem:[%s1151 + $0x128] sm:$0xff]
        %v1190 = vld [vmem:[%s1151 + $0x130] sm:$0xff]
        %v1191 = vld [vmem:[%s1151 + $0x138] sm:$0xff]
        %v1192 = vld [vmem:[%s1151 + $0x140] sm:$0xff]
        %v1193 = vld [vmem:[%s1151 + $0x148] sm:$0xff]
        %v1194 = vld [vmem:[%s1151 + $0x150] sm:$0xff]
        %v1195 = vld [vmem:[%s1151 + $0x158] sm:$0xff]
        %v1196 = vld [vmem:[%s1151 + $0x160] sm:$0xff]
        %v1197 = vld [vmem:[%s1151 + $0x168] sm:$0xff]
        %v1198 = vld [vmem:[%s1151 + $0x170] sm:$0xff]
        %v1199 = vld [vmem:[%s1151 + $0x178] sm:$0xff]
        %v1200 = vld [vmem:[%s1151 + $0x180] sm:$0xff]
        %v1201 = vld [vmem:[%s1151 + $0x188] sm:$0xff]
        %v1202 = vld [vmem:[%s1151 + $0x190] sm:$0xff]
        %v1203 = vld [vmem:[%s1151 + $0x198] sm:$0xff]
        %v1204 = vld [vmem:[%s1151 + $0x1a0] sm:$0xff]
        %v1205 = vld [vmem:[%s1151 + $0x1a8] sm:$0xff]
        %v1206 = vld [vmem:[%s1151 + $0x1b0] sm:$0xff]
        %v1207 = vld [vmem:[%s1151 + $0x1b8] sm:$0xff]
        %v1208 = vld [vmem:[%s1151 + $0x1c0] sm:$0xff]
        %v1209 = vld [vmem:[%s1151 + $0x1c8] sm:$0xff]
        %v1210 = vld [vmem:[%s1151 + $0x1d0] sm:$0xff]
        %v1211 = vld [vmem:[%s1151 + $0x1d8] sm:$0xff]
        %v1212 = vld [vmem:[%s1151 + $0x1e0] sm:$0xff]
        %v1213 = vld [vmem:[%s1151 + $0x1e8] sm:$0xff]
        %v1214 = vld [vmem:[%s1151 + $0x1f0] sm:$0xff]
        %v1215 = vld [vmem:[%s1151 + $0x1f8] sm:$0xff]
        %1216 = vst [vmem:[#allocation1] ss:$2 sm:$0xff] %v544
        %v1217 = vld.sshfl [vmem:[#allocation1] sm:$0xff pattern:$0x75316420]
        %v1218 = vld.sshfl [vmem:[#allocation1 + $0x8] sm:$0xff pattern:$0x75316420]
        %1221 = vmatpush.msra.mxu0 %v1182
        %1222 = vmatpush.msra.mxu0 %v1180
        %1223 = vmatpush.msra.mxu0 %v1178
        %1224 = vmatpush.msra.mxu0 %v1176
        %1225 = vmatpush.msra.mxu0 %v1174
        %1226 = vmatpush.msra.mxu0 %v1172
        %1227 = vmatpush.msra.mxu0 %v1170
        %1228 = vmatpush.msra.mxu0 %v1168
        %1229 = vmatpush.msra.mxu0 %v1166
        %1230 = vmatpush.msra.mxu0 %v1164
        %1231 = vmatpush.msra.mxu0 %v1162
        %1232 = vmatpush.msra.mxu0 %v1160
        %1233 = vmatpush.msra.mxu0 %v1158
        %1234 = vmatpush.msra.mxu0 %v1156
        %1235 = vmatpush.msra.mxu0 %v1154
        %1236 = vmatpush.msra.mxu0 %v1152
        %1237 = vmatmul.f32.gmra.mxu0 %v1217
        %v1238 = vpop.f32.mrf.mxu0
        %v1239 = vadd.f32 0.0, %v1238
        %1240 = vdwg.mxu0
        %1241 = vmatpush.msra.mxu0 %v1214
        %1242 = vmatpush.msra.mxu0 %v1212
        %1243 = vmatpush.msra.mxu0 %v1210
        %1244 = vmatpush.msra.mxu0 %v1208
        %1245 = vmatpush.msra.mxu0 %v1206
        %1246 = vmatpush.msra.mxu0 %v1204
        %1247 = vmatpush.msra.mxu0 %v1202
        %1248 = vmatpush.msra.mxu0 %v1200
        %1249 = vmatpush.msra.mxu0 %v1198
        %1250 = vmatpush.msra.mxu0 %v1196
        %1251 = vmatpush.msra.mxu0 %v1194
        %1252 = vmatpush.msra.mxu0 %v1192
        %1253 = vmatpush.msra.mxu0 %v1190
        %1254 = vmatpush.msra.mxu0 %v1188
        %1255 = vmatpush.msra.mxu0 %v1186
        %1256 = vmatpush.msra.mxu0 %v1184
        %1257 = vmatmul.f32.gmra.mxu0 %v1218
        %v1258 = vpop.f32.mrf.mxu0
        %v1259 = vadd.f32 %v1239, %v1258
        %1260 = vdwg.mxu0
        %1261 = vmatpush.msra.mxu0 %v1183
        %1262 = vmatpush.msra.mxu0 %v1181
        %1263 = vmatpush.msra.mxu0 %v1179
        %1264 = vmatpush.msra.mxu0 %v1177
        %1265 = vmatpush.msra.mxu0 %v1175
        %1266 = vmatpush.msra.mxu0 %v1173
        %1267 = vmatpush.msra.mxu0 %v1171
        %1268 = vmatpush.msra.mxu0 %v1169
        %1269 = vmatpush.msra.mxu0 %v1167
        %1270 = vmatpush.msra.mxu0 %v1165
        %1271 = vmatpush.msra.mxu0 %v1163
        %1272 = vmatpush.msra.mxu0 %v1161
        %1273 = vmatpush.msra.mxu0 %v1159
        %1274 = vmatpush.msra.mxu0 %v1157
        %1275 = vmatpush.msra.mxu0 %v1155
        %1276 = vmatpush.msra.mxu0 %v1153
        %1277 = vmatmul.f32.gmra.mxu0 %v1217
        %v1278 = vpop.f32.mrf.mxu0
        %v1279 = vadd.f32 0.0, %v1278
        %1280 = vdwg.mxu0
        %1281 = vmatpush.msra.mxu0 %v1215
        %1282 = vmatpush.msra.mxu0 %v1213
        %1283 = vmatpush.msra.mxu0 %v1211
        %1284 = vmatpush.msra.mxu0 %v1209
        %1285 = vmatpush.msra.mxu0 %v1207
        %1286 = vmatpush.msra.mxu0 %v1205
        %1287 = vmatpush.msra.mxu0 %v1203
        %1288 = vmatpush.msra.mxu0 %v1201
        %1289 = vmatpush.msra.mxu0 %v1199
        %1290 = vmatpush.msra.mxu0 %v1197
        %1291 = vmatpush.msra.mxu0 %v1195
        %1292 = vmatpush.msra.mxu0 %v1193
        %1293 = vmatpush.msra.mxu0 %v1191
        %1294 = vmatpush.msra.mxu0 %v1189
        %1295 = vmatpush.msra.mxu0 %v1187
        %1296 = vmatpush.msra.mxu0 %v1185
        %1297 = vmatmul.f32.gmra.mxu0 %v1218
        %v1298 = vpop.f32.mrf.mxu0
        %v1299 = vadd.f32 %v1279, %v1298
        %1300 = vdwg.mxu0
        %s1301 = scalar_lea.vmem [#allocation2], 24
        %v1302 = vld [vmem:[%s1301] sm:$0xff]
        %v1304 = vsel %vm848, %v1302, 0
        %v1307 = vsel %vm852, %v1259, 0
        %v1310 = vsel %vm852, %v1299, 0
        %1312 = vmatpush.msra.mxu0 0.0
        %1313 = vmatpush.msra.mxu0 0.0
        %1314 = vmatpush.msra.mxu0 0.0
        %1315 = vmatpush.msra.mxu0 0.0
        %1316 = vmatpush.msra.mxu0 0.0
        %1317 = vmatpush.msra.mxu0 0.0
        %1318 = vmatpush.msra.mxu0 0.0
        %1319 = vmatpush.msra.mxu0 0.0
        %1320 = vmatpush.msra.mxu0 0.0
        %1321 = vmatpush.msra.mxu0 0.0
        %1322 = vmatpush.msra.mxu0 0.0
        %1323 = vmatpush.msra.mxu0 0.0
        %1324 = vmatpush.msra.mxu0 0.0
        %1325 = vmatpush.msra.mxu0 0.0
        %1326 = vmatpush.msra.mxu0 0.0
        %1327 = vmatpush.msra.mxu0 %v1307
        %1328 = vmatmul.f32.gmra.mxu0 %v1304
        %v1329 = vpop.f32.mrf.mxu0
        %v1330 = vadd.f32 0.0, %v1329
        %1331 = vdwg.mxu0
        %1332 = vmatpush.msra.mxu0 0.0
        %1333 = vmatpush.msra.mxu0 0.0
        %1334 = vmatpush.msra.mxu0 0.0
        %1335 = vmatpush.msra.mxu0 0.0
        %1336 = vmatpush.msra.mxu0 0.0
        %1337 = vmatpush.msra.mxu0 0.0
        %1338 = vmatpush.msra.mxu0 0.0
        %1339 = vmatpush.msra.mxu0 0.0
        %1340 = vmatpush.msra.mxu0 0.0
        %1341 = vmatpush.msra.mxu0 0.0
        %1342 = vmatpush.msra.mxu0 0.0
        %1343 = vmatpush.msra.mxu0 0.0
        %1344 = vmatpush.msra.mxu0 0.0
        %1345 = vmatpush.msra.mxu0 0.0
        %1346 = vmatpush.msra.mxu0 0.0
        %1347 = vmatpush.msra.mxu0 %v1310
        %1348 = vmatmul.f32.gmra.mxu0 %v1304
        %v1349 = vpop.f32.mrf.mxu0
        %v1350 = vadd.f32 0.0, %v1349
        %1351 = vdwg.mxu0
        %v1352 = vadd.f32 %v1149, %v1330
        %v1353 = vadd.f32 %v1150, %v1350
        %s1354 = scalar_lea.vmem [#allocation7], 2048
        %v1355 = vld [vmem:[%s1354] sm:$0xff]
        %v1356 = vld [vmem:[%s1354 + $0x8] sm:$0xff]
        %v1357 = vld [vmem:[%s1354 + $0x10] sm:$0xff]
        %v1358 = vld [vmem:[%s1354 + $0x18] sm:$0xff]
        %v1359 = vld [vmem:[%s1354 + $0x20] sm:$0xff]
        %v1360 = vld [vmem:[%s1354 + $0x28] sm:$0xff]
        %v1361 = vld [vmem:[%s1354 + $0x30] sm:$0xff]
        %v1362 = vld [vmem:[%s1354 + $0x38] sm:$0xff]
        %v1363 = vld [vmem:[%s1354 + $0x40] sm:$0xff]
        %v1364 = vld [vmem:[%s1354 + $0x48] sm:$0xff]
        %v1365 = vld [vmem:[%s1354 + $0x50] sm:$0xff]
        %v1366 = vld [vmem:[%s1354 + $0x58] sm:$0xff]
        %v1367 = vld [vmem:[%s1354 + $0x60] sm:$0xff]
        %v1368 = vld [vmem:[%s1354 + $0x68] sm:$0xff]
        %v1369 = vld [vmem:[%s1354 + $0x70] sm:$0xff]
        %v1370 = vld [vmem:[%s1354 + $0x78] sm:$0xff]
        %v1371 = vld [vmem:[%s1354 + $0x80] sm:$0xff]
        %v1372 = vld [vmem:[%s1354 + $0x88] sm:$0xff]
        %v1373 = vld [vmem:[%s1354 + $0x90] sm:$0xff]
        %v1374 = vld [vmem:[%s1354 + $0x98] sm:$0xff]
        %v1375 = vld [vmem:[%s1354 + $0xa0] sm:$0xff]
        %v1376 = vld [vmem:[%s1354 + $0xa8] sm:$0xff]
        %v1377 = vld [vmem:[%s1354 + $0xb0] sm:$0xff]
        %v1378 = vld [vmem:[%s1354 + $0xb8] sm:$0xff]
        %v1379 = vld [vmem:[%s1354 + $0xc0] sm:$0xff]
        %v1380 = vld [vmem:[%s1354 + $0xc8] sm:$0xff]
        %v1381 = vld [vmem:[%s1354 + $0xd0] sm:$0xff]
        %v1382 = vld [vmem:[%s1354 + $0xd8] sm:$0xff]
        %v1383 = vld [vmem:[%s1354 + $0xe0] sm:$0xff]
        %v1384 = vld [vmem:[%s1354 + $0xe8] sm:$0xff]
        %v1385 = vld [vmem:[%s1354 + $0xf0] sm:$0xff]
        %v1386 = vld [vmem:[%s1354 + $0xf8] sm:$0xff]
        %v1387 = vld [vmem:[%s1354 + $0x100] sm:$0xff]
        %v1388 = vld [vmem:[%s1354 + $0x108] sm:$0xff]
        %v1389 = vld [vmem:[%s1354 + $0x110] sm:$0xff]
        %v1390 = vld [vmem:[%s1354 + $0x118] sm:$0xff]
        %v1391 = vld [vmem:[%s1354 + $0x120] sm:$0xff]
        %v1392 = vld [vmem:[%s1354 + $0x128] sm:$0xff]
        %v1393 = vld [vmem:[%s1354 + $0x130] sm:$0xff]
        %v1394 = vld [vmem:[%s1354 + $0x138] sm:$0xff]
        %v1395 = vld [vmem:[%s1354 + $0x140] sm:$0xff]
        %v1396 = vld [vmem:[%s1354 + $0x148] sm:$0xff]
        %v1397 = vld [vmem:[%s1354 + $0x150] sm:$0xff]
        %v1398 = vld [vmem:[%s1354 + $0x158] sm:$0xff]
        %v1399 = vld [vmem:[%s1354 + $0x160] sm:$0xff]
        %v1400 = vld [vmem:[%s1354 + $0x168] sm:$0xff]
        %v1401 = vld [vmem:[%s1354 + $0x170] sm:$0xff]
        %v1402 = vld [vmem:[%s1354 + $0x178] sm:$0xff]
        %v1403 = vld [vmem:[%s1354 + $0x180] sm:$0xff]
        %v1404 = vld [vmem:[%s1354 + $0x188] sm:$0xff]
        %v1405 = vld [vmem:[%s1354 + $0x190] sm:$0xff]
        %v1406 = vld [vmem:[%s1354 + $0x198] sm:$0xff]
        %v1407 = vld [vmem:[%s1354 + $0x1a0] sm:$0xff]
        %v1408 = vld [vmem:[%s1354 + $0x1a8] sm:$0xff]
        %v1409 = vld [vmem:[%s1354 + $0x1b0] sm:$0xff]
        %v1410 = vld [vmem:[%s1354 + $0x1b8] sm:$0xff]
        %v1411 = vld [vmem:[%s1354 + $0x1c0] sm:$0xff]
        %v1412 = vld [vmem:[%s1354 + $0x1c8] sm:$0xff]
        %v1413 = vld [vmem:[%s1354 + $0x1d0] sm:$0xff]
        %v1414 = vld [vmem:[%s1354 + $0x1d8] sm:$0xff]
        %v1415 = vld [vmem:[%s1354 + $0x1e0] sm:$0xff]
        %v1416 = vld [vmem:[%s1354 + $0x1e8] sm:$0xff]
        %v1417 = vld [vmem:[%s1354 + $0x1f0] sm:$0xff]
        %v1418 = vld [vmem:[%s1354 + $0x1f8] sm:$0xff]
        %1419 = vst [vmem:[#allocation1] ss:$2 sm:$0xff] %v544
        %v1420 = vld.sshfl [vmem:[#allocation1] sm:$0xff pattern:$0x75316420]
        %v1421 = vld.sshfl [vmem:[#allocation1 + $0x8] sm:$0xff pattern:$0x75316420]
        %1424 = vmatpush.msra.mxu0 %v1385
        %1425 = vmatpush.msra.mxu0 %v1383
        %1426 = vmatpush.msra.mxu0 %v1381
        %1427 = vmatpush.msra.mxu0 %v1379
        %1428 = vmatpush.msra.mxu0 %v1377
        %1429 = vmatpush.msra.mxu0 %v1375
        %1430 = vmatpush.msra.mxu0 %v1373
        %1431 = vmatpush.msra.mxu0 %v1371
        %1432 = vmatpush.msra.mxu0 %v1369
        %1433 = vmatpush.msra.mxu0 %v1367
        %1434 = vmatpush.msra.mxu0 %v1365
        %1435 = vmatpush.msra.mxu0 %v1363
        %1436 = vmatpush.msra.mxu0 %v1361
        %1437 = vmatpush.msra.mxu0 %v1359
        %1438 = vmatpush.msra.mxu0 %v1357
        %1439 = vmatpush.msra.mxu0 %v1355
        %1440 = vmatmul.f32.gmra.mxu0 %v1420
        %v1441 = vpop.f32.mrf.mxu0
        %v1442 = vadd.f32 0.0, %v1441
        %1443 = vdwg.mxu0
        %1444 = vmatpush.msra.mxu0 %v1417
        %1445 = vmatpush.msra.mxu0 %v1415
        %1446 = vmatpush.msra.mxu0 %v1413
        %1447 = vmatpush.msra.mxu0 %v1411
        %1448 = vmatpush.msra.mxu0 %v1409
        %1449 = vmatpush.msra.mxu0 %v1407
        %1450 = vmatpush.msra.mxu0 %v1405
        %1451 = vmatpush.msra.mxu0 %v1403
        %1452 = vmatpush.msra.mxu0 %v1401
        %1453 = vmatpush.msra.mxu0 %v1399
        %1454 = vmatpush.msra.mxu0 %v1397
        %1455 = vmatpush.msra.mxu0 %v1395
        %1456 = vmatpush.msra.mxu0 %v1393
        %1457 = vmatpush.msra.mxu0 %v1391
        %1458 = vmatpush.msra.mxu0 %v1389
        %1459 = vmatpush.msra.mxu0 %v1387
        %1460 = vmatmul.f32.gmra.mxu0 %v1421
        %v1461 = vpop.f32.mrf.mxu0
        %v1462 = vadd.f32 %v1442, %v1461
        %1463 = vdwg.mxu0
        %1464 = vmatpush.msra.mxu0 %v1386
        %1465 = vmatpush.msra.mxu0 %v1384
        %1466 = vmatpush.msra.mxu0 %v1382
        %1467 = vmatpush.msra.mxu0 %v1380
        %1468 = vmatpush.msra.mxu0 %v1378
        %1469 = vmatpush.msra.mxu0 %v1376
        %1470 = vmatpush.msra.mxu0 %v1374
        %1471 = vmatpush.msra.mxu0 %v1372
        %1472 = vmatpush.msra.mxu0 %v1370
        %1473 = vmatpush.msra.mxu0 %v1368
        %1474 = vmatpush.msra.mxu0 %v1366
        %1475 = vmatpush.msra.mxu0 %v1364
        %1476 = vmatpush.msra.mxu0 %v1362
        %1477 = vmatpush.msra.mxu0 %v1360
        %1478 = vmatpush.msra.mxu0 %v1358
        %1479 = vmatpush.msra.mxu0 %v1356
        %1480 = vmatmul.f32.gmra.mxu0 %v1420
        %v1481 = vpop.f32.mrf.mxu0
        %v1482 = vadd.f32 0.0, %v1481
        %1483 = vdwg.mxu0
        %1484 = vmatpush.msra.mxu0 %v1418
        %1485 = vmatpush.msra.mxu0 %v1416
        %1486 = vmatpush.msra.mxu0 %v1414
        %1487 = vmatpush.msra.mxu0 %v1412
        %1488 = vmatpush.msra.mxu0 %v1410
        %1489 = vmatpush.msra.mxu0 %v1408
        %1490 = vmatpush.msra.mxu0 %v1406
        %1491 = vmatpush.msra.mxu0 %v1404
        %1492 = vmatpush.msra.mxu0 %v1402
        %1493 = vmatpush.msra.mxu0 %v1400
        %1494 = vmatpush.msra.mxu0 %v1398
        %1495 = vmatpush.msra.mxu0 %v1396
        %1496 = vmatpush.msra.mxu0 %v1394
        %1497 = vmatpush.msra.mxu0 %v1392
        %1498 = vmatpush.msra.mxu0 %v1390
        %1499 = vmatpush.msra.mxu0 %v1388
        %1500 = vmatmul.f32.gmra.mxu0 %v1421
        %v1501 = vpop.f32.mrf.mxu0
        %v1502 = vadd.f32 %v1482, %v1501
        %1503 = vdwg.mxu0
        %s1504 = scalar_lea.vmem [#allocation2], 32
        %v1505 = vld [vmem:[%s1504] sm:$0xff]
        %v1507 = vsel %vm848, %v1505, 0
        %v1510 = vsel %vm852, %v1462, 0
        %v1513 = vsel %vm852, %v1502, 0
        %1515 = vmatpush.msra.mxu0 0.0
        %1516 = vmatpush.msra.mxu0 0.0
        %1517 = vmatpush.msra.mxu0 0.0
        %1518 = vmatpush.msra.mxu0 0.0
        %1519 = vmatpush.msra.mxu0 0.0
        %1520 = vmatpush.msra.mxu0 0.0
        %1521 = vmatpush.msra.mxu0 0.0
        %1522 = vmatpush.msra.mxu0 0.0
        %1523 = vmatpush.msra.mxu0 0.0
        %1524 = vmatpush.msra.mxu0 0.0
        %1525 = vmatpush.msra.mxu0 0.0
        %1526 = vmatpush.msra.mxu0 0.0
        %1527 = vmatpush.msra.mxu0 0.0
        %1528 = vmatpush.msra.mxu0 0.0
        %1529 = vmatpush.msra.mxu0 0.0
        %1530 = vmatpush.msra.mxu0 %v1510
        %1531 = vmatmul.f32.gmra.mxu0 %v1507
        %v1532 = vpop.f32.mrf.mxu0
        %v1533 = vadd.f32 0.0, %v1532
        %1534 = vdwg.mxu0
        %1535 = vmatpush.msra.mxu0 0.0
        %1536 = vmatpush.msra.mxu0 0.0
        %1537 = vmatpush.msra.mxu0 0.0
        %1538 = vmatpush.msra.mxu0 0.0
        %1539 = vmatpush.msra.mxu0 0.0
        %1540 = vmatpush.msra.mxu0 0.0
        %1541 = vmatpush.msra.mxu0 0.0
        %1542 = vmatpush.msra.mxu0 0.0
        %1543 = vmatpush.msra.mxu0 0.0
        %1544 = vmatpush.msra.mxu0 0.0
        %1545 = vmatpush.msra.mxu0 0.0
        %1546 = vmatpush.msra.mxu0 0.0
        %1547 = vmatpush.msra.mxu0 0.0
        %1548 = vmatpush.msra.mxu0 0.0
        %1549 = vmatpush.msra.mxu0 0.0
        %1550 = vmatpush.msra.mxu0 %v1513
        %1551 = vmatmul.f32.gmra.mxu0 %v1507
        %v1552 = vpop.f32.mrf.mxu0
        %v1553 = vadd.f32 0.0, %v1552
        %1554 = vdwg.mxu0
        %v1555 = vadd.f32 %v1352, %v1533
        %v1556 = vadd.f32 %v1353, %v1553
        %s1557 = scalar_lea.vmem [#allocation7], 2560
        %v1558 = vld [vmem:[%s1557] sm:$0xff]
        %v1559 = vld [vmem:[%s1557 + $0x8] sm:$0xff]
        %v1560 = vld [vmem:[%s1557 + $0x10] sm:$0xff]
        %v1561 = vld [vmem:[%s1557 + $0x18] sm:$0xff]
        %v1562 = vld [vmem:[%s1557 + $0x20] sm:$0xff]
        %v1563 = vld [vmem:[%s1557 + $0x28] sm:$0xff]
        %v1564 = vld [vmem:[%s1557 + $0x30] sm:$0xff]
        %v1565 = vld [vmem:[%s1557 + $0x38] sm:$0xff]
        %v1566 = vld [vmem:[%s1557 + $0x40] sm:$0xff]
        %v1567 = vld [vmem:[%s1557 + $0x48] sm:$0xff]
        %v1568 = vld [vmem:[%s1557 + $0x50] sm:$0xff]
        %v1569 = vld [vmem:[%s1557 + $0x58] sm:$0xff]
        %v1570 = vld [vmem:[%s1557 + $0x60] sm:$0xff]
        %v1571 = vld [vmem:[%s1557 + $0x68] sm:$0xff]
        %v1572 = vld [vmem:[%s1557 + $0x70] sm:$0xff]
        %v1573 = vld [vmem:[%s1557 + $0x78] sm:$0xff]
        %v1574 = vld [vmem:[%s1557 + $0x80] sm:$0xff]
        %v1575 = vld [vmem:[%s1557 + $0x88] sm:$0xff]
        %v1576 = vld [vmem:[%s1557 + $0x90] sm:$0xff]
        %v1577 = vld [vmem:[%s1557 + $0x98] sm:$0xff]
        %v1578 = vld [vmem:[%s1557 + $0xa0] sm:$0xff]
        %v1579 = vld [vmem:[%s1557 + $0xa8] sm:$0xff]
        %v1580 = vld [vmem:[%s1557 + $0xb0] sm:$0xff]
        %v1581 = vld [vmem:[%s1557 + $0xb8] sm:$0xff]
        %v1582 = vld [vmem:[%s1557 + $0xc0] sm:$0xff]
        %v1583 = vld [vmem:[%s1557 + $0xc8] sm:$0xff]
        %v1584 = vld [vmem:[%s1557 + $0xd0] sm:$0xff]
        %v1585 = vld [vmem:[%s1557 + $0xd8] sm:$0xff]
        %v1586 = vld [vmem:[%s1557 + $0xe0] sm:$0xff]
        %v1587 = vld [vmem:[%s1557 + $0xe8] sm:$0xff]
        %v1588 = vld [vmem:[%s1557 + $0xf0] sm:$0xff]
        %v1589 = vld [vmem:[%s1557 + $0xf8] sm:$0xff]
        %v1590 = vld [vmem:[%s1557 + $0x100] sm:$0xff]
        %v1591 = vld [vmem:[%s1557 + $0x108] sm:$0xff]
        %v1592 = vld [vmem:[%s1557 + $0x110] sm:$0xff]
        %v1593 = vld [vmem:[%s1557 + $0x118] sm:$0xff]
        %v1594 = vld [vmem:[%s1557 + $0x120] sm:$0xff]
        %v1595 = vld [vmem:[%s1557 + $0x128] sm:$0xff]
        %v1596 = vld [vmem:[%s1557 + $0x130] sm:$0xff]
        %v1597 = vld [vmem:[%s1557 + $0x138] sm:$0xff]
        %v1598 = vld [vmem:[%s1557 + $0x140] sm:$0xff]
        %v1599 = vld [vmem:[%s1557 + $0x148] sm:$0xff]
        %v1600 = vld [vmem:[%s1557 + $0x150] sm:$0xff]
        %v1601 = vld [vmem:[%s1557 + $0x158] sm:$0xff]
        %v1602 = vld [vmem:[%s1557 + $0x160] sm:$0xff]
        %v1603 = vld [vmem:[%s1557 + $0x168] sm:$0xff]
        %v1604 = vld [vmem:[%s1557 + $0x170] sm:$0xff]
        %v1605 = vld [vmem:[%s1557 + $0x178] sm:$0xff]
        %v1606 = vld [vmem:[%s1557 + $0x180] sm:$0xff]
        %v1607 = vld [vmem:[%s1557 + $0x188] sm:$0xff]
        %v1608 = vld [vmem:[%s1557 + $0x190] sm:$0xff]
        %v1609 = vld [vmem:[%s1557 + $0x198] sm:$0xff]
        %v1610 = vld [vmem:[%s1557 + $0x1a0] sm:$0xff]
        %v1611 = vld [vmem:[%s1557 + $0x1a8] sm:$0xff]
        %v1612 = vld [vmem:[%s1557 + $0x1b0] sm:$0xff]
        %v1613 = vld [vmem:[%s1557 + $0x1b8] sm:$0xff]
        %v1614 = vld [vmem:[%s1557 + $0x1c0] sm:$0xff]
        %v1615 = vld [vmem:[%s1557 + $0x1c8] sm:$0xff]
        %v1616 = vld [vmem:[%s1557 + $0x1d0] sm:$0xff]
        %v1617 = vld [vmem:[%s1557 + $0x1d8] sm:$0xff]
        %v1618 = vld [vmem:[%s1557 + $0x1e0] sm:$0xff]
        %v1619 = vld [vmem:[%s1557 + $0x1e8] sm:$0xff]
        %v1620 = vld [vmem:[%s1557 + $0x1f0] sm:$0xff]
        %v1621 = vld [vmem:[%s1557 + $0x1f8] sm:$0xff]
        %1622 = vst [vmem:[#allocation1] ss:$2 sm:$0xff] %v544
        %v1623 = vld.sshfl [vmem:[#allocation1] sm:$0xff pattern:$0x75316420]
        %v1624 = vld.sshfl [vmem:[#allocation1 + $0x8] sm:$0xff pattern:$0x75316420]
        %1627 = vmatpush.msra.mxu0 %v1588
        %1628 = vmatpush.msra.mxu0 %v1586
        %1629 = vmatpush.msra.mxu0 %v1584
        %1630 = vmatpush.msra.mxu0 %v1582
        %1631 = vmatpush.msra.mxu0 %v1580
        %1632 = vmatpush.msra.mxu0 %v1578
        %1633 = vmatpush.msra.mxu0 %v1576
        %1634 = vmatpush.msra.mxu0 %v1574
        %1635 = vmatpush.msra.mxu0 %v1572
        %1636 = vmatpush.msra.mxu0 %v1570
        %1637 = vmatpush.msra.mxu0 %v1568
        %1638 = vmatpush.msra.mxu0 %v1566
        %1639 = vmatpush.msra.mxu0 %v1564
        %1640 = vmatpush.msra.mxu0 %v1562
        %1641 = vmatpush.msra.mxu0 %v1560
        %1642 = vmatpush.msra.mxu0 %v1558
        %1643 = vmatmul.f32.gmra.mxu0 %v1623
        %v1644 = vpop.f32.mrf.mxu0
        %v1645 = vadd.f32 0.0, %v1644
        %1646 = vdwg.mxu0
        %1647 = vmatpush.msra.mxu0 %v1620
        %1648 = vmatpush.msra.mxu0 %v1618
        %1649 = vmatpush.msra.mxu0 %v1616
        %1650 = vmatpush.msra.mxu0 %v1614
        %1651 = vmatpush.msra.mxu0 %v1612
        %1652 = vmatpush.msra.mxu0 %v1610
        %1653 = vmatpush.msra.mxu0 %v1608
        %1654 = vmatpush.msra.mxu0 %v1606
        %1655 = vmatpush.msra.mxu0 %v1604
        %1656 = vmatpush.msra.mxu0 %v1602
        %1657 = vmatpush.msra.mxu0 %v1600
        %1658 = vmatpush.msra.mxu0 %v1598
        %1659 = vmatpush.msra.mxu0 %v1596
        %1660 = vmatpush.msra.mxu0 %v1594
        %1661 = vmatpush.msra.mxu0 %v1592
        %1662 = vmatpush.msra.mxu0 %v1590
        %1663 = vmatmul.f32.gmra.mxu0 %v1624
        %v1664 = vpop.f32.mrf.mxu0
        %v1665 = vadd.f32 %v1645, %v1664
        %1666 = vdwg.mxu0
        %1667 = vmatpush.msra.mxu0 %v1589
        %1668 = vmatpush.msra.mxu0 %v1587
        %1669 = vmatpush.msra.mxu0 %v1585
        %1670 = vmatpush.msra.mxu0 %v1583
        %1671 = vmatpush.msra.mxu0 %v1581
        %1672 = vmatpush.msra.mxu0 %v1579
        %1673 = vmatpush.msra.mxu0 %v1577
        %1674 = vmatpush.msra.mxu0 %v1575
        %1675 = vmatpush.msra.mxu0 %v1573
        %1676 = vmatpush.msra.mxu0 %v1571
        %1677 = vmatpush.msra.mxu0 %v1569
        %1678 = vmatpush.msra.mxu0 %v1567
        %1679 = vmatpush.msra.mxu0 %v1565
        %1680 = vmatpush.msra.mxu0 %v1563
        %1681 = vmatpush.msra.mxu0 %v1561
        %1682 = vmatpush.msra.mxu0 %v1559
        %1683 = vmatmul.f32.gmra.mxu0 %v1623
        %v1684 = vpop.f32.mrf.mxu0
        %v1685 = vadd.f32 0.0, %v1684
        %1686 = vdwg.mxu0
        %1687 = vmatpush.msra.mxu0 %v1621
        %1688 = vmatpush.msra.mxu0 %v1619
        %1689 = vmatpush.msra.mxu0 %v1617
        %1690 = vmatpush.msra.mxu0 %v1615
        %1691 = vmatpush.msra.mxu0 %v1613
        %1692 = vmatpush.msra.mxu0 %v1611
        %1693 = vmatpush.msra.mxu0 %v1609
        %1694 = vmatpush.msra.mxu0 %v1607
        %1695 = vmatpush.msra.mxu0 %v1605
        %1696 = vmatpush.msra.mxu0 %v1603
        %1697 = vmatpush.msra.mxu0 %v1601
        %1698 = vmatpush.msra.mxu0 %v1599
        %1699 = vmatpush.msra.mxu0 %v1597
        %1700 = vmatpush.msra.mxu0 %v1595
        %1701 = vmatpush.msra.mxu0 %v1593
        %1702 = vmatpush.msra.mxu0 %v1591
        %1703 = vmatmul.f32.gmra.mxu0 %v1624
        %v1704 = vpop.f32.mrf.mxu0
        %v1705 = vadd.f32 %v1685, %v1704
        %1706 = vdwg.mxu0
        %s1707 = scalar_lea.vmem [#allocation2], 40
        %v1708 = vld [vmem:[%s1707] sm:$0xff]
        %v1710 = vsel %vm848, %v1708, 0
        %v1713 = vsel %vm852, %v1665, 0
        %v1716 = vsel %vm852, %v1705, 0
        %1718 = vmatpush.msra.mxu0 0.0
        %1719 = vmatpush.msra.mxu0 0.0
        %1720 = vmatpush.msra.mxu0 0.0
        %1721 = vmatpush.msra.mxu0 0.0
        %1722 = vmatpush.msra.mxu0 0.0
        %1723 = vmatpush.msra.mxu0 0.0
        %1724 = vmatpush.msra.mxu0 0.0
        %1725 = vmatpush.msra.mxu0 0.0
        %1726 = vmatpush.msra.mxu0 0.0
        %1727 = vmatpush.msra.mxu0 0.0
        %1728 = vmatpush.msra.mxu0 0.0
        %1729 = vmatpush.msra.mxu0 0.0
        %1730 = vmatpush.msra.mxu0 0.0
        %1731 = vmatpush.msra.mxu0 0.0
        %1732 = vmatpush.msra.mxu0 0.0
        %1733 = vmatpush.msra.mxu0 %v1713
        %1734 = vmatmul.f32.gmra.mxu0 %v1710
        %v1735 = vpop.f32.mrf.mxu0
        %v1736 = vadd.f32 0.0, %v1735
        %1737 = vdwg.mxu0
        %1738 = vmatpush.msra.mxu0 0.0
        %1739 = vmatpush.msra.mxu0 0.0
        %1740 = vmatpush.msra.mxu0 0.0
        %1741 = vmatpush.msra.mxu0 0.0
        %1742 = vmatpush.msra.mxu0 0.0
        %1743 = vmatpush.msra.mxu0 0.0
        %1744 = vmatpush.msra.mxu0 0.0
        %1745 = vmatpush.msra.mxu0 0.0
        %1746 = vmatpush.msra.mxu0 0.0
        %1747 = vmatpush.msra.mxu0 0.0
        %1748 = vmatpush.msra.mxu0 0.0
        %1749 = vmatpush.msra.mxu0 0.0
        %1750 = vmatpush.msra.mxu0 0.0
        %1751 = vmatpush.msra.mxu0 0.0
        %1752 = vmatpush.msra.mxu0 0.0
        %1753 = vmatpush.msra.mxu0 %v1716
        %1754 = vmatmul.f32.gmra.mxu0 %v1710
        %v1755 = vpop.f32.mrf.mxu0
        %v1756 = vadd.f32 0.0, %v1755
        %1757 = vdwg.mxu0
        %v1758 = vadd.f32 %v1555, %v1736
        %v1759 = vadd.f32 %v1556, %v1756
        %s1760 = scalar_lea.vmem [#allocation7], 3072
        %v1761 = vld [vmem:[%s1760] sm:$0xff]
        %v1762 = vld [vmem:[%s1760 + $0x8] sm:$0xff]
        %v1763 = vld [vmem:[%s1760 + $0x10] sm:$0xff]
        %v1764 = vld [vmem:[%s1760 + $0x18] sm:$0xff]
        %v1765 = vld [vmem:[%s1760 + $0x20] sm:$0xff]
        %v1766 = vld [vmem:[%s1760 + $0x28] sm:$0xff]
        %v1767 = vld [vmem:[%s1760 + $0x30] sm:$0xff]
        %v1768 = vld [vmem:[%s1760 + $0x38] sm:$0xff]
        %v1769 = vld [vmem:[%s1760 + $0x40] sm:$0xff]
        %v1770 = vld [vmem:[%s1760 + $0x48] sm:$0xff]
        %v1771 = vld [vmem:[%s1760 + $0x50] sm:$0xff]
        %v1772 = vld [vmem:[%s1760 + $0x58] sm:$0xff]
        %v1773 = vld [vmem:[%s1760 + $0x60] sm:$0xff]
        %v1774 = vld [vmem:[%s1760 + $0x68] sm:$0xff]
        %v1775 = vld [vmem:[%s1760 + $0x70] sm:$0xff]
        %v1776 = vld [vmem:[%s1760 + $0x78] sm:$0xff]
        %v1777 = vld [vmem:[%s1760 + $0x80] sm:$0xff]
        %v1778 = vld [vmem:[%s1760 + $0x88] sm:$0xff]
        %v1779 = vld [vmem:[%s1760 + $0x90] sm:$0xff]
        %v1780 = vld [vmem:[%s1760 + $0x98] sm:$0xff]
        %v1781 = vld [vmem:[%s1760 + $0xa0] sm:$0xff]
        %v1782 = vld [vmem:[%s1760 + $0xa8] sm:$0xff]
        %v1783 = vld [vmem:[%s1760 + $0xb0] sm:$0xff]
        %v1784 = vld [vmem:[%s1760 + $0xb8] sm:$0xff]
        %v1785 = vld [vmem:[%s1760 + $0xc0] sm:$0xff]
        %v1786 = vld [vmem:[%s1760 + $0xc8] sm:$0xff]
        %v1787 = vld [vmem:[%s1760 + $0xd0] sm:$0xff]
        %v1788 = vld [vmem:[%s1760 + $0xd8] sm:$0xff]
        %v1789 = vld [vmem:[%s1760 + $0xe0] sm:$0xff]
        %v1790 = vld [vmem:[%s1760 + $0xe8] sm:$0xff]
        %v1791 = vld [vmem:[%s1760 + $0xf0] sm:$0xff]
        %v1792 = vld [vmem:[%s1760 + $0xf8] sm:$0xff]
        %v1793 = vld [vmem:[%s1760 + $0x100] sm:$0xff]
        %v1794 = vld [vmem:[%s1760 + $0x108] sm:$0xff]
        %v1795 = vld [vmem:[%s1760 + $0x110] sm:$0xff]
        %v1796 = vld [vmem:[%s1760 + $0x118] sm:$0xff]
        %v1797 = vld [vmem:[%s1760 + $0x120] sm:$0xff]
        %v1798 = vld [vmem:[%s1760 + $0x128] sm:$0xff]
        %v1799 = vld [vmem:[%s1760 + $0x130] sm:$0xff]
        %v1800 = vld [vmem:[%s1760 + $0x138] sm:$0xff]
        %v1801 = vld [vmem:[%s1760 + $0x140] sm:$0xff]
        %v1802 = vld [vmem:[%s1760 + $0x148] sm:$0xff]
        %v1803 = vld [vmem:[%s1760 + $0x150] sm:$0xff]
        %v1804 = vld [vmem:[%s1760 + $0x158] sm:$0xff]
        %v1805 = vld [vmem:[%s1760 + $0x160] sm:$0xff]
        %v1806 = vld [vmem:[%s1760 + $0x168] sm:$0xff]
        %v1807 = vld [vmem:[%s1760 + $0x170] sm:$0xff]
        %v1808 = vld [vmem:[%s1760 + $0x178] sm:$0xff]
        %v1809 = vld [vmem:[%s1760 + $0x180] sm:$0xff]
        %v1810 = vld [vmem:[%s1760 + $0x188] sm:$0xff]
        %v1811 = vld [vmem:[%s1760 + $0x190] sm:$0xff]
        %v1812 = vld [vmem:[%s1760 + $0x198] sm:$0xff]
        %v1813 = vld [vmem:[%s1760 + $0x1a0] sm:$0xff]
        %v1814 = vld [vmem:[%s1760 + $0x1a8] sm:$0xff]
        %v1815 = vld [vmem:[%s1760 + $0x1b0] sm:$0xff]
        %v1816 = vld [vmem:[%s1760 + $0x1b8] sm:$0xff]
        %v1817 = vld [vmem:[%s1760 + $0x1c0] sm:$0xff]
        %v1818 = vld [vmem:[%s1760 + $0x1c8] sm:$0xff]
        %v1819 = vld [vmem:[%s1760 + $0x1d0] sm:$0xff]
        %v1820 = vld [vmem:[%s1760 + $0x1d8] sm:$0xff]
        %v1821 = vld [vmem:[%s1760 + $0x1e0] sm:$0xff]
        %v1822 = vld [vmem:[%s1760 + $0x1e8] sm:$0xff]
        %v1823 = vld [vmem:[%s1760 + $0x1f0] sm:$0xff]
        %v1824 = vld [vmem:[%s1760 + $0x1f8] sm:$0xff]
        %1825 = vst [vmem:[#allocation1] ss:$2 sm:$0xff] %v544
        %v1826 = vld.sshfl [vmem:[#allocation1] sm:$0xff pattern:$0x75316420]
        %v1827 = vld.sshfl [vmem:[#allocation1 + $0x8] sm:$0xff pattern:$0x75316420]
        %1830 = vmatpush.msra.mxu0 %v1791
        %1831 = vmatpush.msra.mxu0 %v1789
        %1832 = vmatpush.msra.mxu0 %v1787
        %1833 = vmatpush.msra.mxu0 %v1785
        %1834 = vmatpush.msra.mxu0 %v1783
        %1835 = vmatpush.msra.mxu0 %v1781
        %1836 = vmatpush.msra.mxu0 %v1779
        %1837 = vmatpush.msra.mxu0 %v1777
        %1838 = vmatpush.msra.mxu0 %v1775
        %1839 = vmatpush.msra.mxu0 %v1773
        %1840 = vmatpush.msra.mxu0 %v1771
        %1841 = vmatpush.msra.mxu0 %v1769
        %1842 = vmatpush.msra.mxu0 %v1767
        %1843 = vmatpush.msra.mxu0 %v1765
        %1844 = vmatpush.msra.mxu0 %v1763
        %1845 = vmatpush.msra.mxu0 %v1761
        %1846 = vmatmul.f32.gmra.mxu0 %v1826
        %v1847 = vpop.f32.mrf.mxu0
        %v1848 = vadd.f32 0.0, %v1847
        %1849 = vdwg.mxu0
        %1850 = vmatpush.msra.mxu0 %v1823
        %1851 = vmatpush.msra.mxu0 %v1821
        %1852 = vmatpush.msra.mxu0 %v1819
        %1853 = vmatpush.msra.mxu0 %v1817
        %1854 = vmatpush.msra.mxu0 %v1815
        %1855 = vmatpush.msra.mxu0 %v1813
        %1856 = vmatpush.msra.mxu0 %v1811
        %1857 = vmatpush.msra.mxu0 %v1809
        %1858 = vmatpush.msra.mxu0 %v1807
        %1859 = vmatpush.msra.mxu0 %v1805
        %1860 = vmatpush.msra.mxu0 %v1803
        %1861 = vmatpush.msra.mxu0 %v1801
        %1862 = vmatpush.msra.mxu0 %v1799
        %1863 = vmatpush.msra.mxu0 %v1797
        %1864 = vmatpush.msra.mxu0 %v1795
        %1865 = vmatpush.msra.mxu0 %v1793
        %1866 = vmatmul.f32.gmra.mxu0 %v1827
        %v1867 = vpop.f32.mrf.mxu0
        %v1868 = vadd.f32 %v1848, %v1867
        %1869 = vdwg.mxu0
        %1870 = vmatpush.msra.mxu0 %v1792
        %1871 = vmatpush.msra.mxu0 %v1790
        %1872 = vmatpush.msra.mxu0 %v1788
        %1873 = vmatpush.msra.mxu0 %v1786
        %1874 = vmatpush.msra.mxu0 %v1784
        %1875 = vmatpush.msra.mxu0 %v1782
        %1876 = vmatpush.msra.mxu0 %v1780
        %1877 = vmatpush.msra.mxu0 %v1778
        %1878 = vmatpush.msra.mxu0 %v1776
        %1879 = vmatpush.msra.mxu0 %v1774
        %1880 = vmatpush.msra.mxu0 %v1772
        %1881 = vmatpush.msra.mxu0 %v1770
        %1882 = vmatpush.msra.mxu0 %v1768
        %1883 = vmatpush.msra.mxu0 %v1766
        %1884 = vmatpush.msra.mxu0 %v1764
        %1885 = vmatpush.msra.mxu0 %v1762
        %1886 = vmatmul.f32.gmra.mxu0 %v1826
        %v1887 = vpop.f32.mrf.mxu0
        %v1888 = vadd.f32 0.0, %v1887
        %1889 = vdwg.mxu0
        %1890 = vmatpush.msra.mxu0 %v1824
        %1891 = vmatpush.msra.mxu0 %v1822
        %1892 = vmatpush.msra.mxu0 %v1820
        %1893 = vmatpush.msra.mxu0 %v1818
        %1894 = vmatpush.msra.mxu0 %v1816
        %1895 = vmatpush.msra.mxu0 %v1814
        %1896 = vmatpush.msra.mxu0 %v1812
        %1897 = vmatpush.msra.mxu0 %v1810
        %1898 = vmatpush.msra.mxu0 %v1808
        %1899 = vmatpush.msra.mxu0 %v1806
        %1900 = vmatpush.msra.mxu0 %v1804
        %1901 = vmatpush.msra.mxu0 %v1802
        %1902 = vmatpush.msra.mxu0 %v1800
        %1903 = vmatpush.msra.mxu0 %v1798
        %1904 = vmatpush.msra.mxu0 %v1796
        %1905 = vmatpush.msra.mxu0 %v1794
        %1906 = vmatmul.f32.gmra.mxu0 %v1827
        %v1907 = vpop.f32.mrf.mxu0
        %v1908 = vadd.f32 %v1888, %v1907
        %1909 = vdwg.mxu0
        %s1910 = scalar_lea.vmem [#allocation2], 48
        %v1911 = vld [vmem:[%s1910] sm:$0xff]
        %v1913 = vsel %vm848, %v1911, 0
        %v1916 = vsel %vm852, %v1868, 0
        %v1919 = vsel %vm852, %v1908, 0
        %1921 = vmatpush.msra.mxu0 0.0
        %1922 = vmatpush.msra.mxu0 0.0
        %1923 = vmatpush.msra.mxu0 0.0
        %1924 = vmatpush.msra.mxu0 0.0
        %1925 = vmatpush.msra.mxu0 0.0
        %1926 = vmatpush.msra.mxu0 0.0
        %1927 = vmatpush.msra.mxu0 0.0
        %1928 = vmatpush.msra.mxu0 0.0
        %1929 = vmatpush.msra.mxu0 0.0
        %1930 = vmatpush.msra.mxu0 0.0
        %1931 = vmatpush.msra.mxu0 0.0
        %1932 = vmatpush.msra.mxu0 0.0
        %1933 = vmatpush.msra.mxu0 0.0
        %1934 = vmatpush.msra.mxu0 0.0
        %1935 = vmatpush.msra.mxu0 0.0
        %1936 = vmatpush.msra.mxu0 %v1916
        %1937 = vmatmul.f32.gmra.mxu0 %v1913
        %v1938 = vpop.f32.mrf.mxu0
        %v1939 = vadd.f32 0.0, %v1938
        %1940 = vdwg.mxu0
        %1941 = vmatpush.msra.mxu0 0.0
        %1942 = vmatpush.msra.mxu0 0.0
        %1943 = vmatpush.msra.mxu0 0.0
        %1944 = vmatpush.msra.mxu0 0.0
        %1945 = vmatpush.msra.mxu0 0.0
        %1946 = vmatpush.msra.mxu0 0.0
        %1947 = vmatpush.msra.mxu0 0.0
        %1948 = vmatpush.msra.mxu0 0.0
        %1949 = vmatpush.msra.mxu0 0.0
        %1950 = vmatpush.msra.mxu0 0.0
        %1951 = vmatpush.msra.mxu0 0.0
        %1952 = vmatpush.msra.mxu0 0.0
        %1953 = vmatpush.msra.mxu0 0.0
        %1954 = vmatpush.msra.mxu0 0.0
        %1955 = vmatpush.msra.mxu0 0.0
        %1956 = vmatpush.msra.mxu0 %v1919
        %1957 = vmatmul.f32.gmra.mxu0 %v1913
        %v1958 = vpop.f32.mrf.mxu0
        %v1959 = vadd.f32 0.0, %v1958
        %1960 = vdwg.mxu0
        %v1961 = vadd.f32 %v1758, %v1939
        %v1962 = vadd.f32 %v1759, %v1959
        %s1963 = scalar_lea.vmem [#allocation7], 3584
        %v1964 = vld [vmem:[%s1963] sm:$0xff]
        %v1965 = vld [vmem:[%s1963 + $0x8] sm:$0xff]
        %v1966 = vld [vmem:[%s1963 + $0x10] sm:$0xff]
        %v1967 = vld [vmem:[%s1963 + $0x18] sm:$0xff]
        %v1968 = vld [vmem:[%s1963 + $0x20] sm:$0xff]
        %v1969 = vld [vmem:[%s1963 + $0x28] sm:$0xff]
        %v1970 = vld [vmem:[%s1963 + $0x30] sm:$0xff]
        %v1971 = vld [vmem:[%s1963 + $0x38] sm:$0xff]
        %v1972 = vld [vmem:[%s1963 + $0x40] sm:$0xff]
        %v1973 = vld [vmem:[%s1963 + $0x48] sm:$0xff]
        %v1974 = vld [vmem:[%s1963 + $0x50] sm:$0xff]
        %v1975 = vld [vmem:[%s1963 + $0x58] sm:$0xff]
        %v1976 = vld [vmem:[%s1963 + $0x60] sm:$0xff]
        %v1977 = vld [vmem:[%s1963 + $0x68] sm:$0xff]
        %v1978 = vld [vmem:[%s1963 + $0x70] sm:$0xff]
        %v1979 = vld [vmem:[%s1963 + $0x78] sm:$0xff]
        %v1980 = vld [vmem:[%s1963 + $0x80] sm:$0xff]
        %v1981 = vld [vmem:[%s1963 + $0x88] sm:$0xff]
        %v1982 = vld [vmem:[%s1963 + $0x90] sm:$0xff]
        %v1983 = vld [vmem:[%s1963 + $0x98] sm:$0xff]
        %v1984 = vld [vmem:[%s1963 + $0xa0] sm:$0xff]
        %v1985 = vld [vmem:[%s1963 + $0xa8] sm:$0xff]
        %v1986 = vld [vmem:[%s1963 + $0xb0] sm:$0xff]
        %v1987 = vld [vmem:[%s1963 + $0xb8] sm:$0xff]
        %v1988 = vld [vmem:[%s1963 + $0xc0] sm:$0xff]
        %v1989 = vld [vmem:[%s1963 + $0xc8] sm:$0xff]
        %v1990 = vld [vmem:[%s1963 + $0xd0] sm:$0xff]
        %v1991 = vld [vmem:[%s1963 + $0xd8] sm:$0xff]
        %v1992 = vld [vmem:[%s1963 + $0xe0] sm:$0xff]
        %v1993 = vld [vmem:[%s1963 + $0xe8] sm:$0xff]
        %v1994 = vld [vmem:[%s1963 + $0xf0] sm:$0xff]
        %v1995 = vld [vmem:[%s1963 + $0xf8] sm:$0xff]
        %v1996 = vld [vmem:[%s1963 + $0x100] sm:$0xff]
        %v1997 = vld [vmem:[%s1963 + $0x108] sm:$0xff]
        %v1998 = vld [vmem:[%s1963 + $0x110] sm:$0xff]
        %v1999 = vld [vmem:[%s1963 + $0x118] sm:$0xff]
        %v2000 = vld [vmem:[%s1963 + $0x120] sm:$0xff]
        %v2001 = vld [vmem:[%s1963 + $0x128] sm:$0xff]
        %v2002 = vld [vmem:[%s1963 + $0x130] sm:$0xff]
        %v2003 = vld [vmem:[%s1963 + $0x138] sm:$0xff]
        %v2004 = vld [vmem:[%s1963 + $0x140] sm:$0xff]
        %v2005 = vld [vmem:[%s1963 + $0x148] sm:$0xff]
        %v2006 = vld [vmem:[%s1963 + $0x150] sm:$0xff]
        %v2007 = vld [vmem:[%s1963 + $0x158] sm:$0xff]
        %v2008 = vld [vmem:[%s1963 + $0x160] sm:$0xff]
        %v2009 = vld [vmem:[%s1963 + $0x168] sm:$0xff]
        %v2010 = vld [vmem:[%s1963 + $0x170] sm:$0xff]
        %v2011 = vld [vmem:[%s1963 + $0x178] sm:$0xff]
        %v2012 = vld [vmem:[%s1963 + $0x180] sm:$0xff]
        %v2013 = vld [vmem:[%s1963 + $0x188] sm:$0xff]
        %v2014 = vld [vmem:[%s1963 + $0x190] sm:$0xff]
        %v2015 = vld [vmem:[%s1963 + $0x198] sm:$0xff]
        %v2016 = vld [vmem:[%s1963 + $0x1a0] sm:$0xff]
        %v2017 = vld [vmem:[%s1963 + $0x1a8] sm:$0xff]
        %v2018 = vld [vmem:[%s1963 + $0x1b0] sm:$0xff]
        %v2019 = vld [vmem:[%s1963 + $0x1b8] sm:$0xff]
        %v2020 = vld [vmem:[%s1963 + $0x1c0] sm:$0xff]
        %v2021 = vld [vmem:[%s1963 + $0x1c8] sm:$0xff]
        %v2022 = vld [vmem:[%s1963 + $0x1d0] sm:$0xff]
        %v2023 = vld [vmem:[%s1963 + $0x1d8] sm:$0xff]
        %v2024 = vld [vmem:[%s1963 + $0x1e0] sm:$0xff]
        %v2025 = vld [vmem:[%s1963 + $0x1e8] sm:$0xff]
        %v2026 = vld [vmem:[%s1963 + $0x1f0] sm:$0xff]
        %v2027 = vld [vmem:[%s1963 + $0x1f8] sm:$0xff]
        %2028 = vst [vmem:[#allocation1] ss:$2 sm:$0xff] %v544
        %v2029 = vld.sshfl [vmem:[#allocation1] sm:$0xff pattern:$0x75316420]
        %v2030 = vld.sshfl [vmem:[#allocation1 + $0x8] sm:$0xff pattern:$0x75316420]
        %2033 = vmatpush.msra.mxu0 %v1994
        %2034 = vmatpush.msra.mxu0 %v1992
        %2035 = vmatpush.msra.mxu0 %v1990
        %2036 = vmatpush.msra.mxu0 %v1988
        %2037 = vmatpush.msra.mxu0 %v1986
        %2038 = vmatpush.msra.mxu0 %v1984
        %2039 = vmatpush.msra.mxu0 %v1982
        %2040 = vmatpush.msra.mxu0 %v1980
        %2041 = vmatpush.msra.mxu0 %v1978
        %2042 = vmatpush.msra.mxu0 %v1976
        %2043 = vmatpush.msra.mxu0 %v1974
        %2044 = vmatpush.msra.mxu0 %v1972
        %2045 = vmatpush.msra.mxu0 %v1970
        %2046 = vmatpush.msra.mxu0 %v1968
        %2047 = vmatpush.msra.mxu0 %v1966
        %2048 = vmatpush.msra.mxu0 %v1964
        %2049 = vmatmul.f32.gmra.mxu0 %v2029
        %v2050 = vpop.f32.mrf.mxu0
        %v2051 = vadd.f32 0.0, %v2050
        %2052 = vdwg.mxu0
        %2053 = vmatpush.msra.mxu0 %v2026
        %2054 = vmatpush.msra.mxu0 %v2024
        %2055 = vmatpush.msra.mxu0 %v2022
        %2056 = vmatpush.msra.mxu0 %v2020
        %2057 = vmatpush.msra.mxu0 %v2018
        %2058 = vmatpush.msra.mxu0 %v2016
        %2059 = vmatpush.msra.mxu0 %v2014
        %2060 = vmatpush.msra.mxu0 %v2012
        %2061 = vmatpush.msra.mxu0 %v2010
        %2062 = vmatpush.msra.mxu0 %v2008
        %2063 = vmatpush.msra.mxu0 %v2006
        %2064 = vmatpush.msra.mxu0 %v2004
        %2065 = vmatpush.msra.mxu0 %v2002
        %2066 = vmatpush.msra.mxu0 %v2000
        %2067 = vmatpush.msra.mxu0 %v1998
        %2068 = vmatpush.msra.mxu0 %v1996
        %2069 = vmatmul.f32.gmra.mxu0 %v2030
        %v2070 = vpop.f32.mrf.mxu0
        %v2071 = vadd.f32 %v2051, %v2070
        %2072 = vdwg.mxu0
        %2073 = vmatpush.msra.mxu0 %v1995
        %2074 = vmatpush.msra.mxu0 %v1993
        %2075 = vmatpush.msra.mxu0 %v1991
        %2076 = vmatpush.msra.mxu0 %v1989
        %2077 = vmatpush.msra.mxu0 %v1987
        %2078 = vmatpush.msra.mxu0 %v1985
        %2079 = vmatpush.msra.mxu0 %v1983
        %2080 = vmatpush.msra.mxu0 %v1981
        %2081 = vmatpush.msra.mxu0 %v1979
        %2082 = vmatpush.msra.mxu0 %v1977
        %2083 = vmatpush.msra.mxu0 %v1975
        %2084 = vmatpush.msra.mxu0 %v1973
        %2085 = vmatpush.msra.mxu0 %v1971
        %2086 = vmatpush.msra.mxu0 %v1969
        %2087 = vmatpush.msra.mxu0 %v1967
        %2088 = vmatpush.msra.mxu0 %v1965
        %2089 = vmatmul.f32.gmra.mxu0 %v2029
        %v2090 = vpop.f32.mrf.mxu0
        %v2091 = vadd.f32 0.0, %v2090
        %2092 = vdwg.mxu0
        %2093 = vmatpush.msra.mxu0 %v2027
        %2094 = vmatpush.msra.mxu0 %v2025
        %2095 = vmatpush.msra.mxu0 %v2023
        %2096 = vmatpush.msra.mxu0 %v2021
        %2097 = vmatpush.msra.mxu0 %v2019
        %2098 = vmatpush.msra.mxu0 %v2017
        %2099 = vmatpush.msra.mxu0 %v2015
        %2100 = vmatpush.msra.mxu0 %v2013
        %2101 = vmatpush.msra.mxu0 %v2011
        %2102 = vmatpush.msra.mxu0 %v2009
        %2103 = vmatpush.msra.mxu0 %v2007
        %2104 = vmatpush.msra.mxu0 %v2005
        %2105 = vmatpush.msra.mxu0 %v2003
        %2106 = vmatpush.msra.mxu0 %v2001
        %2107 = vmatpush.msra.mxu0 %v1999
        %2108 = vmatpush.msra.mxu0 %v1997
        %2109 = vmatmul.f32.gmra.mxu0 %v2030
        %v2110 = vpop.f32.mrf.mxu0
        %v2111 = vadd.f32 %v2091, %v2110
        %2112 = vdwg.mxu0
        %s2113 = scalar_lea.vmem [#allocation2], 56
        %v2114 = vld [vmem:[%s2113] sm:$0xff]
        %v2116 = vsel %vm848, %v2114, 0
        %v2119 = vsel %vm852, %v2071, 0
        %v2122 = vsel %vm852, %v2111, 0
        %2124 = vmatpush.msra.mxu0 0.0
        %2125 = vmatpush.msra.mxu0 0.0
        %2126 = vmatpush.msra.mxu0 0.0
        %2127 = vmatpush.msra.mxu0 0.0
        %2128 = vmatpush.msra.mxu0 0.0
        %2129 = vmatpush.msra.mxu0 0.0
        %2130 = vmatpush.msra.mxu0 0.0
        %2131 = vmatpush.msra.mxu0 0.0
        %2132 = vmatpush.msra.mxu0 0.0
        %2133 = vmatpush.msra.mxu0 0.0
        %2134 = vmatpush.msra.mxu0 0.0
        %2135 = vmatpush.msra.mxu0 0.0
        %2136 = vmatpush.msra.mxu0 0.0
        %2137 = vmatpush.msra.mxu0 0.0
        %2138 = vmatpush.msra.mxu0 0.0
        %2139 = vmatpush.msra.mxu0 %v2119
        %2140 = vmatmul.f32.gmra.mxu0 %v2116
        %v2141 = vpop.f32.mrf.mxu0
        %v2142 = vadd.f32 0.0, %v2141
        %2143 = vdwg.mxu0
        %2144 = vmatpush.msra.mxu0 0.0
        %2145 = vmatpush.msra.mxu0 0.0
        %2146 = vmatpush.msra.mxu0 0.0
        %2147 = vmatpush.msra.mxu0 0.0
        %2148 = vmatpush.msra.mxu0 0.0
        %2149 = vmatpush.msra.mxu0 0.0
        %2150 = vmatpush.msra.mxu0 0.0
        %2151 = vmatpush.msra.mxu0 0.0
        %2152 = vmatpush.msra.mxu0 0.0
        %2153 = vmatpush.msra.mxu0 0.0
        %2154 = vmatpush.msra.mxu0 0.0
        %2155 = vmatpush.msra.mxu0 0.0
        %2156 = vmatpush.msra.mxu0 0.0
        %2157 = vmatpush.msra.mxu0 0.0
        %2158 = vmatpush.msra.mxu0 0.0
        %2159 = vmatpush.msra.mxu0 %v2122
        %2160 = vmatmul.f32.gmra.mxu0 %v2116
        %v2161 = vpop.f32.mrf.mxu0
        %v2162 = vadd.f32 0.0, %v2161
        %2163 = vdwg.mxu0
        %v2164 = vadd.f32 %v1961, %v2142
        %v2165 = vadd.f32 %v1962, %v2162
        %s2166 = scalar_lea.vmem [#allocation7], 4096
        %v2167 = vld [vmem:[%s2166] sm:$0xff]
        %v2168 = vld [vmem:[%s2166 + $0x8] sm:$0xff]
        %v2169 = vld [vmem:[%s2166 + $0x10] sm:$0xff]
        %v2170 = vld [vmem:[%s2166 + $0x18] sm:$0xff]
        %v2171 = vld [vmem:[%s2166 + $0x20] sm:$0xff]
        %v2172 = vld [vmem:[%s2166 + $0x28] sm:$0xff]
        %v2173 = vld [vmem:[%s2166 + $0x30] sm:$0xff]
        %v2174 = vld [vmem:[%s2166 + $0x38] sm:$0xff]
        %v2175 = vld [vmem:[%s2166 + $0x40] sm:$0xff]
        %v2176 = vld [vmem:[%s2166 + $0x48] sm:$0xff]
        %v2177 = vld [vmem:[%s2166 + $0x50] sm:$0xff]
        %v2178 = vld [vmem:[%s2166 + $0x58] sm:$0xff]
        %v2179 = vld [vmem:[%s2166 + $0x60] sm:$0xff]
        %v2180 = vld [vmem:[%s2166 + $0x68] sm:$0xff]
        %v2181 = vld [vmem:[%s2166 + $0x70] sm:$0xff]
        %v2182 = vld [vmem:[%s2166 + $0x78] sm:$0xff]
        %v2183 = vld [vmem:[%s2166 + $0x80] sm:$0xff]
        %v2184 = vld [vmem:[%s2166 + $0x88] sm:$0xff]
        %v2185 = vld [vmem:[%s2166 + $0x90] sm:$0xff]
        %v2186 = vld [vmem:[%s2166 + $0x98] sm:$0xff]
        %v2187 = vld [vmem:[%s2166 + $0xa0] sm:$0xff]
        %v2188 = vld [vmem:[%s2166 + $0xa8] sm:$0xff]
        %v2189 = vld [vmem:[%s2166 + $0xb0] sm:$0xff]
        %v2190 = vld [vmem:[%s2166 + $0xb8] sm:$0xff]
        %v2191 = vld [vmem:[%s2166 + $0xc0] sm:$0xff]
        %v2192 = vld [vmem:[%s2166 + $0xc8] sm:$0xff]
        %v2193 = vld [vmem:[%s2166 + $0xd0] sm:$0xff]
        %v2194 = vld [vmem:[%s2166 + $0xd8] sm:$0xff]
        %v2195 = vld [vmem:[%s2166 + $0xe0] sm:$0xff]
        %v2196 = vld [vmem:[%s2166 + $0xe8] sm:$0xff]
        %v2197 = vld [vmem:[%s2166 + $0xf0] sm:$0xff]
        %v2198 = vld [vmem:[%s2166 + $0xf8] sm:$0xff]
        %v2199 = vld [vmem:[%s2166 + $0x100] sm:$0xff]
        %v2200 = vld [vmem:[%s2166 + $0x108] sm:$0xff]
        %v2201 = vld [vmem:[%s2166 + $0x110] sm:$0xff]
        %v2202 = vld [vmem:[%s2166 + $0x118] sm:$0xff]
        %v2203 = vld [vmem:[%s2166 + $0x120] sm:$0xff]
        %v2204 = vld [vmem:[%s2166 + $0x128] sm:$0xff]
        %v2205 = vld [vmem:[%s2166 + $0x130] sm:$0xff]
        %v2206 = vld [vmem:[%s2166 + $0x138] sm:$0xff]
        %v2207 = vld [vmem:[%s2166 + $0x140] sm:$0xff]
        %v2208 = vld [vmem:[%s2166 + $0x148] sm:$0xff]
        %v2209 = vld [vmem:[%s2166 + $0x150] sm:$0xff]
        %v2210 = vld [vmem:[%s2166 + $0x158] sm:$0xff]
        %v2211 = vld [vmem:[%s2166 + $0x160] sm:$0xff]
        %v2212 = vld [vmem:[%s2166 + $0x168] sm:$0xff]
        %v2213 = vld [vmem:[%s2166 + $0x170] sm:$0xff]
        %v2214 = vld [vmem:[%s2166 + $0x178] sm:$0xff]
        %v2215 = vld [vmem:[%s2166 + $0x180] sm:$0xff]
        %v2216 = vld [vmem:[%s2166 + $0x188] sm:$0xff]
        %v2217 = vld [vmem:[%s2166 + $0x190] sm:$0xff]
        %v2218 = vld [vmem:[%s2166 + $0x198] sm:$0xff]
        %v2219 = vld [vmem:[%s2166 + $0x1a0] sm:$0xff]
        %v2220 = vld [vmem:[%s2166 + $0x1a8] sm:$0xff]
        %v2221 = vld [vmem:[%s2166 + $0x1b0] sm:$0xff]
        %v2222 = vld [vmem:[%s2166 + $0x1b8] sm:$0xff]
        %v2223 = vld [vmem:[%s2166 + $0x1c0] sm:$0xff]
        %v2224 = vld [vmem:[%s2166 + $0x1c8] sm:$0xff]
        %v2225 = vld [vmem:[%s2166 + $0x1d0] sm:$0xff]
        %v2226 = vld [vmem:[%s2166 + $0x1d8] sm:$0xff]
        %v2227 = vld [vmem:[%s2166 + $0x1e0] sm:$0xff]
        %v2228 = vld [vmem:[%s2166 + $0x1e8] sm:$0xff]
        %v2229 = vld [vmem:[%s2166 + $0x1f0] sm:$0xff]
        %v2230 = vld [vmem:[%s2166 + $0x1f8] sm:$0xff]
        %2231 = vst [vmem:[#allocation1] ss:$2 sm:$0xff] %v544
        %v2232 = vld.sshfl [vmem:[#allocation1] sm:$0xff pattern:$0x75316420]
        %v2233 = vld.sshfl [vmem:[#allocation1 + $0x8] sm:$0xff pattern:$0x75316420]
        %2236 = vmatpush.msra.mxu0 %v2197
        %2237 = vmatpush.msra.mxu0 %v2195
        %2238 = vmatpush.msra.mxu0 %v2193
        %2239 = vmatpush.msra.mxu0 %v2191
        %2240 = vmatpush.msra.mxu0 %v2189
        %2241 = vmatpush.msra.mxu0 %v2187
        %2242 = vmatpush.msra.mxu0 %v2185
        %2243 = vmatpush.msra.mxu0 %v2183
        %2244 = vmatpush.msra.mxu0 %v2181
        %2245 = vmatpush.msra.mxu0 %v2179
        %2246 = vmatpush.msra.mxu0 %v2177
        %2247 = vmatpush.msra.mxu0 %v2175
        %2248 = vmatpush.msra.mxu0 %v2173
        %2249 = vmatpush.msra.mxu0 %v2171
        %2250 = vmatpush.msra.mxu0 %v2169
        %2251 = vmatpush.msra.mxu0 %v2167
        %2252 = vmatmul.f32.gmra.mxu0 %v2232
        %v2253 = vpop.f32.mrf.mxu0
        %v2254 = vadd.f32 0.0, %v2253
        %2255 = vdwg.mxu0
        %2256 = vmatpush.msra.mxu0 %v2229
        %2257 = vmatpush.msra.mxu0 %v2227
        %2258 = vmatpush.msra.mxu0 %v2225
        %2259 = vmatpush.msra.mxu0 %v2223
        %2260 = vmatpush.msra.mxu0 %v2221
        %2261 = vmatpush.msra.mxu0 %v2219
        %2262 = vmatpush.msra.mxu0 %v2217
        %2263 = vmatpush.msra.mxu0 %v2215
        %2264 = vmatpush.msra.mxu0 %v2213
        %2265 = vmatpush.msra.mxu0 %v2211
        %2266 = vmatpush.msra.mxu0 %v2209
        %2267 = vmatpush.msra.mxu0 %v2207
        %2268 = vmatpush.msra.mxu0 %v2205
        %2269 = vmatpush.msra.mxu0 %v2203
        %2270 = vmatpush.msra.mxu0 %v2201
        %2271 = vmatpush.msra.mxu0 %v2199
        %2272 = vmatmul.f32.gmra.mxu0 %v2233
        %v2273 = vpop.f32.mrf.mxu0
        %v2274 = vadd.f32 %v2254, %v2273
        %2275 = vdwg.mxu0
        %2276 = vmatpush.msra.mxu0 %v2198
        %2277 = vmatpush.msra.mxu0 %v2196
        %2278 = vmatpush.msra.mxu0 %v2194
        %2279 = vmatpush.msra.mxu0 %v2192
        %2280 = vmatpush.msra.mxu0 %v2190
        %2281 = vmatpush.msra.mxu0 %v2188
        %2282 = vmatpush.msra.mxu0 %v2186
        %2283 = vmatpush.msra.mxu0 %v2184
        %2284 = vmatpush.msra.mxu0 %v2182
        %2285 = vmatpush.msra.mxu0 %v2180
        %2286 = vmatpush.msra.mxu0 %v2178
        %2287 = vmatpush.msra.mxu0 %v2176
        %2288 = vmatpush.msra.mxu0 %v2174
        %2289 = vmatpush.msra.mxu0 %v2172
        %2290 = vmatpush.msra.mxu0 %v2170
        %2291 = vmatpush.msra.mxu0 %v2168
        %2292 = vmatmul.f32.gmra.mxu0 %v2232
        %v2293 = vpop.f32.mrf.mxu0
        %v2294 = vadd.f32 0.0, %v2293
        %2295 = vdwg.mxu0
        %2296 = vmatpush.msra.mxu0 %v2230
        %2297 = vmatpush.msra.mxu0 %v2228
        %2298 = vmatpush.msra.mxu0 %v2226
        %2299 = vmatpush.msra.mxu0 %v2224
        %2300 = vmatpush.msra.mxu0 %v2222
        %2301 = vmatpush.msra.mxu0 %v2220
        %2302 = vmatpush.msra.mxu0 %v2218
        %2303 = vmatpush.msra.mxu0 %v2216
        %2304 = vmatpush.msra.mxu0 %v2214
        %2305 = vmatpush.msra.mxu0 %v2212
        %2306 = vmatpush.msra.mxu0 %v2210
        %2307 = vmatpush.msra.mxu0 %v2208
        %2308 = vmatpush.msra.mxu0 %v2206
        %2309 = vmatpush.msra.mxu0 %v2204
        %2310 = vmatpush.msra.mxu0 %v2202
        %2311 = vmatpush.msra.mxu0 %v2200
        %2312 = vmatmul.f32.gmra.mxu0 %v2233
        %v2313 = vpop.f32.mrf.mxu0
        %v2314 = vadd.f32 %v2294, %v2313
        %2315 = vdwg.mxu0
        %s2316 = scalar_lea.vmem [#allocation2], 64
        %v2317 = vld [vmem:[%s2316] sm:$0xff]
        %v2319 = vsel %vm848, %v2317, 0
        %v2322 = vsel %vm852, %v2274, 0
        %v2325 = vsel %vm852, %v2314, 0
        %2327 = vmatpush.msra.mxu0 0.0
        %2328 = vmatpush.msra.mxu0 0.0
        %2329 = vmatpush.msra.mxu0 0.0
        %2330 = vmatpush.msra.mxu0 0.0
        %2331 = vmatpush.msra.mxu0 0.0
        %2332 = vmatpush.msra.mxu0 0.0
        %2333 = vmatpush.msra.mxu0 0.0
        %2334 = vmatpush.msra.mxu0 0.0
        %2335 = vmatpush.msra.mxu0 0.0
        %2336 = vmatpush.msra.mxu0 0.0
        %2337 = vmatpush.msra.mxu0 0.0
        %2338 = vmatpush.msra.mxu0 0.0
        %2339 = vmatpush.msra.mxu0 0.0
        %2340 = vmatpush.msra.mxu0 0.0
        %2341 = vmatpush.msra.mxu0 0.0
        %2342 = vmatpush.msra.mxu0 %v2322
        %2343 = vmatmul.f32.gmra.mxu0 %v2319
        %v2344 = vpop.f32.mrf.mxu0
        %v2345 = vadd.f32 0.0, %v2344
        %2346 = vdwg.mxu0
        %2347 = vmatpush.msra.mxu0 0.0
        %2348 = vmatpush.msra.mxu0 0.0
        %2349 = vmatpush.msra.mxu0 0.0
        %2350 = vmatpush.msra.mxu0 0.0
        %2351 = vmatpush.msra.mxu0 0.0
        %2352 = vmatpush.msra.mxu0 0.0
        %2353 = vmatpush.msra.mxu0 0.0
        %2354 = vmatpush.msra.mxu0 0.0
        %2355 = vmatpush.msra.mxu0 0.0
        %2356 = vmatpush.msra.mxu0 0.0
        %2357 = vmatpush.msra.mxu0 0.0
        %2358 = vmatpush.msra.mxu0 0.0
        %2359 = vmatpush.msra.mxu0 0.0
        %2360 = vmatpush.msra.mxu0 0.0
        %2361 = vmatpush.msra.mxu0 0.0
        %2362 = vmatpush.msra.mxu0 %v2325
        %2363 = vmatmul.f32.gmra.mxu0 %v2319
        %v2364 = vpop.f32.mrf.mxu0
        %v2365 = vadd.f32 0.0, %v2364
        %2366 = vdwg.mxu0
        %v2367 = vadd.f32 %v2164, %v2345
        %v2368 = vadd.f32 %v2165, %v2365
        %v2369 = vld [vmem:[#allocation5] sm:$0xff]
        %2371 = vset.pattern.permute.xlu0 0
        %2372 = vperm.xlu0 %2371, %v2369
        %v2373 = vpop.permute.xlu0 %2372
        %v2375 = vadd.f32 %v2367, %v2373
        %v2376 = vadd.f32 %v2368, %v2373
        %v2377 = vmax.f32 %v2375, 0.0
        %v2378 = vmax.f32 %v2376, 0.0
        %v2379 = vld [vmem:[#allocation11] sm:$0xff]
        %v2380 = vld [vmem:[#allocation11 + $0x8] sm:$0xff]
        %v2381 = vld [vmem:[#allocation11 + $0x10] sm:$0xff]
        %v2382 = vld [vmem:[#allocation11 + $0x18] sm:$0xff]
        %v2383 = vld [vmem:[#allocation11 + $0x20] sm:$0xff]
        %v2384 = vld [vmem:[#allocation11 + $0x28] sm:$0xff]
        %v2385 = vld [vmem:[#allocation11 + $0x30] sm:$0xff]
        %v2386 = vld [vmem:[#allocation11 + $0x38] sm:$0xff]
        %v2387 = vld [vmem:[#allocation11 + $0x40] sm:$0xff]
        %v2388 = vld [vmem:[#allocation11 + $0x48] sm:$0xff]
        %v2389 = vld [vmem:[#allocation11 + $0x50] sm:$0xff]
        %v2390 = vld [vmem:[#allocation11 + $0x58] sm:$0xff]
        %v2391 = vld [vmem:[#allocation11 + $0x60] sm:$0xff]
        %v2392 = vld [vmem:[#allocation11 + $0x68] sm:$0xff]
        %v2393 = vld [vmem:[#allocation11 + $0x70] sm:$0xff]
        %v2394 = vld [vmem:[#allocation11 + $0x78] sm:$0xff]
        %v2395 = vld [vmem:[#allocation11 + $0x80] sm:$0xff]
        %v2396 = vld [vmem:[#allocation11 + $0x88] sm:$0xff]
        %v2397 = vld [vmem:[#allocation11 + $0x90] sm:$0xff]
        %v2398 = vld [vmem:[#allocation11 + $0x98] sm:$0xff]
        %v2399 = vld [vmem:[#allocation11 + $0xa0] sm:$0xff]
        %v2400 = vld [vmem:[#allocation11 + $0xa8] sm:$0xff]
        %v2401 = vld [vmem:[#allocation11 + $0xb0] sm:$0xff]
        %v2402 = vld [vmem:[#allocation11 + $0xb8] sm:$0xff]
        %v2403 = vld [vmem:[#allocation11 + $0xc0] sm:$0xf]
        %vm2404 = vcmask 556032
        %v2406 = vsel %vm2404, %v2378, 0
        %v2409 = vsel %vm852, %v2403, 0
        %2411 = vmatpush.msra.mxu0 %v2394
        %2412 = vmatpush.msra.mxu0 %v2393
        %2413 = vmatpush.msra.mxu0 %v2392
        %2414 = vmatpush.msra.mxu0 %v2391
        %2415 = vmatpush.msra.mxu0 %v2390
        %2416 = vmatpush.msra.mxu0 %v2389
        %2417 = vmatpush.msra.mxu0 %v2388
        %2418 = vmatpush.msra.mxu0 %v2387
        %2419 = vmatpush.msra.mxu0 %v2386
        %2420 = vmatpush.msra.mxu0 %v2385
        %2421 = vmatpush.msra.mxu0 %v2384
        %2422 = vmatpush.msra.mxu0 %v2383
        %2423 = vmatpush.msra.mxu0 %v2382
        %2424 = vmatpush.msra.mxu0 %v2381
        %2425 = vmatpush.msra.mxu0 %v2380
        %2426 = vmatpush.msra.mxu0 %v2379
        %2427 = vmatmul.f32.gmra.mxu0 %v2377
        %v2428 = vpop.f32.mrf.mxu0
        %v2429 = vadd.f32 0.0, %v2428
        %2430 = vdwg.mxu0
        %2431 = vmatpush.msra.mxu0 0.0
        %2432 = vmatpush.msra.mxu0 0.0
        %2433 = vmatpush.msra.mxu0 0.0
        %2434 = vmatpush.msra.mxu0 0.0
        %2435 = vmatpush.msra.mxu0 0.0
        %2436 = vmatpush.msra.mxu0 0.0
        %2437 = vmatpush.msra.mxu0 0.0
        %2438 = vmatpush.msra.mxu0 %v2409
        %2439 = vmatpush.msra.mxu0 %v2402
        %2440 = vmatpush.msra.mxu0 %v2401
        %2441 = vmatpush.msra.mxu0 %v2400
        %2442 = vmatpush.msra.mxu0 %v2399
        %2443 = vmatpush.msra.mxu0 %v2398
        %2444 = vmatpush.msra.mxu0 %v2397
        %2445 = vmatpush.msra.mxu0 %v2396
        %2446 = vmatpush.msra.mxu0 %v2395
        %2447 = vmatmul.f32.gmra.mxu0 %v2406
        %v2448 = vpop.f32.mrf.mxu0
        %v2449 = vadd.f32 %v2429, %v2448
        %2450 = vdwg.mxu0
        %v2451 = vld [vmem:[#allocation8] sm:$0xff]
        %v2452 = vld [vmem:[#allocation8 + $0x8] sm:$0xff]
        %s2453 = scalar_lea.vmem [#allocation11], 200
        %v2454 = vld [vmem:[%s2453] sm:$0xff]
        %v2455 = vld [vmem:[%s2453 + $0x8] sm:$0xff]
        %v2456 = vld [vmem:[%s2453 + $0x10] sm:$0xff]
        %v2457 = vld [vmem:[%s2453 + $0x18] sm:$0xff]
        %v2458 = vld [vmem:[%s2453 + $0x20] sm:$0xff]
        %v2459 = vld [vmem:[%s2453 + $0x28] sm:$0xff]
        %v2460 = vld [vmem:[%s2453 + $0x30] sm:$0xff]
        %v2461 = vld [vmem:[%s2453 + $0x38] sm:$0xff]
        %v2462 = vld [vmem:[%s2453 + $0x40] sm:$0xff]
        %v2463 = vld [vmem:[%s2453 + $0x48] sm:$0xff]
        %v2464 = vld [vmem:[%s2453 + $0x50] sm:$0xff]
        %v2465 = vld [vmem:[%s2453 + $0x58] sm:$0xff]
        %v2466 = vld [vmem:[%s2453 + $0x60] sm:$0xff]
        %v2467 = vld [vmem:[%s2453 + $0x68] sm:$0xff]
        %v2468 = vld [vmem:[%s2453 + $0x70] sm:$0xff]
        %v2469 = vld [vmem:[%s2453 + $0x78] sm:$0xff]
        %v2470 = vld [vmem:[%s2453 + $0x80] sm:$0xff]
        %v2471 = vld [vmem:[%s2453 + $0x88] sm:$0xff]
        %v2472 = vld [vmem:[%s2453 + $0x90] sm:$0xff]
        %v2473 = vld [vmem:[%s2453 + $0x98] sm:$0xff]
        %v2474 = vld [vmem:[%s2453 + $0xa0] sm:$0xff]
        %v2475 = vld [vmem:[%s2453 + $0xa8] sm:$0xff]
        %v2476 = vld [vmem:[%s2453 + $0xb0] sm:$0xff]
        %v2477 = vld [vmem:[%s2453 + $0xb8] sm:$0xff]
        %v2478 = vld [vmem:[%s2453 + $0xc0] sm:$0xf]
        %v2480 = vsel %vm852, %v2478, 0
        %2482 = vmatpush.msra.mxu0 %v2469
        %2483 = vmatpush.msra.mxu0 %v2468
        %2484 = vmatpush.msra.mxu0 %v2467
        %2485 = vmatpush.msra.mxu0 %v2466
        %2486 = vmatpush.msra.mxu0 %v2465
        %2487 = vmatpush.msra.mxu0 %v2464
        %2488 = vmatpush.msra.mxu0 %v2463
        %2489 = vmatpush.msra.mxu0 %v2462
        %2490 = vmatpush.msra.mxu0 %v2461
        %2491 = vmatpush.msra.mxu0 %v2460
        %2492 = vmatpush.msra.mxu0 %v2459
        %2493 = vmatpush.msra.mxu0 %v2458
        %2494 = vmatpush.msra.mxu0 %v2457
        %2495 = vmatpush.msra.mxu0 %v2456
        %2496 = vmatpush.msra.mxu0 %v2455
        %2497 = vmatpush.msra.mxu0 %v2454
        %2498 = vmatmul.f32.gmra.mxu0 %v2377
        %v2499 = vpop.f32.mrf.mxu0
        %v2500 = vadd.f32 0.0, %v2499
        %2501 = vdwg.mxu0
        %2502 = vmatpush.msra.mxu0 0.0
        %2503 = vmatpush.msra.mxu0 0.0
        %2504 = vmatpush.msra.mxu0 0.0
        %2505 = vmatpush.msra.mxu0 0.0
        %2506 = vmatpush.msra.mxu0 0.0
        %2507 = vmatpush.msra.mxu0 0.0
        %2508 = vmatpush.msra.mxu0 0.0
        %2509 = vmatpush.msra.mxu0 %v2480
        %2510 = vmatpush.msra.mxu0 %v2477
        %2511 = vmatpush.msra.mxu0 %v2476
        %2512 = vmatpush.msra.mxu0 %v2475
        %2513 = vmatpush.msra.mxu0 %v2474
        %2514 = vmatpush.msra.mxu0 %v2473
        %2515 = vmatpush.msra.mxu0 %v2472
        %2516 = vmatpush.msra.mxu0 %v2471
        %2517 = vmatpush.msra.mxu0 %v2470
        %2518 = vmatmul.f32.gmra.mxu0 %v2406
        %v2519 = vpop.f32.mrf.mxu0
        %v2520 = vadd.f32 %v2500, %v2519
        %2521 = vdwg.mxu0
        %s2522 = scalar_lea.vmem [#allocation8], 16
        %v2523 = vld [vmem:[%s2522] sm:$0xff]
        %v2524 = vld [vmem:[%s2522 + $0x8] sm:$0xff]
        %vm2525 = vcmask 64512
        %v2527 = vsel %vm2525, %v2523, 0
        %v2530 = vsel %vm2525, %v2524, 0
        %2532 = vmatpush.msra.mxu0 0.0
        %2533 = vmatpush.msra.mxu0 0.0
        %2534 = vmatpush.msra.mxu0 0.0
        %2535 = vmatpush.msra.mxu0 0.0
        %2536 = vmatpush.msra.mxu0 0.0
        %2537 = vmatpush.msra.mxu0 0.0
        %2538 = vmatpush.msra.mxu0 0.0
        %2539 = vmatpush.msra.mxu0 0.0
        %2540 = vmatpush.msra.mxu0 0.0
        %2541 = vmatpush.msra.mxu0 0.0
        %2542 = vmatpush.msra.mxu0 0.0
        %2543 = vmatpush.msra.mxu0 0.0
        %2544 = vmatpush.msra.mxu0 0.0
        %2545 = vmatpush.msra.mxu0 0.0
        %2546 = vmatpush.msra.mxu0 0.0
        %2547 = vmatpush.msra.mxu0 %v2520
        %2548 = vmatmul.f32.gmra.mxu0 %v2527
        %v2549 = vpop.f32.mrf.mxu0
        %v2550 = vadd.f32 0.0, %v2549
        %2551 = vmatmul.f32.gmra.mxu0 %v2530
        %v2552 = vpop.f32.mrf.mxu0
        %v2553 = vadd.f32 0.0, %v2552
        %2554 = vdwg.mxu0
        %v2556 = vsel %vm2525, %v2451, 0
        %v2559 = vsel %vm2525, %v2452, 0
        %2561 = vmatpush.msra.mxu0 0.0
        %2562 = vmatpush.msra.mxu0 0.0
        %2563 = vmatpush.msra.mxu0 0.0
        %2564 = vmatpush.msra.mxu0 0.0
        %2565 = vmatpush.msra.mxu0 0.0
        %2566 = vmatpush.msra.mxu0 0.0
        %2567 = vmatpush.msra.mxu0 0.0
        %2568 = vmatpush.msra.mxu0 0.0
        %2569 = vmatpush.msra.mxu0 0.0
        %2570 = vmatpush.msra.mxu0 0.0
        %2571 = vmatpush.msra.mxu0 0.0
        %2572 = vmatpush.msra.mxu0 0.0
        %2573 = vmatpush.msra.mxu0 0.0
        %2574 = vmatpush.msra.mxu0 0.0
        %2575 = vmatpush.msra.mxu0 0.0
        %2576 = vmatpush.msra.mxu0 %v2449
        %2577 = vmatmul.f32.gmra.mxu0 %v2556
        %v2578 = vpop.f32.mrf.mxu0
        %v2579 = vadd.f32 %v2550, %v2578
        %2580 = vmatmul.f32.gmra.mxu0 %v2559
        %v2581 = vpop.f32.mrf.mxu0
        %v2582 = vadd.f32 %v2553, %v2581
        %2583 = vdwg.mxu0
        %s2584 = scalar_lea.vmem [#allocation11], 400
        %v2585 = vld [vmem:[%s2584] sm:$0xff]
        %v2586 = vld [vmem:[%s2584 + $0x8] sm:$0xff]
        %v2587 = vld [vmem:[%s2584 + $0x10] sm:$0xff]
        %v2588 = vld [vmem:[%s2584 + $0x18] sm:$0xff]
        %v2589 = vld [vmem:[%s2584 + $0x20] sm:$0xff]
        %v2590 = vld [vmem:[%s2584 + $0x28] sm:$0xff]
        %v2591 = vld [vmem:[%s2584 + $0x30] sm:$0xff]
        %v2592 = vld [vmem:[%s2584 + $0x38] sm:$0xff]
        %v2593 = vld [vmem:[%s2584 + $0x40] sm:$0xff]
        %v2594 = vld [vmem:[%s2584 + $0x48] sm:$0xff]
        %v2595 = vld [vmem:[%s2584 + $0x50] sm:$0xff]
        %v2596 = vld [vmem:[%s2584 + $0x58] sm:$0xff]
        %v2597 = vld [vmem:[%s2584 + $0x60] sm:$0xff]
        %v2598 = vld [vmem:[%s2584 + $0x68] sm:$0xff]
        %v2599 = vld [vmem:[%s2584 + $0x70] sm:$0xff]
        %v2600 = vld [vmem:[%s2584 + $0x78] sm:$0xff]
        %v2601 = vld [vmem:[%s2584 + $0x80] sm:$0xff]
        %v2602 = vld [vmem:[%s2584 + $0x88] sm:$0xff]
        %v2603 = vld [vmem:[%s2584 + $0x90] sm:$0xff]
        %v2604 = vld [vmem:[%s2584 + $0x98] sm:$0xff]
        %v2605 = vld [vmem:[%s2584 + $0xa0] sm:$0xff]
        %v2606 = vld [vmem:[%s2584 + $0xa8] sm:$0xff]
        %v2607 = vld [vmem:[%s2584 + $0xb0] sm:$0xff]
        %v2608 = vld [vmem:[%s2584 + $0xb8] sm:$0xff]
        %v2609 = vld [vmem:[%s2584 + $0xc0] sm:$0xf]
        %v2611 = vsel %vm852, %v2609, 0
        %2613 = vmatpush.msra.mxu0 %v2600
        %2614 = vmatpush.msra.mxu0 %v2599
        %2615 = vmatpush.msra.mxu0 %v2598
        %2616 = vmatpush.msra.mxu0 %v2597
        %2617 = vmatpush.msra.mxu0 %v2596
        %2618 = vmatpush.msra.mxu0 %v2595
        %2619 = vmatpush.msra.mxu0 %v2594
        %2620 = vmatpush.msra.mxu0 %v2593
        %2621 = vmatpush.msra.mxu0 %v2592
        %2622 = vmatpush.msra.mxu0 %v2591
        %2623 = vmatpush.msra.mxu0 %v2590
        %2624 = vmatpush.msra.mxu0 %v2589
        %2625 = vmatpush.msra.mxu0 %v2588
        %2626 = vmatpush.msra.mxu0 %v2587
        %2627 = vmatpush.msra.mxu0 %v2586
        %2628 = vmatpush.msra.mxu0 %v2585
        %2629 = vmatmul.f32.gmra.mxu0 %v2377
        %v2630 = vpop.f32.mrf.mxu0
        %v2631 = vadd.f32 0.0, %v2630
        %2632 = vdwg.mxu0
        %2633 = vmatpush.msra.mxu0 0.0
        %2634 = vmatpush.msra.mxu0 0.0
        %2635 = vmatpush.msra.mxu0 0.0
        %2636 = vmatpush.msra.mxu0 0.0
        %2637 = vmatpush.msra.mxu0 0.0
        %2638 = vmatpush.msra.mxu0 0.0
        %2639 = vmatpush.msra.mxu0 0.0
        %2640 = vmatpush.msra.mxu0 %v2611
        %2641 = vmatpush.msra.mxu0 %v2608
        %2642 = vmatpush.msra.mxu0 %v2607
        %2643 = vmatpush.msra.mxu0 %v2606
        %2644 = vmatpush.msra.mxu0 %v2605
        %2645 = vmatpush.msra.mxu0 %v2604
        %2646 = vmatpush.msra.mxu0 %v2603
        %2647 = vmatpush.msra.mxu0 %v2602
        %2648 = vmatpush.msra.mxu0 %v2601
        %2649 = vmatmul.f32.gmra.mxu0 %v2406
        %v2650 = vpop.f32.mrf.mxu0
        %v2651 = vadd.f32 %v2631, %v2650
        %2652 = vdwg.mxu0
        %s2653 = scalar_lea.vmem [#allocation8], 32
        %v2654 = vld [vmem:[%s2653] sm:$0xff]
        %v2655 = vld [vmem:[%s2653 + $0x8] sm:$0xff]
        %v2657 = vsel %vm2525, %v2654, 0
        %v2660 = vsel %vm2525, %v2655, 0
        %2662 = vmatpush.msra.mxu0 0.0
        %2663 = vmatpush.msra.mxu0 0.0
        %2664 = vmatpush.msra.mxu0 0.0
        %2665 = vmatpush.msra.mxu0 0.0
        %2666 = vmatpush.msra.mxu0 0.0
        %2667 = vmatpush.msra.mxu0 0.0
        %2668 = vmatpush.msra.mxu0 0.0
        %2669 = vmatpush.msra.mxu0 0.0
        %2670 = vmatpush.msra.mxu0 0.0
        %2671 = vmatpush.msra.mxu0 0.0
        %2672 = vmatpush.msra.mxu0 0.0
        %2673 = vmatpush.msra.mxu0 0.0
        %2674 = vmatpush.msra.mxu0 0.0
        %2675 = vmatpush.msra.mxu0 0.0
        %2676 = vmatpush.msra.mxu0 0.0
        %2677 = vmatpush.msra.mxu0 %v2651
        %2678 = vmatmul.f32.gmra.mxu0 %v2657
        %v2679 = vpop.f32.mrf.mxu0
        %v2680 = vadd.f32 0.0, %v2679
        %2681 = vmatmul.f32.gmra.mxu0 %v2660
        %v2682 = vpop.f32.mrf.mxu0
        %v2683 = vadd.f32 0.0, %v2682
        %2684 = vdwg.mxu0
        %v2685 = vadd.f32 %v2579, %v2680
        %v2686 = vadd.f32 %v2582, %v2683
        %s2687 = scalar_lea.vmem [#allocation11], 600
        %v2688 = vld [vmem:[%s2687] sm:$0xff]
        %v2689 = vld [vmem:[%s2687 + $0x8] sm:$0xff]
        %v2690 = vld [vmem:[%s2687 + $0x10] sm:$0xff]
        %v2691 = vld [vmem:[%s2687 + $0x18] sm:$0xff]
        %v2692 = vld [vmem:[%s2687 + $0x20] sm:$0xff]
        %v2693 = vld [vmem:[%s2687 + $0x28] sm:$0xff]
        %v2694 = vld [vmem:[%s2687 + $0x30] sm:$0xff]
        %v2695 = vld [vmem:[%s2687 + $0x38] sm:$0xff]
        %v2696 = vld [vmem:[%s2687 + $0x40] sm:$0xff]
        %v2697 = vld [vmem:[%s2687 + $0x48] sm:$0xff]
        %v2698 = vld [vmem:[%s2687 + $0x50] sm:$0xff]
        %v2699 = vld [vmem:[%s2687 + $0x58] sm:$0xff]
        %v2700 = vld [vmem:[%s2687 + $0x60] sm:$0xff]
        %v2701 = vld [vmem:[%s2687 + $0x68] sm:$0xff]
        %v2702 = vld [vmem:[%s2687 + $0x70] sm:$0xff]
        %v2703 = vld [vmem:[%s2687 + $0x78] sm:$0xff]
        %v2704 = vld [vmem:[%s2687 + $0x80] sm:$0xff]
        %v2705 = vld [vmem:[%s2687 + $0x88] sm:$0xff]
        %v2706 = vld [vmem:[%s2687 + $0x90] sm:$0xff]
        %v2707 = vld [vmem:[%s2687 + $0x98] sm:$0xff]
        %v2708 = vld [vmem:[%s2687 + $0xa0] sm:$0xff]
        %v2709 = vld [vmem:[%s2687 + $0xa8] sm:$0xff]
        %v2710 = vld [vmem:[%s2687 + $0xb0] sm:$0xff]
        %v2711 = vld [vmem:[%s2687 + $0xb8] sm:$0xff]
        %v2712 = vld [vmem:[%s2687 + $0xc0] sm:$0xf]
        %v2714 = vsel %vm852, %v2712, 0
        %2716 = vmatpush.msra.mxu0 %v2703
        %2717 = vmatpush.msra.mxu0 %v2702
        %2718 = vmatpush.msra.mxu0 %v2701
        %2719 = vmatpush.msra.mxu0 %v2700
        %2720 = vmatpush.msra.mxu0 %v2699
        %2721 = vmatpush.msra.mxu0 %v2698
        %2722 = vmatpush.msra.mxu0 %v2697
        %2723 = vmatpush.msra.mxu0 %v2696
        %2724 = vmatpush.msra.mxu0 %v2695
        %2725 = vmatpush.msra.mxu0 %v2694
        %2726 = vmatpush.msra.mxu0 %v2693
        %2727 = vmatpush.msra.mxu0 %v2692
        %2728 = vmatpush.msra.mxu0 %v2691
        %2729 = vmatpush.msra.mxu0 %v2690
        %2730 = vmatpush.msra.mxu0 %v2689
        %2731 = vmatpush.msra.mxu0 %v2688
        %2732 = vmatmul.f32.gmra.mxu0 %v2377
        %v2733 = vpop.f32.mrf.mxu0
        %v2734 = vadd.f32 0.0, %v2733
        %2735 = vdwg.mxu0
        %2736 = vmatpush.msra.mxu0 0.0
        %2737 = vmatpush.msra.mxu0 0.0
        %2738 = vmatpush.msra.mxu0 0.0
        %2739 = vmatpush.msra.mxu0 0.0
        %2740 = vmatpush.msra.mxu0 0.0
        %2741 = vmatpush.msra.mxu0 0.0
        %2742 = vmatpush.msra.mxu0 0.0
        %2743 = vmatpush.msra.mxu0 %v2714
        %2744 = vmatpush.msra.mxu0 %v2711
        %2745 = vmatpush.msra.mxu0 %v2710
        %2746 = vmatpush.msra.mxu0 %v2709
        %2747 = vmatpush.msra.mxu0 %v2708
        %2748 = vmatpush.msra.mxu0 %v2707
        %2749 = vmatpush.msra.mxu0 %v2706
        %2750 = vmatpush.msra.mxu0 %v2705
        %2751 = vmatpush.msra.mxu0 %v2704
        %2752 = vmatmul.f32.gmra.mxu0 %v2406
        %v2753 = vpop.f32.mrf.mxu0
        %v2754 = vadd.f32 %v2734, %v2753
        %2755 = vdwg.mxu0
        %s2756 = scalar_lea.vmem [#allocation8], 48
        %v2757 = vld [vmem:[%s2756] sm:$0xff]
        %v2758 = vld [vmem:[%s2756 + $0x8] sm:$0xff]
        %v2760 = vsel %vm2525, %v2757, 0
        %v2763 = vsel %vm2525, %v2758, 0
        %2765 = vmatpush.msra.mxu0 0.0
        %2766 = vmatpush.msra.mxu0 0.0
        %2767 = vmatpush.msra.mxu0 0.0
        %2768 = vmatpush.msra.mxu0 0.0
        %2769 = vmatpush.msra.mxu0 0.0
        %2770 = vmatpush.msra.mxu0 0.0
        %2771 = vmatpush.msra.mxu0 0.0
        %2772 = vmatpush.msra.mxu0 0.0
        %2773 = vmatpush.msra.mxu0 0.0
        %2774 = vmatpush.msra.mxu0 0.0
        %2775 = vmatpush.msra.mxu0 0.0
        %2776 = vmatpush.msra.mxu0 0.0
        %2777 = vmatpush.msra.mxu0 0.0
        %2778 = vmatpush.msra.mxu0 0.0
        %2779 = vmatpush.msra.mxu0 0.0
        %2780 = vmatpush.msra.mxu0 %v2754
        %2781 = vmatmul.f32.gmra.mxu0 %v2760
        %v2782 = vpop.f32.mrf.mxu0
        %v2783 = vadd.f32 0.0, %v2782
        %2784 = vmatmul.f32.gmra.mxu0 %v2763
        %v2785 = vpop.f32.mrf.mxu0
        %v2786 = vadd.f32 0.0, %v2785
        %2787 = vdwg.mxu0
        %v2788 = vadd.f32 %v2685, %v2783
        %v2789 = vadd.f32 %v2686, %v2786
        %s2790 = scalar_lea.vmem [#allocation11], 800
        %v2791 = vld [vmem:[%s2790] sm:$0xff]
        %v2792 = vld [vmem:[%s2790 + $0x8] sm:$0xff]
        %v2793 = vld [vmem:[%s2790 + $0x10] sm:$0xff]
        %v2794 = vld [vmem:[%s2790 + $0x18] sm:$0xff]
        %v2795 = vld [vmem:[%s2790 + $0x20] sm:$0xff]
        %v2796 = vld [vmem:[%s2790 + $0x28] sm:$0xff]
        %v2797 = vld [vmem:[%s2790 + $0x30] sm:$0xff]
        %v2798 = vld [vmem:[%s2790 + $0x38] sm:$0xff]
        %v2799 = vld [vmem:[%s2790 + $0x40] sm:$0xff]
        %v2800 = vld [vmem:[%s2790 + $0x48] sm:$0xff]
        %v2801 = vld [vmem:[%s2790 + $0x50] sm:$0xff]
        %v2802 = vld [vmem:[%s2790 + $0x58] sm:$0xff]
        %v2803 = vld [vmem:[%s2790 + $0x60] sm:$0xff]
        %v2804 = vld [vmem:[%s2790 + $0x68] sm:$0xff]
        %v2805 = vld [vmem:[%s2790 + $0x70] sm:$0xff]
        %v2806 = vld [vmem:[%s2790 + $0x78] sm:$0xff]
        %v2807 = vld [vmem:[%s2790 + $0x80] sm:$0xff]
        %v2808 = vld [vmem:[%s2790 + $0x88] sm:$0xff]
        %v2809 = vld [vmem:[%s2790 + $0x90] sm:$0xff]
        %v2810 = vld [vmem:[%s2790 + $0x98] sm:$0xff]
        %v2811 = vld [vmem:[%s2790 + $0xa0] sm:$0xff]
        %v2812 = vld [vmem:[%s2790 + $0xa8] sm:$0xff]
        %v2813 = vld [vmem:[%s2790 + $0xb0] sm:$0xff]
        %v2814 = vld [vmem:[%s2790 + $0xb8] sm:$0xff]
        %v2815 = vld [vmem:[%s2790 + $0xc0] sm:$0xf]
        %v2817 = vsel %vm852, %v2815, 0
        %2819 = vmatpush.msra.mxu0 %v2806
        %2820 = vmatpush.msra.mxu0 %v2805
        %2821 = vmatpush.msra.mxu0 %v2804
        %2822 = vmatpush.msra.mxu0 %v2803
        %2823 = vmatpush.msra.mxu0 %v2802
        %2824 = vmatpush.msra.mxu0 %v2801
        %2825 = vmatpush.msra.mxu0 %v2800
        %2826 = vmatpush.msra.mxu0 %v2799
        %2827 = vmatpush.msra.mxu0 %v2798
        %2828 = vmatpush.msra.mxu0 %v2797
        %2829 = vmatpush.msra.mxu0 %v2796
        %2830 = vmatpush.msra.mxu0 %v2795
        %2831 = vmatpush.msra.mxu0 %v2794
        %2832 = vmatpush.msra.mxu0 %v2793
        %2833 = vmatpush.msra.mxu0 %v2792
        %2834 = vmatpush.msra.mxu0 %v2791
        %2835 = vmatmul.f32.gmra.mxu0 %v2377
        %v2836 = vpop.f32.mrf.mxu0
        %v2837 = vadd.f32 0.0, %v2836
        %2838 = vdwg.mxu0
        %2839 = vmatpush.msra.mxu0 0.0
        %2840 = vmatpush.msra.mxu0 0.0
        %2841 = vmatpush.msra.mxu0 0.0
        %2842 = vmatpush.msra.mxu0 0.0
        %2843 = vmatpush.msra.mxu0 0.0
        %2844 = vmatpush.msra.mxu0 0.0
        %2845 = vmatpush.msra.mxu0 0.0
        %2846 = vmatpush.msra.mxu0 %v2817
        %2847 = vmatpush.msra.mxu0 %v2814
        %2848 = vmatpush.msra.mxu0 %v2813
        %2849 = vmatpush.msra.mxu0 %v2812
        %2850 = vmatpush.msra.mxu0 %v2811
        %2851 = vmatpush.msra.mxu0 %v2810
        %2852 = vmatpush.msra.mxu0 %v2809
        %2853 = vmatpush.msra.mxu0 %v2808
        %2854 = vmatpush.msra.mxu0 %v2807
        %2855 = vmatmul.f32.gmra.mxu0 %v2406
        %v2856 = vpop.f32.mrf.mxu0
        %v2857 = vadd.f32 %v2837, %v2856
        %2858 = vdwg.mxu0
        %s2859 = scalar_lea.vmem [#allocation8], 64
        %v2860 = vld [vmem:[%s2859] sm:$0xff]
        %v2861 = vld [vmem:[%s2859 + $0x8] sm:$0xff]
        %v2863 = vsel %vm2525, %v2860, 0
        %v2866 = vsel %vm2525, %v2861, 0
        %2868 = vmatpush.msra.mxu0 0.0
        %2869 = vmatpush.msra.mxu0 0.0
        %2870 = vmatpush.msra.mxu0 0.0
        %2871 = vmatpush.msra.mxu0 0.0
        %2872 = vmatpush.msra.mxu0 0.0
        %2873 = vmatpush.msra.mxu0 0.0
        %2874 = vmatpush.msra.mxu0 0.0
        %2875 = vmatpush.msra.mxu0 0.0
        %2876 = vmatpush.msra.mxu0 0.0
        %2877 = vmatpush.msra.mxu0 0.0
        %2878 = vmatpush.msra.mxu0 0.0
        %2879 = vmatpush.msra.mxu0 0.0
        %2880 = vmatpush.msra.mxu0 0.0
        %2881 = vmatpush.msra.mxu0 0.0
        %2882 = vmatpush.msra.mxu0 0.0
        %2883 = vmatpush.msra.mxu0 %v2857
        %2884 = vmatmul.f32.gmra.mxu0 %v2863
        %v2885 = vpop.f32.mrf.mxu0
        %v2886 = vadd.f32 0.0, %v2885
        %2887 = vmatmul.f32.gmra.mxu0 %v2866
        %v2888 = vpop.f32.mrf.mxu0
        %v2889 = vadd.f32 0.0, %v2888
        %2890 = vdwg.mxu0
        %v2891 = vadd.f32 %v2788, %v2886
        %v2892 = vadd.f32 %v2789, %v2889
        %s2893 = scalar_lea.vmem [#allocation11], 1000
        %v2894 = vld [vmem:[%s2893] sm:$0xff]
        %v2895 = vld [vmem:[%s2893 + $0x8] sm:$0xff]
        %v2896 = vld [vmem:[%s2893 + $0x10] sm:$0xff]
        %v2897 = vld [vmem:[%s2893 + $0x18] sm:$0xff]
        %v2898 = vld [vmem:[%s2893 + $0x20] sm:$0xff]
        %v2899 = vld [vmem:[%s2893 + $0x28] sm:$0xff]
        %v2900 = vld [vmem:[%s2893 + $0x30] sm:$0xff]
        %v2901 = vld [vmem:[%s2893 + $0x38] sm:$0xff]
        %v2902 = vld [vmem:[%s2893 + $0x40] sm:$0xff]
        %v2903 = vld [vmem:[%s2893 + $0x48] sm:$0xff]
        %v2904 = vld [vmem:[%s2893 + $0x50] sm:$0xff]
        %v2905 = vld [vmem:[%s2893 + $0x58] sm:$0xff]
        %v2906 = vld [vmem:[%s2893 + $0x60] sm:$0xff]
        %v2907 = vld [vmem:[%s2893 + $0x68] sm:$0xff]
        %v2908 = vld [vmem:[%s2893 + $0x70] sm:$0xff]
        %v2909 = vld [vmem:[%s2893 + $0x78] sm:$0xff]
        %v2910 = vld [vmem:[%s2893 + $0x80] sm:$0xff]
        %v2911 = vld [vmem:[%s2893 + $0x88] sm:$0xff]
        %v2912 = vld [vmem:[%s2893 + $0x90] sm:$0xff]
        %v2913 = vld [vmem:[%s2893 + $0x98] sm:$0xff]
        %v2914 = vld [vmem:[%s2893 + $0xa0] sm:$0xff]
        %v2915 = vld [vmem:[%s2893 + $0xa8] sm:$0xff]
        %v2916 = vld [vmem:[%s2893 + $0xb0] sm:$0xff]
        %v2917 = vld [vmem:[%s2893 + $0xb8] sm:$0xff]
        %v2918 = vld [vmem:[%s2893 + $0xc0] sm:$0xf]
        %v2920 = vsel %vm852, %v2918, 0
        %2922 = vmatpush.msra.mxu0 %v2909
        %2923 = vmatpush.msra.mxu0 %v2908
        %2924 = vmatpush.msra.mxu0 %v2907
        %2925 = vmatpush.msra.mxu0 %v2906
        %2926 = vmatpush.msra.mxu0 %v2905
        %2927 = vmatpush.msra.mxu0 %v2904
        %2928 = vmatpush.msra.mxu0 %v2903
        %2929 = vmatpush.msra.mxu0 %v2902
        %2930 = vmatpush.msra.mxu0 %v2901
        %2931 = vmatpush.msra.mxu0 %v2900
        %2932 = vmatpush.msra.mxu0 %v2899
        %2933 = vmatpush.msra.mxu0 %v2898
        %2934 = vmatpush.msra.mxu0 %v2897
        %2935 = vmatpush.msra.mxu0 %v2896
        %2936 = vmatpush.msra.mxu0 %v2895
        %2937 = vmatpush.msra.mxu0 %v2894
        %2938 = vmatmul.f32.gmra.mxu0 %v2377
        %v2939 = vpop.f32.mrf.mxu0
        %v2940 = vadd.f32 0.0, %v2939
        %2941 = vdwg.mxu0
        %2942 = vmatpush.msra.mxu0 0.0
        %2943 = vmatpush.msra.mxu0 0.0
        %2944 = vmatpush.msra.mxu0 0.0
        %2945 = vmatpush.msra.mxu0 0.0
        %2946 = vmatpush.msra.mxu0 0.0
        %2947 = vmatpush.msra.mxu0 0.0
        %2948 = vmatpush.msra.mxu0 0.0
        %2949 = vmatpush.msra.mxu0 %v2920
        %2950 = vmatpush.msra.mxu0 %v2917
        %2951 = vmatpush.msra.mxu0 %v2916
        %2952 = vmatpush.msra.mxu0 %v2915
        %2953 = vmatpush.msra.mxu0 %v2914
        %2954 = vmatpush.msra.mxu0 %v2913
        %2955 = vmatpush.msra.mxu0 %v2912
        %2956 = vmatpush.msra.mxu0 %v2911
        %2957 = vmatpush.msra.mxu0 %v2910
        %2958 = vmatmul.f32.gmra.mxu0 %v2406
        %v2959 = vpop.f32.mrf.mxu0
        %v2960 = vadd.f32 %v2940, %v2959
        %2961 = vdwg.mxu0
        %s2962 = scalar_lea.vmem [#allocation8], 80
        %v2963 = vld [vmem:[%s2962] sm:$0xff]
        %v2964 = vld [vmem:[%s2962 + $0x8] sm:$0xff]
        %v2966 = vsel %vm2525, %v2963, 0
        %v2969 = vsel %vm2525, %v2964, 0
        %2971 = vmatpush.msra.mxu0 0.0
        %2972 = vmatpush.msra.mxu0 0.0
        %2973 = vmatpush.msra.mxu0 0.0
        %2974 = vmatpush.msra.mxu0 0.0
        %2975 = vmatpush.msra.mxu0 0.0
        %2976 = vmatpush.msra.mxu0 0.0
        %2977 = vmatpush.msra.mxu0 0.0
        %2978 = vmatpush.msra.mxu0 0.0
        %2979 = vmatpush.msra.mxu0 0.0
        %2980 = vmatpush.msra.mxu0 0.0
        %2981 = vmatpush.msra.mxu0 0.0
        %2982 = vmatpush.msra.mxu0 0.0
        %2983 = vmatpush.msra.mxu0 0.0
        %2984 = vmatpush.msra.mxu0 0.0
        %2985 = vmatpush.msra.mxu0 0.0
        %2986 = vmatpush.msra.mxu0 %v2960
        %2987 = vmatmul.f32.gmra.mxu0 %v2966
        %v2988 = vpop.f32.mrf.mxu0
        %v2989 = vadd.f32 0.0, %v2988
        %2990 = vmatmul.f32.gmra.mxu0 %v2969
        %v2991 = vpop.f32.mrf.mxu0
        %v2992 = vadd.f32 0.0, %v2991
        %2993 = vdwg.mxu0
        %v2994 = vadd.f32 %v2891, %v2989
        %v2995 = vadd.f32 %v2892, %v2992
        %s2996 = scalar_lea.vmem [#allocation11], 1200
        %v2997 = vld [vmem:[%s2996] sm:$0xff]
        %v2998 = vld [vmem:[%s2996 + $0x8] sm:$0xff]
        %v2999 = vld [vmem:[%s2996 + $0x10] sm:$0xff]
        %v3000 = vld [vmem:[%s2996 + $0x18] sm:$0xff]
        %v3001 = vld [vmem:[%s2996 + $0x20] sm:$0xff]
        %v3002 = vld [vmem:[%s2996 + $0x28] sm:$0xff]
        %v3003 = vld [vmem:[%s2996 + $0x30] sm:$0xff]
        %v3004 = vld [vmem:[%s2996 + $0x38] sm:$0xff]
        %v3005 = vld [vmem:[%s2996 + $0x40] sm:$0xff]
        %v3006 = vld [vmem:[%s2996 + $0x48] sm:$0xff]
        %v3007 = vld [vmem:[%s2996 + $0x50] sm:$0xff]
        %v3008 = vld [vmem:[%s2996 + $0x58] sm:$0xff]
        %v3009 = vld [vmem:[%s2996 + $0x60] sm:$0xff]
        %v3010 = vld [vmem:[%s2996 + $0x68] sm:$0xff]
        %v3011 = vld [vmem:[%s2996 + $0x70] sm:$0xff]
        %v3012 = vld [vmem:[%s2996 + $0x78] sm:$0xff]
        %v3013 = vld [vmem:[%s2996 + $0x80] sm:$0xff]
        %v3014 = vld [vmem:[%s2996 + $0x88] sm:$0xff]
        %v3015 = vld [vmem:[%s2996 + $0x90] sm:$0xff]
        %v3016 = vld [vmem:[%s2996 + $0x98] sm:$0xff]
        %v3017 = vld [vmem:[%s2996 + $0xa0] sm:$0xff]
        %v3018 = vld [vmem:[%s2996 + $0xa8] sm:$0xff]
        %v3019 = vld [vmem:[%s2996 + $0xb0] sm:$0xff]
        %v3020 = vld [vmem:[%s2996 + $0xb8] sm:$0xff]
        %v3021 = vld [vmem:[%s2996 + $0xc0] sm:$0xf]
        %v3023 = vsel %vm852, %v3021, 0
        %3025 = vmatpush.msra.mxu0 %v3012
        %3026 = vmatpush.msra.mxu0 %v3011
        %3027 = vmatpush.msra.mxu0 %v3010
        %3028 = vmatpush.msra.mxu0 %v3009
        %3029 = vmatpush.msra.mxu0 %v3008
        %3030 = vmatpush.msra.mxu0 %v3007
        %3031 = vmatpush.msra.mxu0 %v3006
        %3032 = vmatpush.msra.mxu0 %v3005
        %3033 = vmatpush.msra.mxu0 %v3004
        %3034 = vmatpush.msra.mxu0 %v3003
        %3035 = vmatpush.msra.mxu0 %v3002
        %3036 = vmatpush.msra.mxu0 %v3001
        %3037 = vmatpush.msra.mxu0 %v3000
        %3038 = vmatpush.msra.mxu0 %v2999
        %3039 = vmatpush.msra.mxu0 %v2998
        %3040 = vmatpush.msra.mxu0 %v2997
        %3041 = vmatmul.f32.gmra.mxu0 %v2377
        %v3042 = vpop.f32.mrf.mxu0
        %v3043 = vadd.f32 0.0, %v3042
        %3044 = vdwg.mxu0
        %3045 = vmatpush.msra.mxu0 0.0
        %3046 = vmatpush.msra.mxu0 0.0
        %3047 = vmatpush.msra.mxu0 0.0
        %3048 = vmatpush.msra.mxu0 0.0
        %3049 = vmatpush.msra.mxu0 0.0
        %3050 = vmatpush.msra.mxu0 0.0
        %3051 = vmatpush.msra.mxu0 0.0
        %3052 = vmatpush.msra.mxu0 %v3023
        %3053 = vmatpush.msra.mxu0 %v3020
        %3054 = vmatpush.msra.mxu0 %v3019
        %3055 = vmatpush.msra.mxu0 %v3018
        %3056 = vmatpush.msra.mxu0 %v3017
        %3057 = vmatpush.msra.mxu0 %v3016
        %3058 = vmatpush.msra.mxu0 %v3015
        %3059 = vmatpush.msra.mxu0 %v3014
        %3060 = vmatpush.msra.mxu0 %v3013
        %3061 = vmatmul.f32.gmra.mxu0 %v2406
        %v3062 = vpop.f32.mrf.mxu0
        %v3063 = vadd.f32 %v3043, %v3062
        %3064 = vdwg.mxu0
        %s3065 = scalar_lea.vmem [#allocation8], 96
        %v3066 = vld [vmem:[%s3065] sm:$0xff]
        %v3067 = vld [vmem:[%s3065 + $0x8] sm:$0xff]
        %v3069 = vsel %vm2525, %v3066, 0
        %v3072 = vsel %vm2525, %v3067, 0
        %3074 = vmatpush.msra.mxu0 0.0
        %3075 = vmatpush.msra.mxu0 0.0
        %3076 = vmatpush.msra.mxu0 0.0
        %3077 = vmatpush.msra.mxu0 0.0
        %3078 = vmatpush.msra.mxu0 0.0
        %3079 = vmatpush.msra.mxu0 0.0
        %3080 = vmatpush.msra.mxu0 0.0
        %3081 = vmatpush.msra.mxu0 0.0
        %3082 = vmatpush.msra.mxu0 0.0
        %3083 = vmatpush.msra.mxu0 0.0
        %3084 = vmatpush.msra.mxu0 0.0
        %3085 = vmatpush.msra.mxu0 0.0
        %3086 = vmatpush.msra.mxu0 0.0
        %3087 = vmatpush.msra.mxu0 0.0
        %3088 = vmatpush.msra.mxu0 0.0
        %3089 = vmatpush.msra.mxu0 %v3063
        %3090 = vmatmul.f32.gmra.mxu0 %v3069
        %v3091 = vpop.f32.mrf.mxu0
        %v3092 = vadd.f32 0.0, %v3091
        %3093 = vmatmul.f32.gmra.mxu0 %v3072
        %v3094 = vpop.f32.mrf.mxu0
        %v3095 = vadd.f32 0.0, %v3094
        %3096 = vdwg.mxu0
        %v3097 = vadd.f32 %v2994, %v3092
        %v3098 = vadd.f32 %v2995, %v3095
        %s3099 = scalar_lea.vmem [#allocation11], 1400
        %v3100 = vld [vmem:[%s3099] sm:$0xff]
        %v3101 = vld [vmem:[%s3099 + $0x8] sm:$0xff]
        %v3102 = vld [vmem:[%s3099 + $0x10] sm:$0xff]
        %v3103 = vld [vmem:[%s3099 + $0x18] sm:$0xff]
        %v3104 = vld [vmem:[%s3099 + $0x20] sm:$0xff]
        %v3105 = vld [vmem:[%s3099 + $0x28] sm:$0xff]
        %v3106 = vld [vmem:[%s3099 + $0x30] sm:$0xff]
        %v3107 = vld [vmem:[%s3099 + $0x38] sm:$0xff]
        %v3108 = vld [vmem:[%s3099 + $0x40] sm:$0xff]
        %v3109 = vld [vmem:[%s3099 + $0x48] sm:$0xff]
        %v3110 = vld [vmem:[%s3099 + $0x50] sm:$0xff]
        %v3111 = vld [vmem:[%s3099 + $0x58] sm:$0xff]
        %v3112 = vld [vmem:[%s3099 + $0x60] sm:$0xff]
        %v3113 = vld [vmem:[%s3099 + $0x68] sm:$0xff]
        %v3114 = vld [vmem:[%s3099 + $0x70] sm:$0xff]
        %v3115 = vld [vmem:[%s3099 + $0x78] sm:$0xff]
        %v3116 = vld [vmem:[%s3099 + $0x80] sm:$0xff]
        %v3117 = vld [vmem:[%s3099 + $0x88] sm:$0xff]
        %v3118 = vld [vmem:[%s3099 + $0x90] sm:$0xff]
        %v3119 = vld [vmem:[%s3099 + $0x98] sm:$0xff]
        %v3120 = vld [vmem:[%s3099 + $0xa0] sm:$0xff]
        %v3121 = vld [vmem:[%s3099 + $0xa8] sm:$0xff]
        %v3122 = vld [vmem:[%s3099 + $0xb0] sm:$0xff]
        %v3123 = vld [vmem:[%s3099 + $0xb8] sm:$0xff]
        %v3124 = vld [vmem:[%s3099 + $0xc0] sm:$0xf]
        %v3126 = vsel %vm852, %v3124, 0
        %3128 = vmatpush.msra.mxu0 %v3115
        %3129 = vmatpush.msra.mxu0 %v3114
        %3130 = vmatpush.msra.mxu0 %v3113
        %3131 = vmatpush.msra.mxu0 %v3112
        %3132 = vmatpush.msra.mxu0 %v3111
        %3133 = vmatpush.msra.mxu0 %v3110
        %3134 = vmatpush.msra.mxu0 %v3109
        %3135 = vmatpush.msra.mxu0 %v3108
        %3136 = vmatpush.msra.mxu0 %v3107
        %3137 = vmatpush.msra.mxu0 %v3106
        %3138 = vmatpush.msra.mxu0 %v3105
        %3139 = vmatpush.msra.mxu0 %v3104
        %3140 = vmatpush.msra.mxu0 %v3103
        %3141 = vmatpush.msra.mxu0 %v3102
        %3142 = vmatpush.msra.mxu0 %v3101
        %3143 = vmatpush.msra.mxu0 %v3100
        %3144 = vmatmul.f32.gmra.mxu0 %v2377
        %v3145 = vpop.f32.mrf.mxu0
        %v3146 = vadd.f32 0.0, %v3145
        %3147 = vdwg.mxu0
        %3148 = vmatpush.msra.mxu0 0.0
        %3149 = vmatpush.msra.mxu0 0.0
        %3150 = vmatpush.msra.mxu0 0.0
        %3151 = vmatpush.msra.mxu0 0.0
        %3152 = vmatpush.msra.mxu0 0.0
        %3153 = vmatpush.msra.mxu0 0.0
        %3154 = vmatpush.msra.mxu0 0.0
        %3155 = vmatpush.msra.mxu0 %v3126
        %3156 = vmatpush.msra.mxu0 %v3123
        %3157 = vmatpush.msra.mxu0 %v3122
        %3158 = vmatpush.msra.mxu0 %v3121
        %3159 = vmatpush.msra.mxu0 %v3120
        %3160 = vmatpush.msra.mxu0 %v3119
        %3161 = vmatpush.msra.mxu0 %v3118
        %3162 = vmatpush.msra.mxu0 %v3117
        %3163 = vmatpush.msra.mxu0 %v3116
        %3164 = vmatmul.f32.gmra.mxu0 %v2406
        %v3165 = vpop.f32.mrf.mxu0
        %v3166 = vadd.f32 %v3146, %v3165
        %3167 = vdwg.mxu0
        %s3168 = scalar_lea.vmem [#allocation8], 112
        %v3169 = vld [vmem:[%s3168] sm:$0xff]
        %v3170 = vld [vmem:[%s3168 + $0x8] sm:$0xff]
        %v3172 = vsel %vm2525, %v3169, 0
        %v3175 = vsel %vm2525, %v3170, 0
        %3177 = vmatpush.msra.mxu0 0.0
        %3178 = vmatpush.msra.mxu0 0.0
        %3179 = vmatpush.msra.mxu0 0.0
        %3180 = vmatpush.msra.mxu0 0.0
        %3181 = vmatpush.msra.mxu0 0.0
        %3182 = vmatpush.msra.mxu0 0.0
        %3183 = vmatpush.msra.mxu0 0.0
        %3184 = vmatpush.msra.mxu0 0.0
        %3185 = vmatpush.msra.mxu0 0.0
        %3186 = vmatpush.msra.mxu0 0.0
        %3187 = vmatpush.msra.mxu0 0.0
        %3188 = vmatpush.msra.mxu0 0.0
        %3189 = vmatpush.msra.mxu0 0.0
        %3190 = vmatpush.msra.mxu0 0.0
        %3191 = vmatpush.msra.mxu0 0.0
        %3192 = vmatpush.msra.mxu0 %v3166
        %3193 = vmatmul.f32.gmra.mxu0 %v3172
        %v3194 = vpop.f32.mrf.mxu0
        %v3195 = vadd.f32 0.0, %v3194
        %3196 = vmatmul.f32.gmra.mxu0 %v3175
        %v3197 = vpop.f32.mrf.mxu0
        %v3198 = vadd.f32 0.0, %v3197
        %3199 = vdwg.mxu0
        %v3200 = vadd.f32 %v3097, %v3195
        %v3201 = vadd.f32 %v3098, %v3198
        %s3202 = scalar_lea.vmem [#allocation11], 1600
        %v3203 = vld [vmem:[%s3202] sm:$0xff]
        %v3204 = vld [vmem:[%s3202 + $0x8] sm:$0xff]
        %v3205 = vld [vmem:[%s3202 + $0x10] sm:$0xff]
        %v3206 = vld [vmem:[%s3202 + $0x18] sm:$0xff]
        %v3207 = vld [vmem:[%s3202 + $0x20] sm:$0xff]
        %v3208 = vld [vmem:[%s3202 + $0x28] sm:$0xff]
        %v3209 = vld [vmem:[%s3202 + $0x30] sm:$0xff]
        %v3210 = vld [vmem:[%s3202 + $0x38] sm:$0xff]
        %v3211 = vld [vmem:[%s3202 + $0x40] sm:$0xff]
        %v3212 = vld [vmem:[%s3202 + $0x48] sm:$0xff]
        %v3213 = vld [vmem:[%s3202 + $0x50] sm:$0xff]
        %v3214 = vld [vmem:[%s3202 + $0x58] sm:$0xff]
        %v3215 = vld [vmem:[%s3202 + $0x60] sm:$0xff]
        %v3216 = vld [vmem:[%s3202 + $0x68] sm:$0xff]
        %v3217 = vld [vmem:[%s3202 + $0x70] sm:$0xff]
        %v3218 = vld [vmem:[%s3202 + $0x78] sm:$0xff]
        %v3219 = vld [vmem:[%s3202 + $0x80] sm:$0xff]
        %v3220 = vld [vmem:[%s3202 + $0x88] sm:$0xff]
        %v3221 = vld [vmem:[%s3202 + $0x90] sm:$0xff]
        %v3222 = vld [vmem:[%s3202 + $0x98] sm:$0xff]
        %v3223 = vld [vmem:[%s3202 + $0xa0] sm:$0xff]
        %v3224 = vld [vmem:[%s3202 + $0xa8] sm:$0xff]
        %v3225 = vld [vmem:[%s3202 + $0xb0] sm:$0xff]
        %v3226 = vld [vmem:[%s3202 + $0xb8] sm:$0xff]
        %v3227 = vld [vmem:[%s3202 + $0xc0] sm:$0xf]
        %v3229 = vsel %vm852, %v3227, 0
        %3231 = vmatpush.msra.mxu0 %v3218
        %3232 = vmatpush.msra.mxu0 %v3217
        %3233 = vmatpush.msra.mxu0 %v3216
        %3234 = vmatpush.msra.mxu0 %v3215
        %3235 = vmatpush.msra.mxu0 %v3214
        %3236 = vmatpush.msra.mxu0 %v3213
        %3237 = vmatpush.msra.mxu0 %v3212
        %3238 = vmatpush.msra.mxu0 %v3211
        %3239 = vmatpush.msra.mxu0 %v3210
        %3240 = vmatpush.msra.mxu0 %v3209
        %3241 = vmatpush.msra.mxu0 %v3208
        %3242 = vmatpush.msra.mxu0 %v3207
        %3243 = vmatpush.msra.mxu0 %v3206
        %3244 = vmatpush.msra.mxu0 %v3205
        %3245 = vmatpush.msra.mxu0 %v3204
        %3246 = vmatpush.msra.mxu0 %v3203
        %3247 = vmatmul.f32.gmra.mxu0 %v2377
        %v3248 = vpop.f32.mrf.mxu0
        %v3249 = vadd.f32 0.0, %v3248
        %3250 = vdwg.mxu0
        %3251 = vmatpush.msra.mxu0 0.0
        %3252 = vmatpush.msra.mxu0 0.0
        %3253 = vmatpush.msra.mxu0 0.0
        %3254 = vmatpush.msra.mxu0 0.0
        %3255 = vmatpush.msra.mxu0 0.0
        %3256 = vmatpush.msra.mxu0 0.0
        %3257 = vmatpush.msra.mxu0 0.0
        %3258 = vmatpush.msra.mxu0 %v3229
        %3259 = vmatpush.msra.mxu0 %v3226
        %3260 = vmatpush.msra.mxu0 %v3225
        %3261 = vmatpush.msra.mxu0 %v3224
        %3262 = vmatpush.msra.mxu0 %v3223
        %3263 = vmatpush.msra.mxu0 %v3222
        %3264 = vmatpush.msra.mxu0 %v3221
        %3265 = vmatpush.msra.mxu0 %v3220
        %3266 = vmatpush.msra.mxu0 %v3219
        %3267 = vmatmul.f32.gmra.mxu0 %v2406
        %v3268 = vpop.f32.mrf.mxu0
        %v3269 = vadd.f32 %v3249, %v3268
        %3270 = vdwg.mxu0
        %s3271 = scalar_lea.vmem [#allocation8], 128
        %v3272 = vld [vmem:[%s3271] sm:$0xff]
        %v3273 = vld [vmem:[%s3271 + $0x8] sm:$0xff]
        %v3275 = vsel %vm2525, %v3272, 0
        %v3278 = vsel %vm2525, %v3273, 0
        %3280 = vmatpush.msra.mxu0 0.0
        %3281 = vmatpush.msra.mxu0 0.0
        %3282 = vmatpush.msra.mxu0 0.0
        %3283 = vmatpush.msra.mxu0 0.0
        %3284 = vmatpush.msra.mxu0 0.0
        %3285 = vmatpush.msra.mxu0 0.0
        %3286 = vmatpush.msra.mxu0 0.0
        %3287 = vmatpush.msra.mxu0 0.0
        %3288 = vmatpush.msra.mxu0 0.0
        %3289 = vmatpush.msra.mxu0 0.0
        %3290 = vmatpush.msra.mxu0 0.0
        %3291 = vmatpush.msra.mxu0 0.0
        %3292 = vmatpush.msra.mxu0 0.0
        %3293 = vmatpush.msra.mxu0 0.0
        %3294 = vmatpush.msra.mxu0 0.0
        %3295 = vmatpush.msra.mxu0 %v3269
        %3296 = vmatmul.f32.gmra.mxu0 %v3275
        %v3297 = vpop.f32.mrf.mxu0
        %v3298 = vadd.f32 0.0, %v3297
        %3299 = vmatmul.f32.gmra.mxu0 %v3278
        %v3300 = vpop.f32.mrf.mxu0
        %v3301 = vadd.f32 0.0, %v3300
        %3302 = vdwg.mxu0
        %v3303 = vadd.f32 %v3200, %v3298
        %v3304 = vadd.f32 %v3201, %v3301
        %v3305 = vld [vmem:[#allocation10] sm:$0xff]
        %v3306 = vld [vmem:[#allocation10 + $0x8] sm:$0xff]
        %3308 = vset.pattern.permute.xlu0 0
        %3309 = vperm.xlu0 %3308, %v3305
        %v3310 = vpop.permute.xlu0 %3309
        %3313 = vset.pattern.permute.xlu0 0
        %3314 = vperm.xlu0 %3313, %v3306
        %v3315 = vpop.permute.xlu0 %3314
        %v3317 = vadd.f32 %v3303, %v3310
        %v3318 = vadd.f32 %v3304, %v3315
        %v3319 = vmax.f32 %v3317, 0.0
        %v3320 = vmax.f32 %v3318, 0.0
        %v3321 = vld [vmem:[#allocation14] sm:$0x1]
        %v3322 = vld [vmem:[#allocation13] sm:$0xff]
        %v3323 = vld [vmem:[#allocation13 + $0x8] sm:$0xff]
        %v3324 = vld [vmem:[#allocation13 + $0x10] sm:$0xff]
        %v3325 = vld [vmem:[#allocation13 + $0x18] sm:$0xff]
        %v3326 = vld [vmem:[#allocation13 + $0x20] sm:$0xf]
        %vm3327 = vcmask 293888
        %v3329 = vsel %vm3327, %v3319, 0
        %v3332 = vsel %vm852, %v3326, 0
        %3334 = vmatpush.msra.mxu0 0.0
        %3335 = vmatpush.msra.mxu0 0.0
        %3336 = vmatpush.msra.mxu0 0.0
        %3337 = vmatpush.msra.mxu0 0.0
        %3338 = vmatpush.msra.mxu0 0.0
        %3339 = vmatpush.msra.mxu0 0.0
        %3340 = vmatpush.msra.mxu0 0.0
        %3341 = vmatpush.msra.mxu0 0.0
        %3342 = vmatpush.msra.mxu0 0.0
        %3343 = vmatpush.msra.mxu0 0.0
        %3344 = vmatpush.msra.mxu0 0.0
        %3345 = vmatpush.msra.mxu0 %v3332
        %3346 = vmatpush.msra.mxu0 %v3325
        %3347 = vmatpush.msra.mxu0 %v3324
        %3348 = vmatpush.msra.mxu0 %v3323
        %3349 = vmatpush.msra.mxu0 %v3322
        %3350 = vmatmul.f32.gmra.mxu0 %v3329
        %v3351 = vpop.f32.mrf.mxu0
        %v3352 = vadd.f32 0.0, %v3351
        %3353 = vdwg.mxu0
        %v3354 = vadd.f32 %v3321, %v3352
        %s3355 = scalar_lea.vmem [#allocation13], 40
        %v3356 = vld [vmem:[%s3355] sm:$0xff]
        %v3357 = vld [vmem:[%s3355 + $0x8] sm:$0xff]
        %v3358 = vld [vmem:[%s3355 + $0x10] sm:$0xff]
        %v3359 = vld [vmem:[%s3355 + $0x18] sm:$0xff]
        %v3360 = vld [vmem:[%s3355 + $0x20] sm:$0xf]
        %v3361 = vrot.slane %v3319, 1
        %v3362 = vsel %vm3327, %v3361, 0
        %v3365 = vsel %vm852, %v3360, 0
        %3367 = vmatpush.msra.mxu0 0.0
        %3368 = vmatpush.msra.mxu0 0.0
        %3369 = vmatpush.msra.mxu0 0.0
        %3370 = vmatpush.msra.mxu0 0.0
        %3371 = vmatpush.msra.mxu0 0.0
        %3372 = vmatpush.msra.mxu0 0.0
        %3373 = vmatpush.msra.mxu0 0.0
        %3374 = vmatpush.msra.mxu0 0.0
        %3375 = vmatpush.msra.mxu0 0.0
        %3376 = vmatpush.msra.mxu0 0.0
        %3377 = vmatpush.msra.mxu0 0.0
        %3378 = vmatpush.msra.mxu0 %v3365
        %3379 = vmatpush.msra.mxu0 %v3359
        %3380 = vmatpush.msra.mxu0 %v3358
        %3381 = vmatpush.msra.mxu0 %v3357
        %3382 = vmatpush.msra.mxu0 %v3356
        %3383 = vmatmul.f32.gmra.mxu0 %v3362
        %v3384 = vpop.f32.mrf.mxu0
        %v3385 = vadd.f32 0.0, %v3384
        %3386 = vdwg.mxu0
        %v3387 = vadd.f32 %v3354, %v3385
        %s3388 = scalar_lea.vmem [#allocation13], 80
        %v3389 = vld [vmem:[%s3388] sm:$0xff]
        %v3390 = vld [vmem:[%s3388 + $0x8] sm:$0xff]
        %v3391 = vld [vmem:[%s3388 + $0x10] sm:$0xff]
        %v3392 = vld [vmem:[%s3388 + $0x18] sm:$0xff]
        %v3393 = vld [vmem:[%s3388 + $0x20] sm:$0xf]
        %v3394 = vrot.slane %v3319, 2
        %v3395 = vsel %vm3327, %v3394, 0
        %v3398 = vsel %vm852, %v3393, 0
        %3400 = vmatpush.msra.mxu0 0.0
        %3401 = vmatpush.msra.mxu0 0.0
        %3402 = vmatpush.msra.mxu0 0.0
        %3403 = vmatpush.msra.mxu0 0.0
        %3404 = vmatpush.msra.mxu0 0.0
        %3405 = vmatpush.msra.mxu0 0.0
        %3406 = vmatpush.msra.mxu0 0.0
        %3407 = vmatpush.msra.mxu0 0.0
        %3408 = vmatpush.msra.mxu0 0.0
        %3409 = vmatpush.msra.mxu0 0.0
        %3410 = vmatpush.msra.mxu0 0.0
        %3411 = vmatpush.msra.mxu0 %v3398
        %3412 = vmatpush.msra.mxu0 %v3392
        %3413 = vmatpush.msra.mxu0 %v3391
        %3414 = vmatpush.msra.mxu0 %v3390
        %3415 = vmatpush.msra.mxu0 %v3389
        %3416 = vmatmul.f32.gmra.mxu0 %v3395
        %v3417 = vpop.f32.mrf.mxu0
        %v3418 = vadd.f32 0.0, %v3417
        %3419 = vdwg.mxu0
        %v3420 = vadd.f32 %v3387, %v3418
        %s3421 = scalar_lea.vmem [#allocation13], 120
        %v3422 = vld [vmem:[%s3421] sm:$0xff]
        %v3423 = vld [vmem:[%s3421 + $0x8] sm:$0xff]
        %v3424 = vld [vmem:[%s3421 + $0x10] sm:$0xff]
        %v3425 = vld [vmem:[%s3421 + $0x18] sm:$0xff]
        %v3426 = vld [vmem:[%s3421 + $0x20] sm:$0xf]
        %v3427 = vrot.slane %v3319, 3
        %v3428 = vsel %vm3327, %v3427, 0
        %v3431 = vsel %vm852, %v3426, 0
        %3433 = vmatpush.msra.mxu0 0.0
        %3434 = vmatpush.msra.mxu0 0.0
        %3435 = vmatpush.msra.mxu0 0.0
        %3436 = vmatpush.msra.mxu0 0.0
        %3437 = vmatpush.msra.mxu0 0.0
        %3438 = vmatpush.msra.mxu0 0.0
        %3439 = vmatpush.msra.mxu0 0.0
        %3440 = vmatpush.msra.mxu0 0.0
        %3441 = vmatpush.msra.mxu0 0.0
        %3442 = vmatpush.msra.mxu0 0.0
        %3443 = vmatpush.msra.mxu0 0.0
        %3444 = vmatpush.msra.mxu0 %v3431
        %3445 = vmatpush.msra.mxu0 %v3425
        %3446 = vmatpush.msra.mxu0 %v3424
        %3447 = vmatpush.msra.mxu0 %v3423
        %3448 = vmatpush.msra.mxu0 %v3422
        %3449 = vmatmul.f32.gmra.mxu0 %v3428
        %v3450 = vpop.f32.mrf.mxu0
        %v3451 = vadd.f32 0.0, %v3450
        %3452 = vdwg.mxu0
        %v3453 = vadd.f32 %v3420, %v3451
        %s3454 = scalar_lea.vmem [#allocation13], 160
        %v3455 = vld [vmem:[%s3454] sm:$0xff]
        %v3456 = vld [vmem:[%s3454 + $0x8] sm:$0xff]
        %v3457 = vld [vmem:[%s3454 + $0x10] sm:$0xff]
        %v3458 = vld [vmem:[%s3454 + $0x18] sm:$0xff]
        %v3459 = vld [vmem:[%s3454 + $0x20] sm:$0xf]
        %v3460 = vrot.slane %v3319, 4
        %v3461 = vsel %vm3327, %v3460, 0
        %v3464 = vsel %vm852, %v3459, 0
        %3466 = vmatpush.msra.mxu0 0.0
        %3467 = vmatpush.msra.mxu0 0.0
        %3468 = vmatpush.msra.mxu0 0.0
        %3469 = vmatpush.msra.mxu0 0.0
        %3470 = vmatpush.msra.mxu0 0.0
        %3471 = vmatpush.msra.mxu0 0.0
        %3472 = vmatpush.msra.mxu0 0.0
        %3473 = vmatpush.msra.mxu0 0.0
        %3474 = vmatpush.msra.mxu0 0.0
        %3475 = vmatpush.msra.mxu0 0.0
        %3476 = vmatpush.msra.mxu0 0.0
        %3477 = vmatpush.msra.mxu0 %v3464
        %3478 = vmatpush.msra.mxu0 %v3458
        %3479 = vmatpush.msra.mxu0 %v3457
        %3480 = vmatpush.msra.mxu0 %v3456
        %3481 = vmatpush.msra.mxu0 %v3455
        %3482 = vmatmul.f32.gmra.mxu0 %v3461
        %v3483 = vpop.f32.mrf.mxu0
        %v3484 = vadd.f32 0.0, %v3483
        %3485 = vdwg.mxu0
        %v3486 = vadd.f32 %v3453, %v3484
        %s3487 = scalar_lea.vmem [#allocation13], 200
        %v3488 = vld [vmem:[%s3487] sm:$0xff]
        %v3489 = vld [vmem:[%s3487 + $0x8] sm:$0xff]
        %v3490 = vld [vmem:[%s3487 + $0x10] sm:$0xff]
        %v3491 = vld [vmem:[%s3487 + $0x18] sm:$0xff]
        %v3492 = vld [vmem:[%s3487 + $0x20] sm:$0xf]
        %v3493 = vrot.slane %v3319, 5
        %v3494 = vsel %vm3327, %v3493, 0
        %v3497 = vsel %vm852, %v3492, 0
        %3499 = vmatpush.msra.mxu0 0.0
        %3500 = vmatpush.msra.mxu0 0.0
        %3501 = vmatpush.msra.mxu0 0.0
        %3502 = vmatpush.msra.mxu0 0.0
        %3503 = vmatpush.msra.mxu0 0.0
        %3504 = vmatpush.msra.mxu0 0.0
        %3505 = vmatpush.msra.mxu0 0.0
        %3506 = vmatpush.msra.mxu0 0.0
        %3507 = vmatpush.msra.mxu0 0.0
        %3508 = vmatpush.msra.mxu0 0.0
        %3509 = vmatpush.msra.mxu0 0.0
        %3510 = vmatpush.msra.mxu0 %v3497
        %3511 = vmatpush.msra.mxu0 %v3491
        %3512 = vmatpush.msra.mxu0 %v3490
        %3513 = vmatpush.msra.mxu0 %v3489
        %3514 = vmatpush.msra.mxu0 %v3488
        %3515 = vmatmul.f32.gmra.mxu0 %v3494
        %v3516 = vpop.f32.mrf.mxu0
        %v3517 = vadd.f32 0.0, %v3516
        %3518 = vdwg.mxu0
        %v3519 = vadd.f32 %v3486, %v3517
        %s3520 = scalar_lea.vmem [#allocation13], 240
        %v3521 = vld [vmem:[%s3520] sm:$0xff]
        %v3522 = vld [vmem:[%s3520 + $0x8] sm:$0xff]
        %v3523 = vld [vmem:[%s3520 + $0x10] sm:$0xff]
        %v3524 = vld [vmem:[%s3520 + $0x18] sm:$0xff]
        %v3525 = vld [vmem:[%s3520 + $0x20] sm:$0xf]
        %v3526 = vrot.slane %v3319, 6
        %v3527 = vsel %vm3327, %v3526, 0
        %v3530 = vsel %vm852, %v3525, 0
        %3532 = vmatpush.msra.mxu0 0.0
        %3533 = vmatpush.msra.mxu0 0.0
        %3534 = vmatpush.msra.mxu0 0.0
        %3535 = vmatpush.msra.mxu0 0.0
        %3536 = vmatpush.msra.mxu0 0.0
        %3537 = vmatpush.msra.mxu0 0.0
        %3538 = vmatpush.msra.mxu0 0.0
        %3539 = vmatpush.msra.mxu0 0.0
        %3540 = vmatpush.msra.mxu0 0.0
        %3541 = vmatpush.msra.mxu0 0.0
        %3542 = vmatpush.msra.mxu0 0.0
        %3543 = vmatpush.msra.mxu0 %v3530
        %3544 = vmatpush.msra.mxu0 %v3524
        %3545 = vmatpush.msra.mxu0 %v3523
        %3546 = vmatpush.msra.mxu0 %v3522
        %3547 = vmatpush.msra.mxu0 %v3521
        %3548 = vmatmul.f32.gmra.mxu0 %v3527
        %v3549 = vpop.f32.mrf.mxu0
        %v3550 = vadd.f32 0.0, %v3549
        %3551 = vdwg.mxu0
        %v3552 = vadd.f32 %v3519, %v3550
        %s3553 = scalar_lea.vmem [#allocation13], 280
        %v3554 = vld [vmem:[%s3553] sm:$0xff]
        %v3555 = vld [vmem:[%s3553 + $0x8] sm:$0xff]
        %v3556 = vld [vmem:[%s3553 + $0x10] sm:$0xff]
        %v3557 = vld [vmem:[%s3553 + $0x18] sm:$0xff]
        %v3558 = vld [vmem:[%s3553 + $0x20] sm:$0xf]
        %v3559 = vrot.slane %v3319, 7
        %v3560 = vsel %vm3327, %v3559, 0
        %v3563 = vsel %vm852, %v3558, 0
        %3565 = vmatpush.msra.mxu0 0.0
        %3566 = vmatpush.msra.mxu0 0.0
        %3567 = vmatpush.msra.mxu0 0.0
        %3568 = vmatpush.msra.mxu0 0.0
        %3569 = vmatpush.msra.mxu0 0.0
        %3570 = vmatpush.msra.mxu0 0.0
        %3571 = vmatpush.msra.mxu0 0.0
        %3572 = vmatpush.msra.mxu0 0.0
        %3573 = vmatpush.msra.mxu0 0.0
        %3574 = vmatpush.msra.mxu0 0.0
        %3575 = vmatpush.msra.mxu0 0.0
        %3576 = vmatpush.msra.mxu0 %v3563
        %3577 = vmatpush.msra.mxu0 %v3557
        %3578 = vmatpush.msra.mxu0 %v3556
        %3579 = vmatpush.msra.mxu0 %v3555
        %3580 = vmatpush.msra.mxu0 %v3554
        %3581 = vmatmul.f32.gmra.mxu0 %v3560
        %v3582 = vpop.f32.mrf.mxu0
        %v3583 = vadd.f32 0.0, %v3582
        %3584 = vdwg.mxu0
        %v3585 = vadd.f32 %v3552, %v3583
        %s3586 = scalar_lea.vmem [#allocation13], 320
        %v3587 = vld [vmem:[%s3586] sm:$0xff]
        %v3588 = vld [vmem:[%s3586 + $0x8] sm:$0xff]
        %v3589 = vld [vmem:[%s3586 + $0x10] sm:$0xff]
        %v3590 = vld [vmem:[%s3586 + $0x18] sm:$0xff]
        %v3591 = vld [vmem:[%s3586 + $0x20] sm:$0xf]
        %v3593 = vsel %vm3327, %v3320, 0
        %v3596 = vsel %vm852, %v3591, 0
        %3598 = vmatpush.msra.mxu0 0.0
        %3599 = vmatpush.msra.mxu0 0.0
        %3600 = vmatpush.msra.mxu0 0.0
        %3601 = vmatpush.msra.mxu0 0.0
        %3602 = vmatpush.msra.mxu0 0.0
        %3603 = vmatpush.msra.mxu0 0.0
        %3604 = vmatpush.msra.mxu0 0.0
        %3605 = vmatpush.msra.mxu0 0.0
        %3606 = vmatpush.msra.mxu0 0.0
        %3607 = vmatpush.msra.mxu0 0.0
        %3608 = vmatpush.msra.mxu0 0.0
        %3609 = vmatpush.msra.mxu0 %v3596
        %3610 = vmatpush.msra.mxu0 %v3590
        %3611 = vmatpush.msra.mxu0 %v3589
        %3612 = vmatpush.msra.mxu0 %v3588
        %3613 = vmatpush.msra.mxu0 %v3587
        %3614 = vmatmul.f32.gmra.mxu0 %v3593
        %v3615 = vpop.f32.mrf.mxu0
        %v3616 = vadd.f32 0.0, %v3615
        %3617 = vdwg.mxu0
        %v3618 = vadd.f32 %v3585, %v3616
        %s3619 = scalar_lea.vmem [#allocation13], 360
        %v3620 = vld [vmem:[%s3619] sm:$0xff]
        %v3621 = vld [vmem:[%s3619 + $0x8] sm:$0xff]
        %v3622 = vld [vmem:[%s3619 + $0x10] sm:$0xff]
        %v3623 = vld [vmem:[%s3619 + $0x18] sm:$0xff]
        %v3624 = vld [vmem:[%s3619 + $0x20] sm:$0xf]
        %v3625 = vrot.slane %v3320, 1
        %v3626 = vsel %vm3327, %v3625, 0
        %v3629 = vsel %vm852, %v3624, 0
        %3631 = vmatpush.msra.mxu0 0.0
        %3632 = vmatpush.msra.mxu0 0.0
        %3633 = vmatpush.msra.mxu0 0.0
        %3634 = vmatpush.msra.mxu0 0.0
        %3635 = vmatpush.msra.mxu0 0.0
        %3636 = vmatpush.msra.mxu0 0.0
        %3637 = vmatpush.msra.mxu0 0.0
        %3638 = vmatpush.msra.mxu0 0.0
        %3639 = vmatpush.msra.mxu0 0.0
        %3640 = vmatpush.msra.mxu0 0.0
        %3641 = vmatpush.msra.mxu0 0.0
        %3642 = vmatpush.msra.mxu0 %v3629
        %3643 = vmatpush.msra.mxu0 %v3623
        %3644 = vmatpush.msra.mxu0 %v3622
        %3645 = vmatpush.msra.mxu0 %v3621
        %3646 = vmatpush.msra.mxu0 %v3620
        %3647 = vmatmul.f32.gmra.mxu0 %v3626
        %v3648 = vpop.f32.mrf.mxu0
        %v3649 = vadd.f32 0.0, %v3648
        %3650 = vdwg.mxu0
        %v3651 = vadd.f32 %v3618, %v3649
        %s3652 = scalar_lea.vmem [#allocation13], 400
        %v3653 = vld [vmem:[%s3652] sm:$0xff]
        %v3654 = vld [vmem:[%s3652 + $0x8] sm:$0xff]
        %v3655 = vld [vmem:[%s3652 + $0x10] sm:$0xff]
        %v3656 = vld [vmem:[%s3652 + $0x18] sm:$0xff]
        %v3657 = vld [vmem:[%s3652 + $0x20] sm:$0xf]
        %v3658 = vrot.slane %v3320, 2
        %v3659 = vsel %vm3327, %v3658, 0
        %v3662 = vsel %vm852, %v3657, 0
        %3664 = vmatpush.msra.mxu0 0.0
        %3665 = vmatpush.msra.mxu0 0.0
        %3666 = vmatpush.msra.mxu0 0.0
        %3667 = vmatpush.msra.mxu0 0.0
        %3668 = vmatpush.msra.mxu0 0.0
        %3669 = vmatpush.msra.mxu0 0.0
        %3670 = vmatpush.msra.mxu0 0.0
        %3671 = vmatpush.msra.mxu0 0.0
        %3672 = vmatpush.msra.mxu0 0.0
        %3673 = vmatpush.msra.mxu0 0.0
        %3674 = vmatpush.msra.mxu0 0.0
        %3675 = vmatpush.msra.mxu0 %v3662
        %3676 = vmatpush.msra.mxu0 %v3656
        %3677 = vmatpush.msra.mxu0 %v3655
        %3678 = vmatpush.msra.mxu0 %v3654
        %3679 = vmatpush.msra.mxu0 %v3653
        %3680 = vmatmul.f32.gmra.mxu0 %v3659
        %v3681 = vpop.f32.mrf.mxu0
        %v3682 = vadd.f32 0.0, %v3681
        %3683 = vdwg.mxu0
        %v3684 = vadd.f32 %v3651, %v3682
        %s3685 = scalar_lea.vmem [#allocation13], 440
        %v3686 = vld [vmem:[%s3685] sm:$0xff]
        %v3687 = vld [vmem:[%s3685 + $0x8] sm:$0xff]
        %v3688 = vld [vmem:[%s3685 + $0x10] sm:$0xff]
        %v3689 = vld [vmem:[%s3685 + $0x18] sm:$0xff]
        %v3690 = vld [vmem:[%s3685 + $0x20] sm:$0xf]
        %v3691 = vrot.slane %v3320, 3
        %v3692 = vsel %vm3327, %v3691, 0
        %v3695 = vsel %vm852, %v3690, 0
        %3697 = vmatpush.msra.mxu0 0.0
        %3698 = vmatpush.msra.mxu0 0.0
        %3699 = vmatpush.msra.mxu0 0.0
        %3700 = vmatpush.msra.mxu0 0.0
        %3701 = vmatpush.msra.mxu0 0.0
        %3702 = vmatpush.msra.mxu0 0.0
        %3703 = vmatpush.msra.mxu0 0.0
        %3704 = vmatpush.msra.mxu0 0.0
        %3705 = vmatpush.msra.mxu0 0.0
        %3706 = vmatpush.msra.mxu0 0.0
        %3707 = vmatpush.msra.mxu0 0.0
        %3708 = vmatpush.msra.mxu0 %v3695
        %3709 = vmatpush.msra.mxu0 %v3689
        %3710 = vmatpush.msra.mxu0 %v3688
        %3711 = vmatpush.msra.mxu0 %v3687
        %3712 = vmatpush.msra.mxu0 %v3686
        %3713 = vmatmul.f32.gmra.mxu0 %v3692
        %v3714 = vpop.f32.mrf.mxu0
        %v3715 = vadd.f32 0.0, %v3714
        %3716 = vdwg.mxu0
        %v3717 = vadd.f32 %v3684, %v3715
        %s3718 = scalar_lea.vmem [#allocation13], 480
        %v3719 = vld [vmem:[%s3718] sm:$0xff]
        %v3720 = vld [vmem:[%s3718 + $0x8] sm:$0xff]
        %v3721 = vld [vmem:[%s3718 + $0x10] sm:$0xff]
        %v3722 = vld [vmem:[%s3718 + $0x18] sm:$0xff]
        %v3723 = vld [vmem:[%s3718 + $0x20] sm:$0xf]
        %v3724 = vrot.slane %v3320, 4
        %v3725 = vsel %vm3327, %v3724, 0
        %v3728 = vsel %vm852, %v3723, 0
        %3730 = vmatpush.msra.mxu0 0.0
        %3731 = vmatpush.msra.mxu0 0.0
        %3732 = vmatpush.msra.mxu0 0.0
        %3733 = vmatpush.msra.mxu0 0.0
        %3734 = vmatpush.msra.mxu0 0.0
        %3735 = vmatpush.msra.mxu0 0.0
        %3736 = vmatpush.msra.mxu0 0.0
        %3737 = vmatpush.msra.mxu0 0.0
        %3738 = vmatpush.msra.mxu0 0.0
        %3739 = vmatpush.msra.mxu0 0.0
        %3740 = vmatpush.msra.mxu0 0.0
        %3741 = vmatpush.msra.mxu0 %v3728
        %3742 = vmatpush.msra.mxu0 %v3722
        %3743 = vmatpush.msra.mxu0 %v3721
        %3744 = vmatpush.msra.mxu0 %v3720
        %3745 = vmatpush.msra.mxu0 %v3719
        %3746 = vmatmul.f32.gmra.mxu0 %v3725
        %v3747 = vpop.f32.mrf.mxu0
        %v3748 = vadd.f32 0.0, %v3747
        %3749 = vdwg.mxu0
        %v3750 = vadd.f32 %v3717, %v3748
        %s3751 = scalar_lea.vmem [#allocation13], 520
        %v3752 = vld [vmem:[%s3751] sm:$0xff]
        %v3753 = vld [vmem:[%s3751 + $0x8] sm:$0xff]
        %v3754 = vld [vmem:[%s3751 + $0x10] sm:$0xff]
        %v3755 = vld [vmem:[%s3751 + $0x18] sm:$0xff]
        %v3756 = vld [vmem:[%s3751 + $0x20] sm:$0xf]
        %v3757 = vrot.slane %v3320, 5
        %v3758 = vsel %vm3327, %v3757, 0
        %v3761 = vsel %vm852, %v3756, 0
        %3763 = vmatpush.msra.mxu0 0.0
        %3764 = vmatpush.msra.mxu0 0.0
        %3765 = vmatpush.msra.mxu0 0.0
        %3766 = vmatpush.msra.mxu0 0.0
        %3767 = vmatpush.msra.mxu0 0.0
        %3768 = vmatpush.msra.mxu0 0.0
        %3769 = vmatpush.msra.mxu0 0.0
        %3770 = vmatpush.msra.mxu0 0.0
        %3771 = vmatpush.msra.mxu0 0.0
        %3772 = vmatpush.msra.mxu0 0.0
        %3773 = vmatpush.msra.mxu0 0.0
        %3774 = vmatpush.msra.mxu0 %v3761
        %3775 = vmatpush.msra.mxu0 %v3755
        %3776 = vmatpush.msra.mxu0 %v3754
        %3777 = vmatpush.msra.mxu0 %v3753
        %3778 = vmatpush.msra.mxu0 %v3752
        %3779 = vmatmul.f32.gmra.mxu0 %v3758
        %v3780 = vpop.f32.mrf.mxu0
        %v3781 = vadd.f32 0.0, %v3780
        %3782 = vdwg.mxu0
        %v3783 = vadd.f32 %v3750, %v3781
        %s3784 = scalar_lea.vmem [#allocation13], 560
        %v3785 = vld [vmem:[%s3784] sm:$0xff]
        %v3786 = vld [vmem:[%s3784 + $0x8] sm:$0xff]
        %v3787 = vld [vmem:[%s3784 + $0x10] sm:$0xff]
        %v3788 = vld [vmem:[%s3784 + $0x18] sm:$0xff]
        %v3789 = vld [vmem:[%s3784 + $0x20] sm:$0xf]
        %v3790 = vrot.slane %v3320, 6
        %v3791 = vsel %vm3327, %v3790, 0
        %v3794 = vsel %vm852, %v3789, 0
        %3796 = vmatpush.msra.mxu0 0.0
        %3797 = vmatpush.msra.mxu0 0.0
        %3798 = vmatpush.msra.mxu0 0.0
        %3799 = vmatpush.msra.mxu0 0.0
        %3800 = vmatpush.msra.mxu0 0.0
        %3801 = vmatpush.msra.mxu0 0.0
        %3802 = vmatpush.msra.mxu0 0.0
        %3803 = vmatpush.msra.mxu0 0.0
        %3804 = vmatpush.msra.mxu0 0.0
        %3805 = vmatpush.msra.mxu0 0.0
        %3806 = vmatpush.msra.mxu0 0.0
        %3807 = vmatpush.msra.mxu0 %v3794
        %3808 = vmatpush.msra.mxu0 %v3788
        %3809 = vmatpush.msra.mxu0 %v3787
        %3810 = vmatpush.msra.mxu0 %v3786
        %3811 = vmatpush.msra.mxu0 %v3785
        %3812 = vmatmul.f32.gmra.mxu0 %v3791
        %v3813 = vpop.f32.mrf.mxu0
        %v3814 = vadd.f32 0.0, %v3813
        %3815 = vdwg.mxu0
        %v3816 = vadd.f32 %v3783, %v3814
        %s3817 = scalar_lea.vmem [#allocation13], 600
        %v3818 = vld [vmem:[%s3817] sm:$0xff]
        %v3819 = vld [vmem:[%s3817 + $0x8] sm:$0xff]
        %v3820 = vld [vmem:[%s3817 + $0x10] sm:$0xff]
        %v3821 = vld [vmem:[%s3817 + $0x18] sm:$0xff]
        %v3822 = vld [vmem:[%s3817 + $0x20] sm:$0xf]
        %v3823 = vrot.slane %v3320, 7
        %v3824 = vsel %vm3327, %v3823, 0
        %v3827 = vsel %vm852, %v3822, 0
        %3829 = vmatpush.msra.mxu0 0.0
        %3830 = vmatpush.msra.mxu0 0.0
        %3831 = vmatpush.msra.mxu0 0.0
        %3832 = vmatpush.msra.mxu0 0.0
        %3833 = vmatpush.msra.mxu0 0.0
        %3834 = vmatpush.msra.mxu0 0.0
        %3835 = vmatpush.msra.mxu0 0.0
        %3836 = vmatpush.msra.mxu0 0.0
        %3837 = vmatpush.msra.mxu0 0.0
        %3838 = vmatpush.msra.mxu0 0.0
        %3839 = vmatpush.msra.mxu0 0.0
        %3840 = vmatpush.msra.mxu0 %v3827
        %3841 = vmatpush.msra.mxu0 %v3821
        %3842 = vmatpush.msra.mxu0 %v3820
        %3843 = vmatpush.msra.mxu0 %v3819
        %3844 = vmatpush.msra.mxu0 %v3818
        %3845 = vmatmul.f32.gmra.mxu0 %v3824
        %v3846 = vpop.f32.mrf.mxu0
        %v3847 = vadd.f32 0.0, %v3846
        %3848 = vdwg.mxu0
        %v3849 = vadd.f32 %v3816, %v3847
        %v3850 = vmax.f32 %v3849, 0.0
        %v3851 = vld [vmem:[#allocation16] sm:$0xff]
        %v3852 = vld [vmem:[#allocation16 + $0x8] sm:$0xff]
        %v3853 = vld [vmem:[#allocation16 + $0x10] sm:$0xff]
        %v3854 = vld [vmem:[#allocation16 + $0x18] sm:$0xff]
        %v3855 = vld [vmem:[#allocation17] sm:$0x1]
        %vm3856 = vcmask 261120
        %v3858 = vsel %vm3856, %v3850, 0
        %3860 = vmatpush.msra.mxu0 0.0
        %3861 = vmatpush.msra.mxu0 0.0
        %3862 = vmatpush.msra.mxu0 0.0
        %3863 = vmatpush.msra.mxu0 0.0
        %3864 = vmatpush.msra.mxu0 0.0
        %3865 = vmatpush.msra.mxu0 0.0
        %3866 = vmatpush.msra.mxu0 0.0
        %3867 = vmatpush.msra.mxu0 0.0
        %3868 = vmatpush.msra.mxu0 0.0
        %3869 = vmatpush.msra.mxu0 0.0
        %3870 = vmatpush.msra.mxu0 0.0
        %3871 = vmatpush.msra.mxu0 0.0
        %3872 = vmatpush.msra.mxu0 %v3854
        %3873 = vmatpush.msra.mxu0 %v3853
        %3874 = vmatpush.msra.mxu0 %v3852
        %3875 = vmatpush.msra.mxu0 %v3851
        %3876 = vmatmul.f32.gmra.mxu0 %v3858
        %v3877 = vpop.f32.mrf.mxu0
        %v3878 = vadd.f32 %v3855, %v3877
        %3879 = vdwg.mxu0
        %vm3880 = vcmask 24576
        %3881 = vst.msk [vmem:[%s538] sm:$0x1] %vm3880, %v3878
        %s3882 = sand.u32 %s275, 1
        %s3883 = scalar_lea.sflag [#allocation4], %s3882
        %s3884 = sand.u32 %s275, 1
        %s3885 = scalar_lea.vmem [#allocation19], %s3884
        // Predicated region
        $region105: #{forward.1} parent=63 // pred_check
          %p3886 = pneg %p285
        $region106: #{forward.1} parent=63 // pred_check_branch
          %3888 = sbr.rel (%p3886) target = $region108
        $region107: #{forward.1} parent=63 // pred_region
          %3890 = vsyncadd %s3883, 0
          %s3891 = scalar_lea.hbm %s11, %s31
          %s3893 = sshll.u32 %s3885, 4
          %s3894 = int_to_ptr.vmem [resolvable:$true] %s3893
          %s3895 = sshll.u32 %s3891, 4
          %s3896 = int_to_ptr.hbm [resolvable:$true] %s3895
          %3898 = dma.vmem_to_hbm [thread:$0]  %s3894, 16, %s3896, %s3883
        $region108: #{forward.1} parent=63 // pred_fallthru
          _
      $region64: #{forward.1} parent=5 // pred_fallthru
        _
      %p3899 = scmp.le.s32.totalorder 2, %s26
      // Predicated region
      $region109: #{forward.1} parent=5 // pred_check
        %p3900 = pneg %p3899
      $region110: #{forward.1} parent=5 // pred_check_branch
        %3902 = sbr.rel (%p3900) target = $region112
      $region111: #{forward.1} parent=5 // pred_region
        %s3903 = ssub.s32 %s26, 2
        // Predicated region
        $region113: #{forward.1} parent=111 // pred_check
          %p3904 = pneg %p291
        $region114: #{forward.1} parent=111 // pred_check_branch
          %3906 = sbr.rel (%p3904) target = $region116
        $region115: #{forward.1} parent=111 // pred_region
          %s3907 = sand.u32 %s276, 1
          %s3908 = scalar_lea.sflag [#allocation4], %s3907
          %s3909 = sand.u32 %s276, 1
          %s3910 = scalar_lea.vmem [#allocation19], %s3909
          %3912 = dma.done %s3908, 16
        $region116: #{forward.1} parent=111 // pred_fallthru
          _
      $region112: #{forward.1} parent=5 // pred_fallthru
        _
    $region6: #{forward.1} parent=1 // loop_footer
      %s30 = sadd.s32 1, %s26
    $region7: #{forward.1} parent=1 // loop_footer_branch
      %25 = sbr.rel target = $region3
    $region8: #{forward.1} parent=1 // loop_exit
      _
    %3913 = vsyncpa [#allocation3], 1
    %s3914 = scalar_lea.sflag [#allocation3], 1
    %3915 = vsyncpa %s3914, 1
    %3916 = vsyncpa [#allocation6], 1
    %3917 = vsyncpa [#allocation9], 1
    %3918 = vsyncpa [#allocation12], 1
    %3919 = vsyncpa [#allocation15], 1
    %3920 = vsyncpa [#allocation18], 1
    %3921 = vsyncpa [#allocation4], 1
    %s3922 = scalar_lea.sflag [#allocation4], 1
    %3923 = vsyncpa %s3922, 1

</llo_original>
